<compile_context>
chip_gen: v5e
topology: v5e:2x2
jax: 0.10.0
libtpu: 0.0.40
codegen_flags: <defaults>
</compile_context>

<pallas_src>
import functools
import math

import jax
import jax.numpy as jnp
from jax.experimental import pallas as pl
from jax.experimental.pallas import tpu as pltpu

HIDDEN_DIM = 64
CAT_VAR = 2
KDIM = 149   # 143 (time embedding) + 6 (weekday embedding)
VDIM = 134   # module hard-codes vdim=134 (== farm capacity)
LANE = 128


def _round_up(x, m):
    return (x + m - 1) // m * m


def _tpu_num_tensorcores():
    """2 on v7x (two TensorCores per chip), 1 on v5e/v6e. Safe default: 1."""
    try:
        kind = jax.devices()[0].device_kind.lower()
    except Exception:
        return 1
    return 2 if ("v7" in kind or "7x" in kind) else 1


# ------------------------- fused attention kernel ---------------------------

def _fused_attn_kernel(xin_ref, xk_ref, xv_ref,
                       qw_ref, kw_ref, vw_ref,
                       qb_ref, kb_ref, vb_ref,
                       ow_ref, ob_ref, o_ref, *, scale):
    """One grid step == one attention head.

    xin_ref : (B, T, E)  f32   query input, also reused for the final gate
    xk_ref  : (B, T, KD) f32   key input (time/weekday embeddings)
    xv_ref  : (B, T, VD) f32   value input (last continuous feature)
    qw/kw/vw: (1, in, Dh) bf16 per-head projection weight slabs
    ow      : (1, Dh, E) bf16  per-head slice of the output projection
    o_ref   : (B, T, E)  f32   resident accumulator across the heads grid axis;
                               finalized (bias add + x_enc gate) at the last head.
    """
    head = pl.program_id(0)
    n_heads = pl.num_programs(0)
    B = o_ref.shape[0]
    bf16 = jnp.bfloat16

    @pl.when(head == 0)
    def _():
        o_ref[...] = jnp.zeros_like(o_ref)

    qw = qw_ref[0]
    kw = kw_ref[0]
    vw = vw_ref[0]
    qb = qb_ref[0]
    kb = kb_ref[0]
    vb = vb_ref[0]
    ow = ow_ref[0]

    for b in range(B):                      # B is tiny (2): static unroll
        q = jnp.dot(xin_ref[b].astype(bf16), qw,
                    preferred_element_type=jnp.float32) + qb      # (T, Dh)
        k = jnp.dot(xk_ref[b].astype(bf16), kw,
                    preferred_element_type=jnp.float32) + kb      # (T, Dh)
        v = jnp.dot(xv_ref[b].astype(bf16), vw,
                    preferred_element_type=jnp.float32) + vb      # (T, Dh)
        s = jnp.einsum('qd,kd->qk', q.astype(bf16), k.astype(bf16),
                       preferred_element_type=jnp.float32) * scale
        m = jnp.max(s, axis=-1, keepdims=True)
        p = jnp.exp(s - m)
        p = p * pl.reciprocal(jnp.sum(p, axis=-1, keepdims=True), approx=True)
        attn = jnp.dot(p.astype(bf16), v.astype(bf16),
                       preferred_element_type=jnp.float32)        # (T, Dh)
        o_ref[b] = o_ref[b] + jnp.dot(attn.astype(bf16), ow,
                                      preferred_element_type=jnp.float32)

    @pl.when(head == n_heads - 1)
    def _():
        # out-proj bias + the x_enc * attention elementwise gate, fused.
        o_ref[...] = (o_ref[...] + ob_ref[...]) * xin_ref[...]


def pallas_fused_attention(x_flat, x_cat, x_val, att):
    """x_flat (B,T,E), x_cat (B,T,KD), x_val (B,T,VD) -> (B,T,E) f32
    returning x_flat * MultiheadAttention(x_flat, x_cat, x_val)."""
    B, T, E = x_flat.shape
    KD = x_cat.shape[-1]
    VD = x_val.shape[-1]
    heads, _, dh = att['qw'].shape
    kernel = functools.partial(_fused_attn_kernel, scale=1.0 / math.sqrt(dh))

    def full(shape):
        return pl.BlockSpec(shape, lambda i: (0,) * len(shape))

    def per_head(d0, d1):
        return pl.BlockSpec((1, d0, d1), lambda i: (i, 0, 0))

    return pl.pallas_call(
        kernel,
        out_shape=jax.ShapeDtypeStruct((B, T, E), jnp.float32),
        grid=(heads,),
        in_specs=[full((B, T, E)), full((B, T, KD)), full((B, T, VD)),
                  per_head(E, dh), per_head(KD, dh), per_head(VD, dh),
                  per_head(1, dh), per_head(1, dh), per_head(1, dh),
                  per_head(dh, E), full((1, 1, E))],
        out_specs=full((B, T, E)),
        compiler_params=pltpu.CompilerParams(
            dimension_semantics=("arbitrary",)),
    )(x_flat, x_cat, x_val,
      att['qw'], att['kw'], att['vw'],
      att['qb'], att['kb'], att['vb'],
      att['ow'], att['ob'])


# --------------------------------- GRU ---------------------------------------

def _gru_seq_kernel(x_ref, wih_ref, bih_ref, whh_ref, bhh_ref, o_ref, *, T, H):
    """Intermediate GRU layer: input gates fused, emits hidden seq (T, bn, H)."""
    wih = wih_ref[...]
    bih = bih_ref[...]
    whh = whh_ref[...]
    bhh = bhh_ref[...]
    bn = x_ref.shape[1]

    def step(t, h):
        gx = jnp.dot(x_ref[t], wih, preferred_element_type=jnp.float32) + bih
        gh = jnp.dot(h, whh, preferred_element_type=jnp.float32) + bhh
        rz = jax.nn.sigmoid(gx[:, :2 * H] + gh[:, :2 * H])   # contiguous [r|z] slab
        r = rz[:, :H]
        z = rz[:, H:]
        n = jnp.tanh(gx[:, 2 * H:] + r * gh[:, 2 * H:])
        h_new = (1.0 - z) * n + z * h
        o_ref[t] = h_new
        return h_new

    jax.lax.fori_loop(0, T, step, jnp.zeros((bn, H), jnp.float32))


def _gru_proj_kernel(x_ref, wih_ref, bih_ref, whh_ref, bhh_ref,
                     pw_ref, pb_ref, o_ref, *, T, H, OL):
    """Last GRU layer fused with Linear(H->1)+relu on the last OL timesteps.

    The OL projected columns are accumulated in a lane-dense (bn, 128) carry
    and stored once at the end (no per-timestep masked 1-lane stores).
    """
    wih = wih_ref[...]
    bih = bih_ref[...]
    whh = whh_ref[...]
    bhh = bhh_ref[...]
    pw = pw_ref[...]                     # (1, H)
    pb = pb_ref[...]                     # (1, 1)
    bn = x_ref.shape[1]
    olp = o_ref.shape[1]
    lane = jax.lax.broadcasted_iota(jnp.int32, (bn, olp), 1)

    def step(t, carry):
        h, acc = carry
        gx = jnp.dot(x_ref[t], wih, preferred_element_type=jnp.float32) + bih
        gh = jnp.dot(h, whh, preferred_element_type=jnp.float32) + bhh
        rz = jax.nn.sigmoid(gx[:, :2 * H] + gh[:, :2 * H])
        r = rz[:, :H]
        z = rz[:, H:]
        n = jnp.tanh(gx[:, 2 * H:] + r * gh[:, 2 * H:])
        h_new = (1.0 - z) * n + z * h
        proj = jnp.sum(h_new * pw, axis=-1, keepdims=True) + pb   # (bn, 1)
        # column t-(T-OL) (negative for early steps -> no lane selected)
        acc = jnp.where(lane == (t - (T - OL)), proj, acc)
        return h_new, acc

    carry0 = (jnp.zeros((bn, H), jnp.float32),
              jnp.zeros((bn, olp), jnp.float32))
    _, acc = jax.lax.fori_loop(0, T, step, carry0)
    o_ref[...] = jnp.maximum(acc, 0.0)


def pallas_gru_hidden_seq(x_tm, layer, *, bn_chunks):
    T, BNp, F = x_tm.shape
    H, G = layer['whh'].shape
    bnc = BNp // bn_chunks
    kernel = functools.partial(_gru_seq_kernel, T=T, H=H)
    return pl.pallas_call(
        kernel,
        out_shape=jax.ShapeDtypeStruct((T, BNp, H), jnp.float32),
        grid=(bn_chunks,),
        in_specs=[pl.BlockSpec((T, bnc, F), lambda c: (0, c, 0)),
                  pl.BlockSpec((F, G), lambda c: (0, 0)),
                  pl.BlockSpec((1, G), lambda c: (0, 0)),
                  pl.BlockSpec((H, G), lambda c: (0, 0)),
                  pl.BlockSpec((1, G), lambda c: (0, 0))],
        out_specs=pl.BlockSpec((T, bnc, H), lambda c: (0, c, 0)),
        compiler_params=pltpu.CompilerParams(
            dimension_semantics=("parallel",)),
    )(x_tm, layer['wih'], layer['bih'], layer['whh'], layer['bhh'])


def pallas_gru_project(x_tm, layer, proj_w, proj_b, *, output_len, bn_chunks):
    T, BNp, F = x_tm.shape
    H, G = layer['whh'].shape
    bnc = BNp // bn_chunks
    olp = max(LANE, _round_up(output_len, LANE))    # lane-dense output width
    kernel = functools.partial(_gru_proj_kernel, T=T, H=H, OL=output_len)
    return pl.pallas_call(
        kernel,
        out_shape=jax.ShapeDtypeStruct((BNp, olp), jnp.float32),
        grid=(bn_chunks,),
        in_specs=[pl.BlockSpec((T, bnc, F), lambda c: (0, c, 0)),
                  pl.BlockSpec((F, G), lambda c: (0, 0)),
                  pl.BlockSpec((1, G), lambda c: (0, 0)),
                  pl.BlockSpec((H, G), lambda c: (0, 0)),
                  pl.BlockSpec((1, G), lambda c: (0, 0)),
                  pl.BlockSpec((1, H), lambda c: (0, 0)),
                  pl.BlockSpec((1, 1), lambda c: (0, 0))],
        out_specs=pl.BlockSpec((bnc, olp), lambda c: (c, 0)),
        compiler_params=pltpu.CompilerParams(
            dimension_semantics=("parallel",)),
    )(x_tm, layer['wih'], layer['bih'], layer['whh'], layer['bhh'],
      proj_w, proj_b)


# --------------------------- params / forward --------------------------------

def init_params(key, settings):
    nodes = settings['capacity']
    invar = settings['var_len'] - CAT_VAR
    assert nodes == VDIM, "module hard-codes vdim=134, so capacity must be 134"
    E = invar * nodes
    H = HIDDEN_DIM
    out = settings['var_out']
    nl = settings['num_layers']

    def xavier(k, shape):
        fan_out, fan_in = shape[0], shape[1]
        lim = math.sqrt(6.0 / (fan_in + fan_out))
        return jax.random.uniform(k, shape, jnp.float32, -lim, lim)

    def uni(k, shape):  # nn.init.uniform_ default is U(0, 1)
        return jax.random.uniform(k, shape, jnp.float32, 0.0, 1.0)

    keys = iter(jax.random.split(key, 16 + 4 * nl))
    p = {
        't_emb': xavier(next(keys), (144, 143)),
        'w_emb': xavier(next(keys), (7, 6)),
        'q_w': xavier(next(keys), (E, E)),
        'k_w': xavier(next(keys), (E, KDIM)),
        'v_w': xavier(next(keys), (E, VDIM)),
        'b_q': uni(next(keys), (E,)),
        'b_k': uni(next(keys), (E,)),
        'b_v': uni(next(keys), (E,)),
        'out_w': xavier(next(keys), (E, E)),
        'out_b': uni(next(keys), (E,)),
        'proj_w': xavier(next(keys), (out, H)),
        'proj_b': uni(next(keys), (out,)),
        'gru': [],
    }
    for l in range(nl):
        in_size = invar if l == 0 else H
        p['gru'].append({
            'w_ih': xavier(next(keys), (3 * H, in_size)),
            'w_hh': xavier(next(keys), (3 * H, H)),
            'b_ih': uni(next(keys), (3 * H,)),
            'b_hh': uni(next(keys), (3 * H,)),
        })
    return p


def prepare_params(params, settings):
    """One-time weight pre-bake (runs once, outside the per-forward jit):
    transpose + per-head reorganize + bf16-cast the attention projection
    weights, transpose the GRU weights.  No pad/cast/transpose ops remain on
    the forward path."""
    nodes = settings['capacity']
    invar = settings['var_len'] - CAT_VAR
    heads = invar
    dh = nodes
    E = nodes * invar
    H = HIDDEN_DIM

    def per_head_cols(w_t):          # w_t: (in, E) -> (heads, in, dh) bf16
        kin = w_t.shape[0]
        return (w_t.reshape(kin, heads, dh)
                   .transpose(1, 0, 2)
                   .astype(jnp.bfloat16))

    prep = {
        't_emb': params['t_emb'].astype(jnp.float32),
        'w_emb': params['w_emb'].astype(jnp.float32),
        'att': {
            'qw': per_head_cols(params['q_w'].T),
            'kw': per_head_cols(params['k_w'].T),
            'vw': per_head_cols(params['v_w'].T),
            'qb': params['b_q'].reshape(heads, 1, dh).astype(jnp.float32),
            'kb': params['b_k'].reshape(heads, 1, dh).astype(jnp.float32),
            'vb': params['b_v'].reshape(heads, 1, dh).astype(jnp.float32),
            'ow': params['out_w'].T.reshape(heads, dh, E).astype(jnp.bfloat16),
            'ob': params['out_b'].reshape(1, 1, E).astype(jnp.float32),
        },
        'proj_w': params['proj_w'].reshape(1, H).astype(jnp.float32),
        'proj_b': params['proj_b'].reshape(1, 1).astype(jnp.float32),
        'gru': [{
            'wih': l['w_ih'].T.astype(jnp.float32),
            'bih': l['b_ih'].reshape(1, -1).astype(jnp.float32),
            'whh': l['w_hh'].T.astype(jnp.float32),
            'bhh': l['b_hh'].reshape(1, -1).astype(jnp.float32),
        } for l in params['gru']],
    }
    return prep


def gru_att_forward(prep, x_enc, x_time_id, settings, *, bn_chunks=1):
    B, nodes, T, invar = x_enc.shape
    output_len = settings['output_len']
    assert settings['var_out'] == 1, \
        "reference module's final reshape requires var_out == 1"
    E = nodes * invar

    # --- embeddings (gather glue; no Pallas equivalent needed) ---
    x_time_id = x_time_id.astype(jnp.int32)
    time_id = jnp.take(prep['t_emb'], x_time_id[..., 1], axis=0)      # (B,T,143)
    weekday_id = jnp.take(prep['w_emb'], x_time_id[..., 0], axis=0)   # (B,T,6)
    x_cat = jnp.concatenate([time_id, weekday_id], axis=-1)           # (B,T,149)

    x_enc_p = jnp.transpose(x_enc, (0, 2, 1, 3))                      # (B,T,nodes,invar)
    x_flat = x_enc_p.reshape(B, T, E).astype(jnp.float32)
    x_val = x_enc_p[..., -1].astype(jnp.float32)                      # (B,T,nodes)

    # --- attention path: q/k/v proj + per-head attention + out-proj
    #     + (x_enc * attention) elementwise gate, fused into ONE pallas_call ---
    x_gru_flat = pallas_fused_attention(x_flat, x_cat, x_val, prep['att'])

    # --- reshape to GRU layout (XLA glue), dropout is identity at inference ---
    x_gru_in = x_gru_flat.reshape(B, T, nodes, invar)
    x_gru_in = jnp.transpose(x_gru_in, (0, 2, 1, 3)).reshape(B * nodes, T, invar)
    BN = B * nodes
    BN_pad = _round_up(BN, 8 * bn_chunks)
    x_gru_in = jnp.pad(x_gru_in, ((0, BN_pad - BN), (0, 0), (0, 0)))
    feats_tm = jnp.transpose(x_gru_in, (1, 0, 2))                     # (T, BNp, invar)

    # --- GRU: input gates fused into the recurrence (fori_loop over time) ---
    layers = prep['gru']
    for layer in layers[:-1]:
        feats_tm = pallas_gru_hidden_seq(feats_tm, layer, bn_chunks=bn_chunks)
    proj = pallas_gru_project(feats_tm, layers[-1],
                              prep['proj_w'], prep['proj_b'],
                              output_len=output_len, bn_chunks=bn_chunks)
    return proj[:BN, :output_len].reshape(B, nodes, output_len)


if __name__ == "__main__":
    settings = dict(output_len=4, var_len=10, capacity=134, var_out=1,
                    nhead=8, dropout=0.0, num_layers=1)
    B, T = 2, 8
    nodes = settings['capacity']
    invar = settings['var_len'] - CAT_VAR         # 8 continuous features

    key = jax.random.PRNGKey(0)
    kp, kx, kt, kw = jax.random.split(key, 4)
    params = init_params(kp, settings)
    prep = prepare_params(params, settings)       # one-time weight pre-bake

    x_enc = jax.random.normal(kx, (B, nodes, T, invar), jnp.float32)
    weekday = jax.random.randint(kw, (B, T, 1), 0, 7, jnp.int32)
    timeofday = jax.random.randint(kt, (B, T, 1), 0, 144, jnp.int32)
    x_time_id = jnp.concatenate([weekday, timeofday], axis=-1)        # (B, T, 2)

    bn_chunks = _tpu_num_tensorcores()            # 2 on v7x, 1 on v5e/v6e

    fwd = jax.jit(functools.partial(gru_att_forward, settings=settings,
                                    bn_chunks=bn_chunks))
    out = fwd(prep, x_enc, x_time_id)
    jax.block_until_ready(out)
    assert out.shape == (B, nodes, settings['output_len']), out.shape
    assert bool(jnp.all(out >= 0.0))
    print("KERNEL_OK")
</pallas_src>

<mosaic_0001>
module attributes {stable_mosaic.version = 11 : i64} {
  func.func @_fused_attn_kernel(%arg0: i32, %arg1: memref<2x8x1072xf32, #tpu.memory_space<vmem>>, %arg2: memref<2x8x149xf32, #tpu.memory_space<vmem>>, %arg3: memref<2x8x134xf32, #tpu.memory_space<vmem>>, %arg4: memref<1x1072x134xbf16, #tpu.memory_space<vmem>>, %arg5: memref<1x149x134xbf16, #tpu.memory_space<vmem>>, %arg6: memref<1x134x134xbf16, #tpu.memory_space<vmem>>, %arg7: memref<1x1x134xf32, #tpu.memory_space<vmem>>, %arg8: memref<1x1x134xf32, #tpu.memory_space<vmem>>, %arg9: memref<1x1x134xf32, #tpu.memory_space<vmem>>, %arg10: memref<1x134x1072xbf16, #tpu.memory_space<vmem>>, %arg11: memref<1x1x1072xf32, #tpu.memory_space<vmem>>, %arg12: memref<2x8x1072xf32, #tpu.memory_space<vmem>>) attributes {dimension_semantics = [#tpu.dimension_semantics<arbitrary>], iteration_bounds = array<i64: 8>, scalar_prefetch = 0 : i64, scratch_operands = 0 : i64, tpu.core_type = #tpu.core_type<tc>, window_params = [{pipeline_mode = #tpu.pipeline_mode<synchronous>, transform_indices = @transform_0, window_bounds = array<i64: 2, 8, 1072>}, {pipeline_mode = #tpu.pipeline_mode<synchronous>, transform_indices = @transform_1, window_bounds = array<i64: 2, 8, 149>}, {pipeline_mode = #tpu.pipeline_mode<synchronous>, transform_indices = @transform_2, window_bounds = array<i64: 2, 8, 134>}, {transform_indices = @transform_3, window_bounds = array<i64: 1, 1072, 134>}, {transform_indices = @transform_4, window_bounds = array<i64: 1, 149, 134>}, {transform_indices = @transform_5, window_bounds = array<i64: 1, 134, 134>}, {transform_indices = @transform_6, window_bounds = array<i64: 1, 1, 134>}, {transform_indices = @transform_7, window_bounds = array<i64: 1, 1, 134>}, {transform_indices = @transform_8, window_bounds = array<i64: 1, 1, 134>}, {transform_indices = @transform_9, window_bounds = array<i64: 1, 134, 1072>}, {pipeline_mode = #tpu.pipeline_mode<synchronous>, transform_indices = @transform_10, window_bounds = array<i64: 1, 1, 1072>}, {pipeline_mode = #tpu.pipeline_mode<synchronous>, transform_indices = @transform_11, window_bounds = array<i64: 2, 8, 1072>}]} {
    %c0_i32 = arith.constant 0 : i32
    %0 = arith.cmpi eq, %arg0, %c0_i32 : i32
    %1 = arith.extui %0 : i1 to i32
    %c0_i32_0 = arith.constant 0 : i32
    %2 = arith.cmpi ne, %1, %c0_i32_0 : i32
    scf.if %2 {
      %cst_68 = arith.constant 0.000000e+00 : f32
      %108 = vector.broadcast %cst_68 : f32 to vector<2x8x1072xf32>
      %c0_69 = arith.constant 0 : index
      %c0_70 = arith.constant 0 : index
      %c0_71 = arith.constant 0 : index
      %109 = vector.load %arg12[%c0_69, %c0_70, %c0_71] : memref<2x8x1072xf32, #tpu.memory_space<vmem>>, vector<2x8x1072xf32>
      tpu.vector_store %arg12[%c0_69, %c0_70, %c0_71], %108 {strides = array<i32>} : memref<2x8x1072xf32, #tpu.memory_space<vmem>>, vector<2x8x1072xf32>,
    } else {
    }
    %c0 = arith.constant 0 : index
    %c0_1 = arith.constant 0 : index
    %c0_2 = arith.constant 0 : index
    %3 = vector.load %arg4[%c0, %c0_1, %c0_2] : memref<1x1072x134xbf16, #tpu.memory_space<vmem>>, vector<1x1072x134xbf16>
    %4 = vector.shape_cast %3 : vector<1x1072x134xbf16> to vector<1072x134xbf16>
    %c0_3 = arith.constant 0 : index
    %c0_4 = arith.constant 0 : index
    %c0_5 = arith.constant 0 : index
    %5 = vector.load %arg5[%c0_3, %c0_4, %c0_5] : memref<1x149x134xbf16, #tpu.memory_space<vmem>>, vector<1x149x134xbf16>
    %6 = vector.shape_cast %5 : vector<1x149x134xbf16> to vector<149x134xbf16>
    %c0_6 = arith.constant 0 : index
    %c0_7 = arith.constant 0 : index
    %c0_8 = arith.constant 0 : index
    %7 = vector.load %arg6[%c0_6, %c0_7, %c0_8] : memref<1x134x134xbf16, #tpu.memory_space<vmem>>, vector<1x134x134xbf16>
    %8 = vector.shape_cast %7 : vector<1x134x134xbf16> to vector<134x134xbf16>
    %c0_9 = arith.constant 0 : index
    %c0_10 = arith.constant 0 : index
    %c0_11 = arith.constant 0 : index
    %9 = vector.load %arg7[%c0_9, %c0_10, %c0_11] : memref<1x1x134xf32, #tpu.memory_space<vmem>>, vector<1x1x134xf32>
    %10 = vector.shape_cast %9 : vector<1x1x134xf32> to vector<1x134xf32>
    %c0_12 = arith.constant 0 : index
    %c0_13 = arith.constant 0 : index
    %c0_14 = arith.constant 0 : index
    %11 = vector.load %arg8[%c0_12, %c0_13, %c0_14] : memref<1x1x134xf32, #tpu.memory_space<vmem>>, vector<1x1x134xf32>
    %12 = vector.shape_cast %11 : vector<1x1x134xf32> to vector<1x134xf32>
    %c0_15 = arith.constant 0 : index
    %c0_16 = arith.constant 0 : index
    %c0_17 = arith.constant 0 : index
    %13 = vector.load %arg9[%c0_15, %c0_16, %c0_17] : memref<1x1x134xf32, #tpu.memory_space<vmem>>, vector<1x1x134xf32>
    %14 = vector.shape_cast %13 : vector<1x1x134xf32> to vector<1x134xf32>
    %c0_18 = arith.constant 0 : index
    %c0_19 = arith.constant 0 : index
    %c0_20 = arith.constant 0 : index
    %15 = vector.load %arg10[%c0_18, %c0_19, %c0_20] : memref<1x134x1072xbf16, #tpu.memory_space<vmem>>, vector<1x134x1072xbf16>
    %16 = vector.shape_cast %15 : vector<1x134x1072xbf16> to vector<134x1072xbf16>
    %c0_21 = arith.constant 0 : index
    %c0_22 = arith.constant 0 : index
    %c0_23 = arith.constant 0 : index
    %17 = vector.load %arg1[%c0_21, %c0_22, %c0_23] : memref<2x8x1072xf32, #tpu.memory_space<vmem>>, vector<1x8x1072xf32>
    %18 = vector.shape_cast %17 : vector<1x8x1072xf32> to vector<8x1072xf32>
    %19 = arith.truncf %18 : vector<8x1072xf32> to vector<8x1072xbf16>
    %cst = arith.constant dense<0.000000e+00> : vector<8x134xf32>
    %20 = tpu.matmul %19, %4, %cst {dimension_numbers = #tpu.dot_dimension_numbers<[1], [0], [0], [1], [0, 0, 1, 1], [], []>} : vector<8x1072xbf16>, vector<1072x134xbf16>, vector<8x134xf32> -> vector<8x134xf32>
    %21 = vector.broadcast %10 : vector<1x134xf32> to vector<8x134xf32>
    %22 = arith.addf %20, %21 : vector<8x134xf32>
    %c0_24 = arith.constant 0 : index
    %c0_25 = arith.constant 0 : index
    %c0_26 = arith.constant 0 : index
    %23 = vector.load %arg2[%c0_24, %c0_25, %c0_26] : memref<2x8x149xf32, #tpu.memory_space<vmem>>, vector<1x8x149xf32>
    %24 = vector.shape_cast %23 : vector<1x8x149xf32> to vector<8x149xf32>
    %25 = arith.truncf %24 : vector<8x149xf32> to vector<8x149xbf16>
    %cst_27 = arith.constant dense<0.000000e+00> : vector<8x134xf32>
    %26 = tpu.matmul %25, %6, %cst_27 {dimension_numbers = #tpu.dot_dimension_numbers<[1], [0], [0], [1], [0, 0, 1, 1], [], []>} : vector<8x149xbf16>, vector<149x134xbf16>, vector<8x134xf32> -> vector<8x134xf32>
    %27 = vector.broadcast %12 : vector<1x134xf32> to vector<8x134xf32>
    %28 = arith.addf %26, %27 : vector<8x134xf32>
    %c0_28 = arith.constant 0 : index
    %c0_29 = arith.constant 0 : index
    %c0_30 = arith.constant 0 : index
    %29 = vector.load %arg3[%c0_28, %c0_29, %c0_30] : memref<2x8x134xf32, #tpu.memory_space<vmem>>, vector<1x8x134xf32>
    %30 = vector.shape_cast %29 : vector<1x8x134xf32> to vector<8x134xf32>
    %31 = arith.truncf %30 : vector<8x134xf32> to vector<8x134xbf16>
    %cst_31 = arith.constant dense<0.000000e+00> : vector<8x134xf32>
    %32 = tpu.matmul %31, %8, %cst_31 {dimension_numbers = #tpu.dot_dimension_numbers<[1], [0], [0], [1], [0, 0, 1, 1], [], []>} : vector<8x134xbf16>, vector<134x134xbf16>, vector<8x134xf32> -> vector<8x134xf32>
    %33 = vector.broadcast %14 : vector<1x134xf32> to vector<8x134xf32>
    %34 = arith.addf %32, %33 : vector<8x134xf32>
    %35 = arith.truncf %22 : vector<8x134xf32> to vector<8x134xbf16>
    %36 = arith.truncf %28 : vector<8x134xf32> to vector<8x134xbf16>
    "tpu.trace_start"() <{level = 10 : i32, message = "qd,kd->qk"}> : () -> ()
    %cst_32 = arith.constant dense<0.000000e+00> : vector<8x8xf32>
    %37 = tpu.matmul %35, %36, %cst_32 {dimension_numbers = #tpu.dot_dimension_numbers<[1], [1], [0], [0], [0, 0, 1, 0], [], []>} : vector<8x134xbf16>, vector<8x134xbf16>, vector<8x8xf32> -> vector<8x8xf32>
    "tpu.trace_stop"() : () -> ()
    %cst_33 = arith.constant 0.0863868445 : f32
    %38 = vector.broadcast %cst_33 : f32 to vector<8x8xf32>
    %39 = arith.mulf %37, %38 : vector<8x8xf32>
    %cst_34 = arith.constant dense<0xFF800000> : vector<8xf32>
    %40 = vector.multi_reduction <maximumf>, %39, %cst_34 [1] : vector<8x8xf32> to vector<8xf32>
    %41 = vector.shape_cast %40 : vector<8xf32> to vector<8x1xf32>
    %42 = vector.broadcast %41 : vector<8x1xf32> to vector<8x8xf32>
    %43 = arith.subf %39, %42 : vector<8x8xf32>
    %44 = math.exp %43 : vector<8x8xf32>
    %cst_35 = arith.constant dense<0.000000e+00> : vector<8xf32>
    %45 = vector.multi_reduction <add>, %44, %cst_35 [1] : vector<8x8xf32> to vector<8xf32>
    %46 = vector.shape_cast %45 : vector<8xf32> to vector<8x1xf32>
    %47 = tpu.reciprocal %46 {approx = true} : vector<8x1xf32> -> vector<8x1xf32>
    %48 = vector.broadcast %47 : vector<8x1xf32> to vector<8x8xf32>
    %49 = arith.mulf %44, %48 : vector<8x8xf32>
    %50 = arith.truncf %49 : vector<8x8xf32> to vector<8x8xbf16>
    %51 = arith.truncf %34 : vector<8x134xf32> to vector<8x134xbf16>
    %cst_36 = arith.constant dense<0.000000e+00> : vector<8x134xf32>
    %52 = tpu.matmul %50, %51, %cst_36 {dimension_numbers = #tpu.dot_dimension_numbers<[1], [0], [0], [1], [0, 0, 1, 1], [], []>} : vector<8x8xbf16>, vector<8x134xbf16>, vector<8x134xf32> -> vector<8x134xf32>
    %c0_37 = arith.constant 0 : index
    %c0_38 = arith.constant 0 : index
    %c0_39 = arith.constant 0 : index
    %53 = vector.load %arg12[%c0_37, %c0_38, %c0_39] : memref<2x8x1072xf32, #tpu.memory_space<vmem>>, vector<1x8x1072xf32>
    %54 = vector.shape_cast %53 : vector<1x8x1072xf32> to vector<8x1072xf32>
    %55 = arith.truncf %52 : vector<8x134xf32> to vector<8x134xbf16>
    %cst_40 = arith.constant dense<0.000000e+00> : vector<8x1072xf32>
    %56 = tpu.matmul %55, %16, %cst_40 {dimension_numbers = #tpu.dot_dimension_numbers<[1], [0], [0], [1], [0, 0, 1, 1], [], []>} : vector<8x134xbf16>, vector<134x1072xbf16>, vector<8x1072xf32> -> vector<8x1072xf32>
    %57 = arith.addf %54, %56 : vector<8x1072xf32>
    %c0_41 = arith.constant 0 : index
    %c0_42 = arith.constant 0 : index
    %c0_43 = arith.constant 0 : index
    %58 = vector.load %arg12[%c0_41, %c0_42, %c0_43] : memref<2x8x1072xf32, #tpu.memory_space<vmem>>, vector<1x8x1072xf32>
    %59 = vector.shape_cast %58 : vector<1x8x1072xf32> to vector<8x1072xf32>
    %60 = vector.shape_cast %57 : vector<8x1072xf32> to vector<1x8x1072xf32>
    tpu.vector_store %arg12[%c0_41, %c0_42, %c0_43], %60 {strides = array<i32>} : memref<2x8x1072xf32, #tpu.memory_space<vmem>>, vector<1x8x1072xf32>,
    %c1 = arith.constant 1 : index
    %c0_44 = arith.constant 0 : index
    %c0_45 = arith.constant 0 : index
    %61 = vector.load %arg1[%c1, %c0_44, %c0_45] : memref<2x8x1072xf32, #tpu.memory_space<vmem>>, vector<1x8x1072xf32>
    %62 = vector.shape_cast %61 : vector<1x8x1072xf32> to vector<8x1072xf32>
    %63 = arith.truncf %62 : vector<8x1072xf32> to vector<8x1072xbf16>
    %cst_46 = arith.constant dense<0.000000e+00> : vector<8x134xf32>
    %64 = tpu.matmul %63, %4, %cst_46 {dimension_numbers = #tpu.dot_dimension_numbers<[1], [0], [0], [1], [0, 0, 1, 1], [], []>} : vector<8x1072xbf16>, vector<1072x134xbf16>, vector<8x134xf32> -> vector<8x134xf32>
    %65 = vector.broadcast %10 : vector<1x134xf32> to vector<8x134xf32>
    %66 = arith.addf %64, %65 : vector<8x134xf32>
    %c1_47 = arith.constant 1 : index
    %c0_48 = arith.constant 0 : index
    %c0_49 = arith.constant 0 : index
    %67 = vector.load %arg2[%c1_47, %c0_48, %c0_49] : memref<2x8x149xf32, #tpu.memory_space<vmem>>, vector<1x8x149xf32>
    %68 = vector.shape_cast %67 : vector<1x8x149xf32> to vector<8x149xf32>
    %69 = arith.truncf %68 : vector<8x149xf32> to vector<8x149xbf16>
    %cst_50 = arith.constant dense<0.000000e+00> : vector<8x134xf32>
    %70 = tpu.matmul %69, %6, %cst_50 {dimension_numbers = #tpu.dot_dimension_numbers<[1], [0], [0], [1], [0, 0, 1, 1], [], []>} : vector<8x149xbf16>, vector<149x134xbf16>, vector<8x134xf32> -> vector<8x134xf32>
    %71 = vector.broadcast %12 : vector<1x134xf32> to vector<8x134xf32>
    %72 = arith.addf %70, %71 : vector<8x134xf32>
    %c1_51 = arith.constant 1 : index
    %c0_52 = arith.constant 0 : index
    %c0_53 = arith.constant 0 : index
    %73 = vector.load %arg3[%c1_51, %c0_52, %c0_53] : memref<2x8x134xf32, #tpu.memory_space<vmem>>, vector<1x8x134xf32>
    %74 = vector.shape_cast %73 : vector<1x8x134xf32> to vector<8x134xf32>
    %75 = arith.truncf %74 : vector<8x134xf32> to vector<8x134xbf16>
    %cst_54 = arith.constant dense<0.000000e+00> : vector<8x134xf32>
    %76 = tpu.matmul %75, %8, %cst_54 {dimension_numbers = #tpu.dot_dimension_numbers<[1], [0], [0], [1], [0, 0, 1, 1], [], []>} : vector<8x134xbf16>, vector<134x134xbf16>, vector<8x134xf32> -> vector<8x134xf32>
    %77 = vector.broadcast %14 : vector<1x134xf32> to vector<8x134xf32>
    %78 = arith.addf %76, %77 : vector<8x134xf32>
    %79 = arith.truncf %66 : vector<8x134xf32> to vector<8x134xbf16>
    %80 = arith.truncf %72 : vector<8x134xf32> to vector<8x134xbf16>
    "tpu.trace_start"() <{level = 10 : i32, message = "qd,kd->qk"}> : () -> ()
    %cst_55 = arith.constant dense<0.000000e+00> : vector<8x8xf32>
    %81 = tpu.matmul %79, %80, %cst_55 {dimension_numbers = #tpu.dot_dimension_numbers<[1], [1], [0], [0], [0, 0, 1, 0], [], []>} : vector<8x134xbf16>, vector<8x134xbf16>, vector<8x8xf32> -> vector<8x8xf32>
    "tpu.trace_stop"() : () -> ()
    %cst_56 = arith.constant 0.0863868445 : f32
    %82 = vector.broadcast %cst_56 : f32 to vector<8x8xf32>
    %83 = arith.mulf %81, %82 : vector<8x8xf32>
    %cst_57 = arith.constant dense<0xFF800000> : vector<8xf32>
    %84 = vector.multi_reduction <maximumf>, %83, %cst_57 [1] : vector<8x8xf32> to vector<8xf32>
    %85 = vector.shape_cast %84 : vector<8xf32> to vector<8x1xf32>
    %86 = vector.broadcast %85 : vector<8x1xf32> to vector<8x8xf32>
    %87 = arith.subf %83, %86 : vector<8x8xf32>
    %88 = math.exp %87 : vector<8x8xf32>
    %cst_58 = arith.constant dense<0.000000e+00> : vector<8xf32>
    %89 = vector.multi_reduction <add>, %88, %cst_58 [1] : vector<8x8xf32> to vector<8xf32>
    %90 = vector.shape_cast %89 : vector<8xf32> to vector<8x1xf32>
    %91 = tpu.reciprocal %90 {approx = true} : vector<8x1xf32> -> vector<8x1xf32>
    %92 = vector.broadcast %91 : vector<8x1xf32> to vector<8x8xf32>
    %93 = arith.mulf %88, %92 : vector<8x8xf32>
    %94 = arith.truncf %93 : vector<8x8xf32> to vector<8x8xbf16>
    %95 = arith.truncf %78 : vector<8x134xf32> to vector<8x134xbf16>
    %cst_59 = arith.constant dense<0.000000e+00> : vector<8x134xf32>
    %96 = tpu.matmul %94, %95, %cst_59 {dimension_numbers = #tpu.dot_dimension_numbers<[1], [0], [0], [1], [0, 0, 1, 1], [], []>} : vector<8x8xbf16>, vector<8x134xbf16>, vector<8x134xf32> -> vector<8x134xf32>
    %c1_60 = arith.constant 1 : index
    %c0_61 = arith.constant 0 : index
    %c0_62 = arith.constant 0 : index
    %97 = vector.load %arg12[%c1_60, %c0_61, %c0_62] : memref<2x8x1072xf32, #tpu.memory_space<vmem>>, vector<1x8x1072xf32>
    %98 = vector.shape_cast %97 : vector<1x8x1072xf32> to vector<8x1072xf32>
    %99 = arith.truncf %96 : vector<8x134xf32> to vector<8x134xbf16>
    %cst_63 = arith.constant dense<0.000000e+00> : vector<8x1072xf32>
    %100 = tpu.matmul %99, %16, %cst_63 {dimension_numbers = #tpu.dot_dimension_numbers<[1], [0], [0], [1], [0, 0, 1, 1], [], []>} : vector<8x134xbf16>, vector<134x1072xbf16>, vector<8x1072xf32> -> vector<8x1072xf32>
    %101 = arith.addf %98, %100 : vector<8x1072xf32>
    %c1_64 = arith.constant 1 : index
    %c0_65 = arith.constant 0 : index
    %c0_66 = arith.constant 0 : index
    %102 = vector.load %arg12[%c1_64, %c0_65, %c0_66] : memref<2x8x1072xf32, #tpu.memory_space<vmem>>, vector<1x8x1072xf32>
    %103 = vector.shape_cast %102 : vector<1x8x1072xf32> to vector<8x1072xf32>
    %104 = vector.shape_cast %101 : vector<8x1072xf32> to vector<1x8x1072xf32>
    tpu.vector_store %arg12[%c1_64, %c0_65, %c0_66], %104 {strides = array<i32>} : memref<2x8x1072xf32, #tpu.memory_space<vmem>>, vector<1x8x1072xf32>,
    %c7_i32 = arith.constant 7 : i32
    %105 = arith.cmpi eq, %arg0, %c7_i32 : i32
    %106 = arith.extui %105 : i1 to i32
    %c0_i32_67 = arith.constant 0 : i32
    %107 = arith.cmpi ne, %106, %c0_i32_67 : i32
    scf.if %107 {
      %c0_68 = arith.constant 0 : index
      %c0_69 = arith.constant 0 : index
      %c0_70 = arith.constant 0 : index
      %108 = vector.load %arg12[%c0_68, %c0_69, %c0_70] : memref<2x8x1072xf32, #tpu.memory_space<vmem>>, vector<2x8x1072xf32>
      %c0_71 = arith.constant 0 : index
      %c0_72 = arith.constant 0 : index
      %c0_73 = arith.constant 0 : index
      %109 = vector.load %arg11[%c0_71, %c0_72, %c0_73] : memref<1x1x1072xf32, #tpu.memory_space<vmem>>, vector<1x1x1072xf32>
      %110 = vector.broadcast %109 : vector<1x1x1072xf32> to vector<2x8x1072xf32>
      %111 = arith.addf %108, %110 : vector<2x8x1072xf32>
      %c0_74 = arith.constant 0 : index
      %c0_75 = arith.constant 0 : index
      %c0_76 = arith.constant 0 : index
      %112 = vector.load %arg1[%c0_74, %c0_75, %c0_76] : memref<2x8x1072xf32, #tpu.memory_space<vmem>>, vector<2x8x1072xf32>
      %113 = arith.mulf %111, %112 : vector<2x8x1072xf32>
      %c0_77 = arith.constant 0 : index
      %c0_78 = arith.constant 0 : index
      %c0_79 = arith.constant 0 : index
      %114 = vector.load %arg12[%c0_77, %c0_78, %c0_79] : memref<2x8x1072xf32, #tpu.memory_space<vmem>>, vector<2x8x1072xf32>
      tpu.vector_store %arg12[%c0_77, %c0_78, %c0_79], %113 {strides = array<i32>} : memref<2x8x1072xf32, #tpu.memory_space<vmem>>, vector<2x8x1072xf32>,
    } else {
    }
    return
  }
  func.func @transform_0(%arg0: i32) -> (i32, i32, i32) {
    %c0_i32 = arith.constant 0 : i32
    %c0_i32_0 = arith.constant 0 : i32
    %c0_i32_1 = arith.constant 0 : i32
    %c0_i32_2 = arith.constant 0 : i32
    return %c0_i32, %c0_i32_0, %c0_i32_1 : i32, i32, i32
  }
  func.func @transform_1(%arg0: i32) -> (i32, i32, i32) {
    %c0_i32 = arith.constant 0 : i32
    %c0_i32_0 = arith.constant 0 : i32
    %c0_i32_1 = arith.constant 0 : i32
    %c0_i32_2 = arith.constant 0 : i32
    return %c0_i32, %c0_i32_0, %c0_i32_1 : i32, i32, i32
  }
  func.func @transform_2(%arg0: i32) -> (i32, i32, i32) {
    %c0_i32 = arith.constant 0 : i32
    %c0_i32_0 = arith.constant 0 : i32
    %c0_i32_1 = arith.constant 0 : i32
    %c0_i32_2 = arith.constant 0 : i32
    return %c0_i32, %c0_i32_0, %c0_i32_1 : i32, i32, i32
  }
  func.func @transform_3(%arg0: i32) -> (i32, i32, i32) {
    %c0_i32 = arith.constant 0 : i32
    %c0_i32_0 = arith.constant 0 : i32
    %c0_i32_1 = arith.constant 0 : i32
    return %arg0, %c0_i32, %c0_i32_0 : i32, i32, i32
  }
  func.func @transform_4(%arg0: i32) -> (i32, i32, i32) {
    %c0_i32 = arith.constant 0 : i32
    %c0_i32_0 = arith.constant 0 : i32
    %c0_i32_1 = arith.constant 0 : i32
    return %arg0, %c0_i32, %c0_i32_0 : i32, i32, i32
  }
  func.func @transform_5(%arg0: i32) -> (i32, i32, i32) {
    %c0_i32 = arith.constant 0 : i32
    %c0_i32_0 = arith.constant 0 : i32
    %c0_i32_1 = arith.constant 0 : i32
    return %arg0, %c0_i32, %c0_i32_0 : i32, i32, i32
  }
  func.func @transform_6(%arg0: i32) -> (i32, i32, i32) {
    %c0_i32 = arith.constant 0 : i32
    %c0_i32_0 = arith.constant 0 : i32
    %c0_i32_1 = arith.constant 0 : i32
    return %arg0, %c0_i32, %c0_i32_0 : i32, i32, i32
  }
  func.func @transform_7(%arg0: i32) -> (i32, i32, i32) {
    %c0_i32 = arith.constant 0 : i32
    %c0_i32_0 = arith.constant 0 : i32
    %c0_i32_1 = arith.constant 0 : i32
    return %arg0, %c0_i32, %c0_i32_0 : i32, i32, i32
  }
  func.func @transform_8(%arg0: i32) -> (i32, i32, i32) {
    %c0_i32 = arith.constant 0 : i32
    %c0_i32_0 = arith.constant 0 : i32
    %c0_i32_1 = arith.constant 0 : i32
    return %arg0, %c0_i32, %c0_i32_0 : i32, i32, i32
  }
  func.func @transform_9(%arg0: i32) -> (i32, i32, i32) {
    %c0_i32 = arith.constant 0 : i32
    %c0_i32_0 = arith.constant 0 : i32
    %c0_i32_1 = arith.constant 0 : i32
    return %arg0, %c0_i32, %c0_i32_0 : i32, i32, i32
  }
  func.func @transform_10(%arg0: i32) -> (i32, i32, i32) {
    %c0_i32 = arith.constant 0 : i32
    %c0_i32_0 = arith.constant 0 : i32
    %c0_i32_1 = arith.constant 0 : i32
    %c0_i32_2 = arith.constant 0 : i32
    return %c0_i32, %c0_i32_0, %c0_i32_1 : i32, i32, i32
  }
  func.func @transform_11(%arg0: i32) -> (i32, i32, i32) {
    %c0_i32 = arith.constant 0 : i32
    %c0_i32_0 = arith.constant 0 : i32
    %c0_i32_1 = arith.constant 0 : i32
    %c0_i32_2 = arith.constant 0 : i32
    return %c0_i32, %c0_i32_0, %c0_i32_1 : i32, i32, i32
  }
}

module attributes {stable_mosaic.version = 11 : i64} {
  func.func @_gru_proj_kernel(%arg0: i32, %arg1: memref<8x272x8xf32, #tpu.memory_space<vmem>>, %arg2: memref<8x192xf32, #tpu.memory_space<vmem>>, %arg3: memref<1x192xf32, #tpu.memory_space<vmem>>, %arg4: memref<64x192xf32, #tpu.memory_space<vmem>>, %arg5: memref<1x192xf32, #tpu.memory_space<vmem>>, %arg6: memref<1x64xf32, #tpu.memory_space<vmem>>, %arg7: memref<1x1xf32, #tpu.memory_space<vmem>>, %arg8: memref<272x128xf32, #tpu.memory_space<vmem>>) attributes {dimension_semantics = [#tpu.dimension_semantics<parallel>], iteration_bounds = array<i64: 1>, scalar_prefetch = 0 : i64, scratch_operands = 0 : i64, tpu.core_type = #tpu.core_type<tc>, window_params = [{transform_indices = @transform_0, window_bounds = array<i64: 8, 272, 8>}, {pipeline_mode = #tpu.pipeline_mode<synchronous>, transform_indices = @transform_1, window_bounds = array<i64: 8, 192>}, {pipeline_mode = #tpu.pipeline_mode<synchronous>, transform_indices = @transform_2, window_bounds = array<i64: 1, 192>}, {pipeline_mode = #tpu.pipeline_mode<synchronous>, transform_indices = @transform_3, window_bounds = array<i64: 64, 192>}, {pipeline_mode = #tpu.pipeline_mode<synchronous>, transform_indices = @transform_4, window_bounds = array<i64: 1, 192>}, {pipeline_mode = #tpu.pipeline_mode<synchronous>, transform_indices = @transform_5, window_bounds = array<i64: 1, 64>}, {pipeline_mode = #tpu.pipeline_mode<synchronous>, transform_indices = @transform_6, window_bounds = array<i64: 1, 1>}, {transform_indices = @transform_7, window_bounds = array<i64: 272, 128>}]} {
    %c0 = arith.constant 0 : index
    %c0_0 = arith.constant 0 : index
    %0 = vector.load %arg2[%c0, %c0_0] : memref<8x192xf32, #tpu.memory_space<vmem>>, vector<8x192xf32>
    %c0_1 = arith.constant 0 : index
    %c0_2 = arith.constant 0 : index
    %1 = vector.load %arg3[%c0_1, %c0_2] : memref<1x192xf32, #tpu.memory_space<vmem>>, vector<1x192xf32>
    %c0_3 = arith.constant 0 : index
    %c0_4 = arith.constant 0 : index
    %2 = vector.load %arg4[%c0_3, %c0_4] : memref<64x192xf32, #tpu.memory_space<vmem>>, vector<64x192xf32>
    %c0_5 = arith.constant 0 : index
    %c0_6 = arith.constant 0 : index
    %3 = vector.load %arg5[%c0_5, %c0_6] : memref<1x192xf32, #tpu.memory_space<vmem>>, vector<1x192xf32>
    %c0_7 = arith.constant 0 : index
    %c0_8 = arith.constant 0 : index
    %4 = vector.load %arg6[%c0_7, %c0_8] : memref<1x64xf32, #tpu.memory_space<vmem>>, vector<1x64xf32>
    %c0_9 = arith.constant 0 : index
    %c0_10 = arith.constant 0 : index
    %5 = vector.load %arg7[%c0_9, %c0_10] : memref<1x1xf32, #tpu.memory_space<vmem>>, vector<1x1xf32>
    %6 = tpu.iota {dimensions = array<i32: 1>} : vector<272x128xi32>
    %cst = arith.constant 0.000000e+00 : f32
    %7 = vector.broadcast %cst : f32 to vector<272x64xf32>
    %cst_11 = arith.constant 0.000000e+00 : f32
    %8 = vector.broadcast %cst_11 : f32 to vector<272x128xf32>
    %c0_i32 = arith.constant 0 : i32
    %c8_i32 = arith.constant 8 : i32
    %9 = arith.addi %c0_i32, %c8_i32 : i32
    %c1_i32 = arith.constant 1 : i32
    %10:2 = scf.for %arg9 = %c0_i32 to %9 step %c1_i32 iter_args(%arg10 = %7, %arg11 = %8) -> (vector<272x64xf32>, vector<272x128xf32>)  : i32 {
      %14 = arith.index_cast %arg9 : i32 to index
      %c0_16 = arith.constant 0 : index
      %c0_17 = arith.constant 0 : index
      %15 = vector.load %arg1[%14, %c0_16, %c0_17] : memref<8x272x8xf32, #tpu.memory_space<vmem>>, vector<1x272x8xf32>
      %16 = vector.shape_cast %15 : vector<1x272x8xf32> to vector<272x8xf32>
      %cst_18 = arith.constant dense<0.000000e+00> : vector<272x192xf32>
      %17 = tpu.matmul %16, %0, %cst_18 {dimension_numbers = #tpu.dot_dimension_numbers<[1], [0], [0], [1], [0, 0, 1, 1], [], []>} : vector<272x8xf32>, vector<8x192xf32>, vector<272x192xf32> -> vector<272x192xf32>
      %18 = vector.broadcast %1 : vector<1x192xf32> to vector<272x192xf32>
      %19 = arith.addf %17, %18 : vector<272x192xf32>
      %cst_19 = arith.constant dense<0.000000e+00> : vector<272x192xf32>
      %20 = tpu.matmul %arg10, %2, %cst_19 {dimension_numbers = #tpu.dot_dimension_numbers<[1], [0], [0], [1], [0, 0, 1, 1], [], []>} : vector<272x64xf32>, vector<64x192xf32>, vector<272x192xf32> -> vector<272x192xf32>
      %21 = vector.broadcast %3 : vector<1x192xf32> to vector<272x192xf32>
      %22 = arith.addf %20, %21 : vector<272x192xf32>
      %23 = vector.extract_strided_slice %19 {offsets = [0, 0], sizes = [272, 128], strides = [1, 1]} : vector<272x192xf32> to vector<272x128xf32>
      %24 = vector.extract_strided_slice %22 {offsets = [0, 0], sizes = [272, 128], strides = [1, 1]} : vector<272x192xf32> to vector<272x128xf32>
      %25 = arith.addf %23, %24 : vector<272x128xf32>
      %26 = arith.negf %25 : vector<272x128xf32>
      %27 = math.exp %26 : vector<272x128xf32>
      %cst_20 = arith.constant 1.000000e+00 : f32
      %28 = vector.broadcast %cst_20 : f32 to vector<272x128xf32>
      %29 = arith.addf %28, %27 : vector<272x128xf32>
      %30 = arith.divf %28, %29 : vector<272x128xf32>
      %31 = vector.extract_strided_slice %30 {offsets = [0, 0], sizes = [272, 64], strides = [1, 1]} : vector<272x128xf32> to vector<272x64xf32>
      %32 = vector.extract_strided_slice %30 {offsets = [0, 64], sizes = [272, 64], strides = [1, 1]} : vector<272x128xf32> to vector<272x64xf32>
      %33 = vector.extract_strided_slice %19 {offsets = [0, 128], sizes = [272, 64], strides = [1, 1]} : vector<272x192xf32> to vector<272x64xf32>
      %34 = vector.extract_strided_slice %22 {offsets = [0, 128], sizes = [272, 64], strides = [1, 1]} : vector<272x192xf32> to vector<272x64xf32>
      %35 = arith.mulf %31, %34 : vector<272x64xf32>
      %36 = arith.addf %33, %35 : vector<272x64xf32>
      %37 = math.tanh %36 : vector<272x64xf32>
      %cst_21 = arith.constant 1.000000e+00 : f32
      %38 = vector.broadcast %cst_21 : f32 to vector<272x64xf32>
      %39 = arith.subf %38, %32 : vector<272x64xf32>
      %40 = arith.mulf %39, %37 : vector<272x64xf32>
      %41 = arith.mulf %32, %arg10 : vector<272x64xf32>
      %42 = arith.addf %40, %41 : vector<272x64xf32>
      %43 = vector.broadcast %4 : vector<1x64xf32> to vector<272x64xf32>
      %44 = arith.mulf %42, %43 : vector<272x64xf32>
      %cst_22 = arith.constant dense<0.000000e+00> : vector<272xf32>
      %45 = vector.multi_reduction <add>, %44, %cst_22 [1] : vector<272x64xf32> to vector<272xf32>
      %46 = vector.shape_cast %45 : vector<272xf32> to vector<272x1xf32>
      %47 = vector.broadcast %5 : vector<1x1xf32> to vector<272x1xf32>
      %48 = arith.addf %46, %47 : vector<272x1xf32>
      %c4_i32 = arith.constant 4 : i32
      %49 = arith.subi %arg9, %c4_i32 : i32
      %50 = vector.broadcast %49 : i32 to vector<272x128xi32>
      %51 = arith.cmpi eq, %6, %50 : vector<272x128xi32>
      %52 = vector.shape_cast %48 : vector<272x1xf32> to vector<272x1xf32>
      %53 = vector.broadcast %52 : vector<272x1xf32> to vector<272x128xf32>
      %54 = arith.select %51, %53, %arg11 : vector<272x128xi1>, vector<272x128xf32>
      scf.yield %42, %54 : vector<272x64xf32>, vector<272x128xf32>
    }
    %c8_i32_12 = arith.constant 8 : i32
    %cst_13 = arith.constant 0.000000e+00 : f32
    %11 = vector.broadcast %cst_13 : f32 to vector<272x128xf32>
    %12 = arith.maximumf %10#1, %11 : vector<272x128xf32>
    %c0_14 = arith.constant 0 : index
    %c0_15 = arith.constant 0 : index
    %13 = vector.load %arg8[%c0_14, %c0_15] : memref<272x128xf32, #tpu.memory_space<vmem>>, vector<272x128xf32>
    tpu.vector_store %arg8[%c0_14, %c0_15], %12 {strides = array<i32>} : memref<272x128xf32, #tpu.memory_space<vmem>>, vector<272x128xf32>,
    return
  }
  func.func @transform_0(%arg0: i32) -> (i32, i32, i32) {
    %c0_i32 = arith.constant 0 : i32
    %c0_i32_0 = arith.constant 0 : i32
    %c0_i32_1 = arith.constant 0 : i32
    return %c0_i32, %arg0, %c0_i32_0 : i32, i32, i32
  }
  func.func @transform_1(%arg0: i32) -> (i32, i32) {
    %c0_i32 = arith.constant 0 : i32
    %c0_i32_0 = arith.constant 0 : i32
    %c0_i32_1 = arith.constant 0 : i32
    return %c0_i32, %c0_i32_0 : i32, i32
  }
  func.func @transform_2(%arg0: i32) -> (i32, i32) {
    %c0_i32 = arith.constant 0 : i32
    %c0_i32_0 = arith.constant 0 : i32
    %c0_i32_1 = arith.constant 0 : i32
    return %c0_i32, %c0_i32_0 : i32, i32
  }
  func.func @transform_3(%arg0: i32) -> (i32, i32) {
    %c0_i32 = arith.constant 0 : i32
    %c0_i32_0 = arith.constant 0 : i32
    %c0_i32_1 = arith.constant 0 : i32
    return %c0_i32, %c0_i32_0 : i32, i32
  }
  func.func @transform_4(%arg0: i32) -> (i32, i32) {
    %c0_i32 = arith.constant 0 : i32
    %c0_i32_0 = arith.constant 0 : i32
    %c0_i32_1 = arith.constant 0 : i32
    return %c0_i32, %c0_i32_0 : i32, i32
  }
  func.func @transform_5(%arg0: i32) -> (i32, i32) {
    %c0_i32 = arith.constant 0 : i32
    %c0_i32_0 = arith.constant 0 : i32
    %c0_i32_1 = arith.constant 0 : i32
    return %c0_i32, %c0_i32_0 : i32, i32
  }
  func.func @transform_6(%arg0: i32) -> (i32, i32) {
    %c0_i32 = arith.constant 0 : i32
    %c0_i32_0 = arith.constant 0 : i32
    %c0_i32_1 = arith.constant 0 : i32
    return %c0_i32, %c0_i32_0 : i32, i32
  }
  func.func @transform_7(%arg0: i32) -> (i32, i32) {
    %c0_i32 = arith.constant 0 : i32
    %c0_i32_0 = arith.constant 0 : i32
    return %arg0, %c0_i32 : i32, i32
  }
}

</mosaic_0001>

<llo_original>
// kernel: gru_att_forward.2
$region0: #{gru_att_forward.2}
  #allocation0 [shape = 'u32[]', space=smem, size = 0x4, offset = 0x4, fixed_abs, tag = 'smem constant byte address 0x4 - core index']
  #allocation1 [shape = 'u32[72,128]{1,0:T(1,128)}', space=vmem, size = 0x9000, scoped, tag = 'internal scratch']
  %s0 = inlined_call_operand.vmem [shape: f32[2,8,1072], index: 0, kind: input, shape index: {}]
  %s1 = inlined_call_operand.vmem [shape: f32[2,8,149], index: 1, kind: input, shape index: {}]
  %s2 = inlined_call_operand.vmem [shape: f32[2,8,134], index: 2, kind: input, shape index: {}]
  %s3 = inlined_call_operand.vmem [shape: bf16[8,1072,134], index: 3, kind: input, shape index: {}]
  %s4 = inlined_call_operand.vmem [shape: bf16[8,149,134], index: 4, kind: input, shape index: {}]
  %s5 = inlined_call_operand.vmem [shape: bf16[8,134,134], index: 5, kind: input, shape index: {}]
  %s6 = inlined_call_operand.vmem [shape: f32[8,1,134], index: 6, kind: input, shape index: {}]
  %s7 = inlined_call_operand.vmem [shape: f32[8,1,134], index: 7, kind: input, shape index: {}]
  %s8 = inlined_call_operand.vmem [shape: f32[8,1,134], index: 8, kind: input, shape index: {}]
  %s9 = inlined_call_operand.vmem [shape: bf16[8,134,1072], index: 9, kind: input, shape index: {}]
  %s10 = inlined_call_operand.vmem [shape: f32[1,1,1072], index: 10, kind: input, shape index: {}]
  %s11 = inlined_call_operand.vmem [shape: f32[2,8,1072], index: 11, kind: output, shape index: {}]
  %s12 = sld [smem:[#allocation0]]
  $region85: #{gru_att_forward.2} parent=0
    _
  %s14 = ssub.s32 1, %s12
  %s15 = scalar_select 0, %s14, %s12
  loop: start=0, step=1, limit=10
  $region2: #{gru_att_forward.2} parent=0 // loop_pre_header
    _
  $region3: #{gru_att_forward.2} parent=0 // loop_header
    %s17 = sphi 0, %s21
    %p18 = scmp.ge.s32.totalorder %s17, 10
    %s25 = sphi 0, %s25
    %s27 = sphi 0, %s25
    %s28 = sphi 0, %s27
    %s42 = sphi 0, %s28
    %s46 = sphi 0, %s46
    %s48 = sphi 0, %s46
    %s49 = sphi 0, %s48
    %s63 = sphi 0, %s49
    %s67 = sphi 0, %s67
    %s69 = sphi 0, %s67
    %s70 = sphi 0, %s69
    %s84 = sphi 0, %s70
    %s90 = sphi 0, %s92
    %s93 = sphi 0, %s90
    %s94 = sphi 0, %s93
    %s110 = sphi 0, %s94
    %s116 = sphi 0, %s118
    %s119 = sphi 0, %s116
    %s120 = sphi 0, %s119
    %s136 = sphi 0, %s120
    %s142 = sphi 0, %s144
    %s145 = sphi 0, %s142
    %s146 = sphi 0, %s145
    %s162 = sphi 0, %s146
    %s168 = sphi 0, %s170
    %s171 = sphi 0, %s168
    %s172 = sphi 0, %s171
    %s188 = sphi 0, %s172
    %s194 = sphi 0, %s196
    %s197 = sphi 0, %s194
    %s198 = sphi 0, %s197
    %s214 = sphi 0, %s198
    %s220 = sphi 0, %s222
    %s223 = sphi 0, %s220
    %s224 = sphi 0, %s223
    %s240 = sphi 0, %s224
    %s246 = sphi 0, %s248
    %s249 = sphi 0, %s246
    %s250 = sphi 0, %s249
    %s266 = sphi 0, %s250
    %s270 = sphi 0, %s270
    %s272 = sphi 0, %s270
    %s273 = sphi 0, %s272
    %s287 = sphi 0, %s273
    %s291 = sphi 0, %s291
    %s293 = sphi 0, %s291
    %s294 = sphi 0, %s293
    %s308 = sphi 0, %s294
  $region4: #{gru_att_forward.2} parent=0 // loop_header_branch
    %20 = sbr.rel (%p18) target = $region8
  $region5: #{gru_att_forward.2} parent=0 // loop_body
    %s22 = ssub.s32 %s17, 1
    %s23 = ssub.s32 %s17, 2
    %s24 = sadd.s32 %s17, 1
    %s26 = sadd.s32 %s25, 1
    %p29 = scmp.eq.s32.totalorder %s17, 7
    %p30 = scmp.ne.s32.totalorder %s25, %s27
    %p31 = scmp.eq.s32.totalorder %s17, 0
    %p32 = por %p30, %p31
    %p33 = scmp.ne.s32.totalorder %s25, %s27
    %p34 = scmp.eq.s32.totalorder %s22, 7
    %p35 = por %p33, %p34
    %p36 = scmp.ne.s32.totalorder %s27, %s28
    %p37 = scmp.eq.s32.totalorder %s22, 0
    %p38 = por %p36, %p37
    %p39 = scmp.ne.s32.totalorder %s27, %s28
    %p40 = scmp.eq.s32.totalorder %s23, 7
    %p41 = por %p39, %p40
    %p43 = scmp.ne.s32.totalorder %s28, %s42
    %p44 = scmp.eq.s32.totalorder %s23, 0
    %p45 = por %p43, %p44
    %s47 = sadd.s32 %s46, 1
    %p50 = scmp.eq.s32.totalorder %s17, 7
    %p51 = scmp.ne.s32.totalorder %s46, %s48
    %p52 = scmp.eq.s32.totalorder %s17, 0
    %p53 = por %p51, %p52
    %p54 = scmp.ne.s32.totalorder %s46, %s48
    %p55 = scmp.eq.s32.totalorder %s22, 7
    %p56 = por %p54, %p55
    %p57 = scmp.ne.s32.totalorder %s48, %s49
    %p58 = scmp.eq.s32.totalorder %s22, 0
    %p59 = por %p57, %p58
    %p60 = scmp.ne.s32.totalorder %s48, %s49
    %p61 = scmp.eq.s32.totalorder %s23, 7
    %p62 = por %p60, %p61
    %p64 = scmp.ne.s32.totalorder %s49, %s63
    %p65 = scmp.eq.s32.totalorder %s23, 0
    %p66 = por %p64, %p65
    %s68 = sadd.s32 %s67, 1
    %p71 = scmp.eq.s32.totalorder %s17, 7
    %p72 = scmp.ne.s32.totalorder %s67, %s69
    %p73 = scmp.eq.s32.totalorder %s17, 0
    %p74 = por %p72, %p73
    %p75 = scmp.ne.s32.totalorder %s67, %s69
    %p76 = scmp.eq.s32.totalorder %s22, 7
    %p77 = por %p75, %p76
    %p78 = scmp.ne.s32.totalorder %s69, %s70
    %p79 = scmp.eq.s32.totalorder %s22, 0
    %p80 = por %p78, %p79
    %p81 = scmp.ne.s32.totalorder %s69, %s70
    %p82 = scmp.eq.s32.totalorder %s23, 7
    %p83 = por %p81, %p82
    %p85 = scmp.ne.s32.totalorder %s70, %s84
    %p86 = scmp.eq.s32.totalorder %s23, 0
    %p87 = por %p85, %p86
    %s88 = ssub.s32 %s17, %s24
    %p89 = scmp.eq.s32.totalorder %s88, 0
    %s91 = sadd.s32 %s90, 1
    %s92 = scalar_select %p89, %s90, %s91
    %p95 = pneg %p89
    %p96 = scmp.eq.s32.totalorder %s17, 7
    %p97 = por %p95, %p96
    %p98 = scmp.ne.s32.totalorder %s90, %s93
    %p99 = scmp.eq.s32.totalorder %s17, 0
    %p100 = por %p98, %p99
    %p101 = scmp.ne.s32.totalorder %s90, %s93
    %p102 = scmp.eq.s32.totalorder %s22, 7
    %p103 = por %p101, %p102
    %p104 = scmp.ne.s32.totalorder %s93, %s94
    %p105 = scmp.eq.s32.totalorder %s22, 0
    %p106 = por %p104, %p105
    %p107 = scmp.ne.s32.totalorder %s93, %s94
    %p108 = scmp.eq.s32.totalorder %s23, 7
    %p109 = por %p107, %p108
    %p111 = scmp.ne.s32.totalorder %s94, %s110
    %p112 = scmp.eq.s32.totalorder %s23, 0
    %p113 = por %p111, %p112
    %s114 = ssub.s32 %s17, %s24
    %p115 = scmp.eq.s32.totalorder %s114, 0
    %s117 = sadd.s32 %s116, 1
    %s118 = scalar_select %p115, %s116, %s117
    %p121 = pneg %p115
    %p122 = scmp.eq.s32.totalorder %s17, 7
    %p123 = por %p121, %p122
    %p124 = scmp.ne.s32.totalorder %s116, %s119
    %p125 = scmp.eq.s32.totalorder %s17, 0
    %p126 = por %p124, %p125
    %p127 = scmp.ne.s32.totalorder %s116, %s119
    %p128 = scmp.eq.s32.totalorder %s22, 7
    %p129 = por %p127, %p128
    %p130 = scmp.ne.s32.totalorder %s119, %s120
    %p131 = scmp.eq.s32.totalorder %s22, 0
    %p132 = por %p130, %p131
    %p133 = scmp.ne.s32.totalorder %s119, %s120
    %p134 = scmp.eq.s32.totalorder %s23, 7
    %p135 = por %p133, %p134
    %p137 = scmp.ne.s32.totalorder %s120, %s136
    %p138 = scmp.eq.s32.totalorder %s23, 0
    %p139 = por %p137, %p138
    %s140 = ssub.s32 %s17, %s24
    %p141 = scmp.eq.s32.totalorder %s140, 0
    %s143 = sadd.s32 %s142, 1
    %s144 = scalar_select %p141, %s142, %s143
    %p147 = pneg %p141
    %p148 = scmp.eq.s32.totalorder %s17, 7
    %p149 = por %p147, %p148
    %p150 = scmp.ne.s32.totalorder %s142, %s145
    %p151 = scmp.eq.s32.totalorder %s17, 0
    %p152 = por %p150, %p151
    %p153 = scmp.ne.s32.totalorder %s142, %s145
    %p154 = scmp.eq.s32.totalorder %s22, 7
    %p155 = por %p153, %p154
    %p156 = scmp.ne.s32.totalorder %s145, %s146
    %p157 = scmp.eq.s32.totalorder %s22, 0
    %p158 = por %p156, %p157
    %p159 = scmp.ne.s32.totalorder %s145, %s146
    %p160 = scmp.eq.s32.totalorder %s23, 7
    %p161 = por %p159, %p160
    %p163 = scmp.ne.s32.totalorder %s146, %s162
    %p164 = scmp.eq.s32.totalorder %s23, 0
    %p165 = por %p163, %p164
    %s166 = ssub.s32 %s17, %s24
    %p167 = scmp.eq.s32.totalorder %s166, 0
    %s169 = sadd.s32 %s168, 1
    %s170 = scalar_select %p167, %s168, %s169
    %p173 = pneg %p167
    %p174 = scmp.eq.s32.totalorder %s17, 7
    %p175 = por %p173, %p174
    %p176 = scmp.ne.s32.totalorder %s168, %s171
    %p177 = scmp.eq.s32.totalorder %s17, 0
    %p178 = por %p176, %p177
    %p179 = scmp.ne.s32.totalorder %s168, %s171
    %p180 = scmp.eq.s32.totalorder %s22, 7
    %p181 = por %p179, %p180
    %p182 = scmp.ne.s32.totalorder %s171, %s172
    %p183 = scmp.eq.s32.totalorder %s22, 0
    %p184 = por %p182, %p183
    %p185 = scmp.ne.s32.totalorder %s171, %s172
    %p186 = scmp.eq.s32.totalorder %s23, 7
    %p187 = por %p185, %p186
    %p189 = scmp.ne.s32.totalorder %s172, %s188
    %p190 = scmp.eq.s32.totalorder %s23, 0
    %p191 = por %p189, %p190
    %s192 = ssub.s32 %s17, %s24
    %p193 = scmp.eq.s32.totalorder %s192, 0
    %s195 = sadd.s32 %s194, 1
    %s196 = scalar_select %p193, %s194, %s195
    %p199 = pneg %p193
    %p200 = scmp.eq.s32.totalorder %s17, 7
    %p201 = por %p199, %p200
    %p202 = scmp.ne.s32.totalorder %s194, %s197
    %p203 = scmp.eq.s32.totalorder %s17, 0
    %p204 = por %p202, %p203
    %p205 = scmp.ne.s32.totalorder %s194, %s197
    %p206 = scmp.eq.s32.totalorder %s22, 7
    %p207 = por %p205, %p206
    %p208 = scmp.ne.s32.totalorder %s197, %s198
    %p209 = scmp.eq.s32.totalorder %s22, 0
    %p210 = por %p208, %p209
    %p211 = scmp.ne.s32.totalorder %s197, %s198
    %p212 = scmp.eq.s32.totalorder %s23, 7
    %p213 = por %p211, %p212
    %p215 = scmp.ne.s32.totalorder %s198, %s214
    %p216 = scmp.eq.s32.totalorder %s23, 0
    %p217 = por %p215, %p216
    %s218 = ssub.s32 %s17, %s24
    %p219 = scmp.eq.s32.totalorder %s218, 0
    %s221 = sadd.s32 %s220, 1
    %s222 = scalar_select %p219, %s220, %s221
    %p225 = pneg %p219
    %p226 = scmp.eq.s32.totalorder %s17, 7
    %p227 = por %p225, %p226
    %p228 = scmp.ne.s32.totalorder %s220, %s223
    %p229 = scmp.eq.s32.totalorder %s17, 0
    %p230 = por %p228, %p229
    %p231 = scmp.ne.s32.totalorder %s220, %s223
    %p232 = scmp.eq.s32.totalorder %s22, 7
    %p233 = por %p231, %p232
    %p234 = scmp.ne.s32.totalorder %s223, %s224
    %p235 = scmp.eq.s32.totalorder %s22, 0
    %p236 = por %p234, %p235
    %p237 = scmp.ne.s32.totalorder %s223, %s224
    %p238 = scmp.eq.s32.totalorder %s23, 7
    %p239 = por %p237, %p238
    %p241 = scmp.ne.s32.totalorder %s224, %s240
    %p242 = scmp.eq.s32.totalorder %s23, 0
    %p243 = por %p241, %p242
    %s244 = ssub.s32 %s17, %s24
    %p245 = scmp.eq.s32.totalorder %s244, 0
    %s247 = sadd.s32 %s246, 1
    %s248 = scalar_select %p245, %s246, %s247
    %p251 = pneg %p245
    %p252 = scmp.eq.s32.totalorder %s17, 7
    %p253 = por %p251, %p252
    %p254 = scmp.ne.s32.totalorder %s246, %s249
    %p255 = scmp.eq.s32.totalorder %s17, 0
    %p256 = por %p254, %p255
    %p257 = scmp.ne.s32.totalorder %s246, %s249
    %p258 = scmp.eq.s32.totalorder %s22, 7
    %p259 = por %p257, %p258
    %p260 = scmp.ne.s32.totalorder %s249, %s250
    %p261 = scmp.eq.s32.totalorder %s22, 0
    %p262 = por %p260, %p261
    %p263 = scmp.ne.s32.totalorder %s249, %s250
    %p264 = scmp.eq.s32.totalorder %s23, 7
    %p265 = por %p263, %p264
    %p267 = scmp.ne.s32.totalorder %s250, %s266
    %p268 = scmp.eq.s32.totalorder %s23, 0
    %p269 = por %p267, %p268
    %s271 = sadd.s32 %s270, 1
    %p274 = scmp.eq.s32.totalorder %s17, 7
    %p275 = scmp.ne.s32.totalorder %s270, %s272
    %p276 = scmp.eq.s32.totalorder %s17, 0
    %p277 = por %p275, %p276
    %p278 = scmp.ne.s32.totalorder %s270, %s272
    %p279 = scmp.eq.s32.totalorder %s22, 7
    %p280 = por %p278, %p279
    %p281 = scmp.ne.s32.totalorder %s272, %s273
    %p282 = scmp.eq.s32.totalorder %s22, 0
    %p283 = por %p281, %p282
    %p284 = scmp.ne.s32.totalorder %s272, %s273
    %p285 = scmp.eq.s32.totalorder %s23, 7
    %p286 = por %p284, %p285
    %p288 = scmp.ne.s32.totalorder %s273, %s287
    %p289 = scmp.eq.s32.totalorder %s23, 0
    %p290 = por %p288, %p289
    %s292 = sadd.s32 %s291, 1
    %p295 = scmp.eq.s32.totalorder %s17, 7
    %p296 = scmp.ne.s32.totalorder %s291, %s293
    %p297 = scmp.eq.s32.totalorder %s17, 0
    %p298 = por %p296, %p297
    %p299 = scmp.ne.s32.totalorder %s291, %s293
    %p300 = scmp.eq.s32.totalorder %s22, 7
    %p301 = por %p299, %p300
    %p302 = scmp.ne.s32.totalorder %s293, %s294
    %p303 = scmp.eq.s32.totalorder %s22, 0
    %p304 = por %p302, %p303
    %p305 = scmp.ne.s32.totalorder %s293, %s294
    %p306 = scmp.eq.s32.totalorder %s23, 7
    %p307 = por %p305, %p306
    %p309 = scmp.ne.s32.totalorder %s294, %s308
    %p310 = scmp.eq.s32.totalorder %s23, 0
    %p311 = por %p309, %p310
    %p312 = scmp.le.s32.totalorder 1, %s17
    %p313 = scmp.lt.s32.totalorder %s17, 9
    %p314 = pnand %p312, %p313
    %p315 = pneg %p314
    // Predicated region
    $region9: #{gru_att_forward.2} parent=5 // pred_check
      _
    $region10: #{gru_att_forward.2} parent=5 // pred_check_branch
      %317 = sbr.rel (%p314) target = $region12
    $region11: #{gru_att_forward.2} parent=5 // pred_region
      %s318 = ssub.s32 %s17, 1
      // Predicated region
      $region13: #{gru_att_forward.2} parent=11 // pred_check
        %p319 = pneg %p38
      $region14: #{gru_att_forward.2} parent=11 // pred_check_branch
        %321 = sbr.rel (%p319) target = $region16
      $region15: #{gru_att_forward.2} parent=11 // pred_region
        _
      $region16: #{gru_att_forward.2} parent=11 // pred_fallthru
        _
      // Predicated region
      $region17: #{gru_att_forward.2} parent=11 // pred_check
        %p322 = pneg %p59
      $region18: #{gru_att_forward.2} parent=11 // pred_check_branch
        %324 = sbr.rel (%p322) target = $region20
      $region19: #{gru_att_forward.2} parent=11 // pred_region
        _
      $region20: #{gru_att_forward.2} parent=11 // pred_fallthru
        _
      // Predicated region
      $region21: #{gru_att_forward.2} parent=11 // pred_check
        %p325 = pneg %p80
      $region22: #{gru_att_forward.2} parent=11 // pred_check_branch
        %327 = sbr.rel (%p325) target = $region24
      $region23: #{gru_att_forward.2} parent=11 // pred_region
        _
      $region24: #{gru_att_forward.2} parent=11 // pred_fallthru
        _
      // Predicated region
      $region25: #{gru_att_forward.2} parent=11 // pred_check
        %p328 = pneg %p283
      $region26: #{gru_att_forward.2} parent=11 // pred_check_branch
        %330 = sbr.rel (%p328) target = $region28
      $region27: #{gru_att_forward.2} parent=11 // pred_region
        _
      $region28: #{gru_att_forward.2} parent=11 // pred_fallthru
        _
    $region12: #{gru_att_forward.2} parent=5 // pred_fallthru
      _
    %p331 = scmp.lt.s32.totalorder %s17, 8
    // Predicated region
    $region29: #{gru_att_forward.2} parent=5 // pred_check
      %p332 = pneg %p331
    $region30: #{gru_att_forward.2} parent=5 // pred_check_branch
      %334 = sbr.rel (%p332) target = $region32
    $region31: #{gru_att_forward.2} parent=5 // pred_region
      // Predicated region
      $region33: #{gru_att_forward.2} parent=31 // pred_check
        %p335 = pneg %p100
      $region34: #{gru_att_forward.2} parent=31 // pred_check_branch
        %337 = sbr.rel (%p335) target = $region36
      $region35: #{gru_att_forward.2} parent=31 // pred_region
        %p338 = scmp.lt.s32.totalorder %s17, 7
        %s339 = scalar_select %p338, %s17, 7
        %s340 = smul.addr %s339, 268
        %s341 = smul.addr %s340, 4
        %s342 = scalar_lea.vmem %s3, %s341
      $region36: #{gru_att_forward.2} parent=31 // pred_fallthru
        _
      // Predicated region
      $region37: #{gru_att_forward.2} parent=31 // pred_check
        %p343 = pneg %p126
      $region38: #{gru_att_forward.2} parent=31 // pred_check_branch
        %345 = sbr.rel (%p343) target = $region40
      $region39: #{gru_att_forward.2} parent=31 // pred_region
        %p346 = scmp.lt.s32.totalorder %s17, 7
        %s347 = scalar_select %p346, %s17, 7
        %s348 = smul.addr %s347, 38
        %s349 = smul.addr %s348, 4
        %s350 = scalar_lea.vmem %s4, %s349
      $region40: #{gru_att_forward.2} parent=31 // pred_fallthru
        _
      // Predicated region
      $region41: #{gru_att_forward.2} parent=31 // pred_check
        %p351 = pneg %p152
      $region42: #{gru_att_forward.2} parent=31 // pred_check_branch
        %353 = sbr.rel (%p351) target = $region44
      $region43: #{gru_att_forward.2} parent=31 // pred_region
        %p354 = scmp.lt.s32.totalorder %s17, 7
        %s355 = scalar_select %p354, %s17, 7
        %s356 = smul.addr %s355, 34
        %s357 = smul.addr %s356, 4
        %s358 = scalar_lea.vmem %s5, %s357
      $region44: #{gru_att_forward.2} parent=31 // pred_fallthru
        _
      // Predicated region
      $region45: #{gru_att_forward.2} parent=31 // pred_check
        %p359 = pneg %p178
      $region46: #{gru_att_forward.2} parent=31 // pred_check_branch
        %361 = sbr.rel (%p359) target = $region48
      $region47: #{gru_att_forward.2} parent=31 // pred_region
        %p362 = scmp.lt.s32.totalorder %s17, 7
        %s363 = scalar_select %p362, %s17, 7
        %s364 = smul.addr %s363, 2
        %s365 = scalar_lea.vmem %s6, %s364
      $region48: #{gru_att_forward.2} parent=31 // pred_fallthru
        _
      // Predicated region
      $region49: #{gru_att_forward.2} parent=31 // pred_check
        %p366 = pneg %p204
      $region50: #{gru_att_forward.2} parent=31 // pred_check_branch
        %368 = sbr.rel (%p366) target = $region52
      $region51: #{gru_att_forward.2} parent=31 // pred_region
        %p369 = scmp.lt.s32.totalorder %s17, 7
        %s370 = scalar_select %p369, %s17, 7
        %s371 = smul.addr %s370, 2
        %s372 = scalar_lea.vmem %s7, %s371
      $region52: #{gru_att_forward.2} parent=31 // pred_fallthru
        _
      // Predicated region
      $region53: #{gru_att_forward.2} parent=31 // pred_check
        %p373 = pneg %p230
      $region54: #{gru_att_forward.2} parent=31 // pred_check_branch
        %375 = sbr.rel (%p373) target = $region56
      $region55: #{gru_att_forward.2} parent=31 // pred_region
        %p376 = scmp.lt.s32.totalorder %s17, 7
        %s377 = scalar_select %p376, %s17, 7
        %s378 = smul.addr %s377, 2
        %s379 = scalar_lea.vmem %s8, %s378
      $region56: #{gru_att_forward.2} parent=31 // pred_fallthru
        _
      // Predicated region
      $region57: #{gru_att_forward.2} parent=31 // pred_check
        %p380 = pneg %p256
      $region58: #{gru_att_forward.2} parent=31 // pred_check_branch
        %382 = sbr.rel (%p380) target = $region60
      $region59: #{gru_att_forward.2} parent=31 // pred_region
        %p383 = scmp.lt.s32.totalorder %s17, 7
        %s384 = scalar_select %p383, %s17, 7
        %s385 = smul.addr %s384, 153
        %s386 = smul.addr %s385, 4
        %s387 = scalar_lea.vmem %s9, %s386
      $region60: #{gru_att_forward.2} parent=31 // pred_fallthru
        _
    $region32: #{gru_att_forward.2} parent=5 // pred_fallthru
      _
    %p388 = scmp.le.s32.totalorder 1, %s17
    %p389 = scmp.lt.s32.totalorder %s17, 9
    %p390 = pnand %p388, %p389
    %p391 = pneg %p390
    // Predicated region
    $region61: #{gru_att_forward.2} parent=5 // pred_check
      _
    $region62: #{gru_att_forward.2} parent=5 // pred_check_branch
      %393 = sbr.rel (%p390) target = $region64
    $region63: #{gru_att_forward.2} parent=5 // pred_region
      %s394 = ssub.s32 %s17, 1
      %p395 = pneg %p38
      %p396 = pneg %p35
      %p397 = pneg %p59
      %p398 = pneg %p56
      %p399 = pneg %p80
      %p400 = pneg %p77
      %p401 = scmp.lt.s32.totalorder %s22, 7
      %s402 = scalar_select %p401, %s22, 7
      %s403 = smul.addr %s402, 268
      %s404 = smul.addr %s403, 4
      %s405 = scalar_lea.vmem %s3, %s404
      %p406 = pneg %p106
      %p407 = pneg %p103
      %p408 = scmp.lt.s32.totalorder %s22, 7
      %s409 = scalar_select %p408, %s22, 7
      %s410 = smul.addr %s409, 38
      %s411 = smul.addr %s410, 4
      %s412 = scalar_lea.vmem %s4, %s411
      %p413 = pneg %p132
      %p414 = pneg %p129
      %p415 = scmp.lt.s32.totalorder %s22, 7
      %s416 = scalar_select %p415, %s22, 7
      %s417 = smul.addr %s416, 34
      %s418 = smul.addr %s417, 4
      %s419 = scalar_lea.vmem %s5, %s418
      %p420 = pneg %p158
      %p421 = pneg %p155
      %p422 = scmp.lt.s32.totalorder %s22, 7
      %s423 = scalar_select %p422, %s22, 7
      %s424 = smul.addr %s423, 2
      %s425 = scalar_lea.vmem %s6, %s424
      %p426 = pneg %p184
      %p427 = pneg %p181
      %p428 = scmp.lt.s32.totalorder %s22, 7
      %s429 = scalar_select %p428, %s22, 7
      %s430 = smul.addr %s429, 2
      %s431 = scalar_lea.vmem %s7, %s430
      %p432 = pneg %p210
      %p433 = pneg %p207
      %p434 = scmp.lt.s32.totalorder %s22, 7
      %s435 = scalar_select %p434, %s22, 7
      %s436 = smul.addr %s435, 2
      %s437 = scalar_lea.vmem %s8, %s436
      %p438 = pneg %p236
      %p439 = pneg %p233
      %p440 = scmp.lt.s32.totalorder %s22, 7
      %s441 = scalar_select %p440, %s22, 7
      %s442 = smul.addr %s441, 153
      %s443 = smul.addr %s442, 4
      %s444 = scalar_lea.vmem %s9, %s443
      %p445 = pneg %p262
      %p446 = pneg %p259
      %p447 = pneg %p283
      %p448 = pneg %p280
      %p449 = pneg %p304
      %p450 = pneg %p301
      %p451 = scmp.lt.s32.totalorder %s22, 7
      %s452 = scalar_select %p451, %s22, 7
      %s453 = smul.addr %s452, 268
      %s454 = smul.addr %s453, 4
      %s455 = scalar_lea.vmem %s3, %s454
      %p456 = scmp.lt.s32.totalorder %s22, 7
      %s457 = scalar_select %p456, %s22, 7
      %s458 = smul.addr %s457, 38
      %s459 = smul.addr %s458, 4
      %s460 = scalar_lea.vmem %s4, %s459
      %p461 = scmp.lt.s32.totalorder %s22, 7
      %s462 = scalar_select %p461, %s22, 7
      %s463 = smul.addr %s462, 34
      %s464 = smul.addr %s463, 4
      %s465 = scalar_lea.vmem %s5, %s464
      %p466 = scmp.lt.s32.totalorder %s22, 7
      %s467 = scalar_select %p466, %s22, 7
      %s468 = smul.addr %s467, 2
      %s469 = scalar_lea.vmem %s6, %s468
      %p470 = scmp.lt.s32.totalorder %s22, 7
      %s471 = scalar_select %p470, %s22, 7
      %s472 = smul.addr %s471, 2
      %s473 = scalar_lea.vmem %s7, %s472
      %p474 = scmp.lt.s32.totalorder %s22, 7
      %s475 = scalar_select %p474, %s22, 7
      %s476 = smul.addr %s475, 2
      %s477 = scalar_lea.vmem %s8, %s476
      %p478 = scmp.lt.s32.totalorder %s22, 7
      %s479 = scalar_select %p478, %s22, 7
      %s480 = smul.addr %s479, 153
      %s481 = smul.addr %s480, 4
      %s482 = scalar_lea.vmem %s9, %s481
      %p484 = scmp.eq.s32.totalorder %s22, 0
      // Predicated region
      $region65: #{gru_att_forward.2} parent=63 // pred_check
        %p485 = pneg %p484
      $region66: #{gru_att_forward.2} parent=63 // pred_check_branch
        %487 = sbr.rel (%p485) target = $region68
      $region67: #{gru_att_forward.2} parent=63 // pred_region
        %488 = vst [vmem:[%s11] sm:$0xff] 0.0
        %489 = vst [vmem:[%s11 + $0x8] sm:$0xff] 0.0
        %490 = vst [vmem:[%s11 + $0x10] sm:$0xff] 0.0
        %491 = vst [vmem:[%s11 + $0x18] sm:$0xff] 0.0
        %492 = vst [vmem:[%s11 + $0x20] sm:$0xff] 0.0
        %493 = vst [vmem:[%s11 + $0x28] sm:$0xff] 0.0
        %494 = vst [vmem:[%s11 + $0x30] sm:$0xff] 0.0
        %495 = vst [vmem:[%s11 + $0x38] sm:$0xff] 0.0
        %vm496 = vcmask 392192
        %497 = vst.msk [vmem:[%s11 + $0x40] sm:$0xff] %vm496, 0.0
        %498 = vst [vmem:[%s11 + $0x48] sm:$0xff] 0.0
        %499 = vst [vmem:[%s11 + $0x50] sm:$0xff] 0.0
        %500 = vst [vmem:[%s11 + $0x58] sm:$0xff] 0.0
        %501 = vst [vmem:[%s11 + $0x60] sm:$0xff] 0.0
        %502 = vst [vmem:[%s11 + $0x68] sm:$0xff] 0.0
        %503 = vst [vmem:[%s11 + $0x70] sm:$0xff] 0.0
        %504 = vst [vmem:[%s11 + $0x78] sm:$0xff] 0.0
        %505 = vst [vmem:[%s11 + $0x80] sm:$0xff] 0.0
        %506 = vst.msk [vmem:[%s11 + $0x88] sm:$0xff] %vm496, 0.0
      $region68: #{gru_att_forward.2} parent=63 // pred_fallthru
        _
      %v507 = vld [vmem:[%s455] sm:$0xff]
      %v508 = vld [vmem:[%s455 + $0x8] sm:$0xff]
      %v509 = vld [vmem:[%s455 + $0x10] sm:$0xff]
      %v510 = vld [vmem:[%s455 + $0x18] sm:$0xff]
      %v511 = vld [vmem:[%s455 + $0x20] sm:$0xff]
      %v512 = vld [vmem:[%s455 + $0x28] sm:$0xff]
      %v513 = vld [vmem:[%s455 + $0x30] sm:$0xff]
      %v514 = vld [vmem:[%s455 + $0x38] sm:$0xff]
      %v515 = vld [vmem:[%s455 + $0x40] sm:$0xff]
      %v516 = vld [vmem:[%s455 + $0x48] sm:$0xff]
      %v517 = vld [vmem:[%s455 + $0x50] sm:$0xff]
      %v518 = vld [vmem:[%s455 + $0x58] sm:$0xff]
      %v519 = vld [vmem:[%s455 + $0x60] sm:$0xff]
      %v520 = vld [vmem:[%s455 + $0x68] sm:$0xff]
      %v521 = vld [vmem:[%s455 + $0x70] sm:$0xff]
      %v522 = vld [vmem:[%s455 + $0x78] sm:$0xff]
      %v523 = vld [vmem:[%s455 + $0x80] sm:$0xff]
      %v524 = vld [vmem:[%s455 + $0x88] sm:$0xff]
      %v525 = vld [vmem:[%s455 + $0x90] sm:$0xff]
      %v526 = vld [vmem:[%s455 + $0x98] sm:$0xff]
      %v527 = vld [vmem:[%s455 + $0xa0] sm:$0xff]
      %v528 = vld [vmem:[%s455 + $0xa8] sm:$0xff]
      %v529 = vld [vmem:[%s455 + $0xb0] sm:$0xff]
      %v530 = vld [vmem:[%s455 + $0xb8] sm:$0xff]
      %v531 = vld [vmem:[%s455 + $0xc0] sm:$0xff]
      %v532 = vld [vmem:[%s455 + $0xc8] sm:$0xff]
      %v533 = vld [vmem:[%s455 + $0xd0] sm:$0xff]
      %v534 = vld [vmem:[%s455 + $0xd8] sm:$0xff]
      %v535 = vld [vmem:[%s455 + $0xe0] sm:$0xff]
      %v536 = vld [vmem:[%s455 + $0xe8] sm:$0xff]
      %v537 = vld [vmem:[%s455 + $0xf0] sm:$0xff]
      %v538 = vld [vmem:[%s455 + $0xf8] sm:$0xff]
      %v539 = vld [vmem:[%s455 + $0x100] sm:$0xff]
      %v540 = vld [vmem:[%s455 + $0x108] sm:$0xff]
      %v541 = vld [vmem:[%s455 + $0x110] sm:$0xff]
      %v542 = vld [vmem:[%s455 + $0x118] sm:$0xff]
      %v543 = vld [vmem:[%s455 + $0x120] sm:$0xff]
      %v544 = vld [vmem:[%s455 + $0x128] sm:$0xff]
      %v545 = vld [vmem:[%s455 + $0x130] sm:$0xff]
      %v546 = vld [vmem:[%s455 + $0x138] sm:$0xff]
      %v547 = vld [vmem:[%s455 + $0x140] sm:$0xff]
      %v548 = vld [vmem:[%s455 + $0x148] sm:$0xff]
      %v549 = vld [vmem:[%s455 + $0x150] sm:$0xff]
      %v550 = vld [vmem:[%s455 + $0x158] sm:$0xff]
      %v551 = vld [vmem:[%s455 + $0x160] sm:$0xff]
      %v552 = vld [vmem:[%s455 + $0x168] sm:$0xff]
      %v553 = vld [vmem:[%s455 + $0x170] sm:$0xff]
      %v554 = vld [vmem:[%s455 + $0x178] sm:$0xff]
      %v555 = vld [vmem:[%s455 + $0x180] sm:$0xff]
      %v556 = vld [vmem:[%s455 + $0x188] sm:$0xff]
      %v557 = vld [vmem:[%s455 + $0x190] sm:$0xff]
      %v558 = vld [vmem:[%s455 + $0x198] sm:$0xff]
      %v559 = vld [vmem:[%s455 + $0x1a0] sm:$0xff]
      %v560 = vld [vmem:[%s455 + $0x1a8] sm:$0xff]
      %v561 = vld [vmem:[%s455 + $0x1b0] sm:$0xff]
      %v562 = vld [vmem:[%s455 + $0x1b8] sm:$0xff]
      %v563 = vld [vmem:[%s455 + $0x1c0] sm:$0xff]
      %v564 = vld [vmem:[%s455 + $0x1c8] sm:$0xff]
      %v565 = vld [vmem:[%s455 + $0x1d0] sm:$0xff]
      %v566 = vld [vmem:[%s455 + $0x1d8] sm:$0xff]
      %v567 = vld [vmem:[%s455 + $0x1e0] sm:$0xff]
      %v568 = vld [vmem:[%s455 + $0x1e8] sm:$0xff]
      %v569 = vld [vmem:[%s455 + $0x1f0] sm:$0xff]
      %v570 = vld [vmem:[%s455 + $0x1f8] sm:$0xff]
      %v571 = vld [vmem:[%s455 + $0x200] sm:$0xff]
      %v572 = vld [vmem:[%s455 + $0x208] sm:$0xff]
      %v573 = vld [vmem:[%s455 + $0x210] sm:$0xff]
      %v574 = vld [vmem:[%s455 + $0x218] sm:$0xff]
      %v575 = vld [vmem:[%s455 + $0x220] sm:$0xff]
      %v576 = vld [vmem:[%s455 + $0x228] sm:$0xff]
      %v577 = vld [vmem:[%s455 + $0x230] sm:$0xff]
      %v578 = vld [vmem:[%s455 + $0x238] sm:$0xff]
      %v579 = vld [vmem:[%s455 + $0x240] sm:$0xff]
      %v580 = vld [vmem:[%s455 + $0x248] sm:$0xff]
      %v581 = vld [vmem:[%s455 + $0x250] sm:$0xff]
      %v582 = vld [vmem:[%s455 + $0x258] sm:$0xff]
      %v583 = vld [vmem:[%s455 + $0x260] sm:$0xff]
      %v584 = vld [vmem:[%s455 + $0x268] sm:$0xff]
      %v585 = vld [vmem:[%s455 + $0x270] sm:$0xff]
      %v586 = vld [vmem:[%s455 + $0x278] sm:$0xff]
      %v587 = vld [vmem:[%s455 + $0x280] sm:$0xff]
      %v588 = vld [vmem:[%s455 + $0x288] sm:$0xff]
      %v589 = vld [vmem:[%s455 + $0x290] sm:$0xff]
      %v590 = vld [vmem:[%s455 + $0x298] sm:$0xff]
      %v591 = vld [vmem:[%s455 + $0x2a0] sm:$0xff]
      %v592 = vld [vmem:[%s455 + $0x2a8] sm:$0xff]
      %v593 = vld [vmem:[%s455 + $0x2b0] sm:$0xff]
      %v594 = vld [vmem:[%s455 + $0x2b8] sm:$0xff]
      %v595 = vld [vmem:[%s455 + $0x2c0] sm:$0xff]
      %v596 = vld [vmem:[%s455 + $0x2c8] sm:$0xff]
      %v597 = vld [vmem:[%s455 + $0x2d0] sm:$0xff]
      %v598 = vld [vmem:[%s455 + $0x2d8] sm:$0xff]
      %v599 = vld [vmem:[%s455 + $0x2e0] sm:$0xff]
      %v600 = vld [vmem:[%s455 + $0x2e8] sm:$0xff]
      %v601 = vld [vmem:[%s455 + $0x2f0] sm:$0xff]
      %v602 = vld [vmem:[%s455 + $0x2f8] sm:$0xff]
      %v603 = vld [vmem:[%s455 + $0x300] sm:$0xff]
      %v604 = vld [vmem:[%s455 + $0x308] sm:$0xff]
      %v605 = vld [vmem:[%s455 + $0x310] sm:$0xff]
      %v606 = vld [vmem:[%s455 + $0x318] sm:$0xff]
      %v607 = vld [vmem:[%s455 + $0x320] sm:$0xff]
      %v608 = vld [vmem:[%s455 + $0x328] sm:$0xff]
      %v609 = vld [vmem:[%s455 + $0x330] sm:$0xff]
      %v610 = vld [vmem:[%s455 + $0x338] sm:$0xff]
      %v611 = vld [vmem:[%s455 + $0x340] sm:$0xff]
      %v612 = vld [vmem:[%s455 + $0x348] sm:$0xff]
      %v613 = vld [vmem:[%s455 + $0x350] sm:$0xff]
      %v614 = vld [vmem:[%s455 + $0x358] sm:$0xff]
      %v615 = vld [vmem:[%s455 + $0x360] sm:$0xff]
      %v616 = vld [vmem:[%s455 + $0x368] sm:$0xff]
      %v617 = vld [vmem:[%s455 + $0x370] sm:$0xff]
      %v618 = vld [vmem:[%s455 + $0x378] sm:$0xff]
      %v619 = vld [vmem:[%s455 + $0x380] sm:$0xff]
      %v620 = vld [vmem:[%s455 + $0x388] sm:$0xff]
      %v621 = vld [vmem:[%s455 + $0x390] sm:$0xff]
      %v622 = vld [vmem:[%s455 + $0x398] sm:$0xff]
      %v623 = vld [vmem:[%s455 + $0x3a0] sm:$0xff]
      %v624 = vld [vmem:[%s455 + $0x3a8] sm:$0xff]
      %v625 = vld [vmem:[%s455 + $0x3b0] sm:$0xff]
      %v626 = vld [vmem:[%s455 + $0x3b8] sm:$0xff]
      %v627 = vld [vmem:[%s455 + $0x3c0] sm:$0xff]
      %v628 = vld [vmem:[%s455 + $0x3c8] sm:$0xff]
      %v629 = vld [vmem:[%s455 + $0x3d0] sm:$0xff]
      %v630 = vld [vmem:[%s455 + $0x3d8] sm:$0xff]
      %v631 = vld [vmem:[%s455 + $0x3e0] sm:$0xff]
      %v632 = vld [vmem:[%s455 + $0x3e8] sm:$0xff]
      %v633 = vld [vmem:[%s455 + $0x3f0] sm:$0xff]
      %v634 = vld [vmem:[%s455 + $0x3f8] sm:$0xff]
      %v635 = vld [vmem:[%s455 + $0x400] sm:$0xff]
      %v636 = vld [vmem:[%s455 + $0x408] sm:$0xff]
      %v637 = vld [vmem:[%s455 + $0x410] sm:$0xff]
      %v638 = vld [vmem:[%s455 + $0x418] sm:$0xff]
      %v639 = vld [vmem:[%s455 + $0x420] sm:$0xff]
      %v640 = vld [vmem:[%s455 + $0x428] sm:$0xff]
      %v641 = vld [vmem:[%s460] sm:$0xff]
      %v642 = vld [vmem:[%s460 + $0x8] sm:$0xff]
      %v643 = vld [vmem:[%s460 + $0x10] sm:$0xff]
      %v644 = vld [vmem:[%s460 + $0x18] sm:$0xff]
      %v645 = vld [vmem:[%s460 + $0x20] sm:$0xff]
      %v646 = vld [vmem:[%s460 + $0x28] sm:$0xff]
      %v647 = vld [vmem:[%s460 + $0x30] sm:$0xff]
      %v648 = vld [vmem:[%s460 + $0x38] sm:$0xff]
      %v649 = vld [vmem:[%s460 + $0x40] sm:$0xff]
      %v650 = vld [vmem:[%s460 + $0x48] sm:$0xff]
      %v651 = vld [vmem:[%s460 + $0x50] sm:$0xff]
      %v652 = vld [vmem:[%s460 + $0x58] sm:$0xff]
      %v653 = vld [vmem:[%s460 + $0x60] sm:$0xff]
      %v654 = vld [vmem:[%s460 + $0x68] sm:$0xff]
      %v655 = vld [vmem:[%s460 + $0x70] sm:$0xff]
      %v656 = vld [vmem:[%s460 + $0x78] sm:$0xff]
      %v657 = vld [vmem:[%s460 + $0x80] sm:$0xff]
      %v658 = vld [vmem:[%s460 + $0x88] sm:$0xff]
      %v659 = vld [vmem:[%s460 + $0x90] sm:$0x77]
      %v660 = vld [vmem:[%s465] sm:$0xff]
      %v661 = vld [vmem:[%s465 + $0x8] sm:$0xff]
      %v662 = vld [vmem:[%s465 + $0x10] sm:$0xff]
      %v663 = vld [vmem:[%s465 + $0x18] sm:$0xff]
      %v664 = vld [vmem:[%s465 + $0x20] sm:$0xff]
      %v665 = vld [vmem:[%s465 + $0x28] sm:$0xff]
      %v666 = vld [vmem:[%s465 + $0x30] sm:$0xff]
      %v667 = vld [vmem:[%s465 + $0x38] sm:$0xff]
      %v668 = vld [vmem:[%s465 + $0x40] sm:$0xff]
      %v669 = vld [vmem:[%s465 + $0x48] sm:$0xff]
      %v670 = vld [vmem:[%s465 + $0x50] sm:$0xff]
      %v671 = vld [vmem:[%s465 + $0x58] sm:$0xff]
      %v672 = vld [vmem:[%s465 + $0x60] sm:$0xff]
      %v673 = vld [vmem:[%s465 + $0x68] sm:$0xff]
      %v674 = vld [vmem:[%s465 + $0x70] sm:$0xff]
      %v675 = vld [vmem:[%s465 + $0x78] sm:$0xff]
      %v676 = vld [vmem:[%s465 + $0x80] sm:$0x77]
      %v677 = vld [vmem:[%s469] sm:$0x3]
      %v678 = vld [vmem:[%s473] sm:$0x3]
      %v679 = vld [vmem:[%s477] sm:$0x3]
      %v680 = vld [vmem:[%s482] sm:$0xff]
      %v681 = vld [vmem:[%s482 + $0x8] sm:$0xff]
      %v682 = vld [vmem:[%s482 + $0x10] sm:$0xff]
      %v683 = vld [vmem:[%s482 + $0x18] sm:$0xff]
      %v684 = vld [vmem:[%s482 + $0x20] sm:$0xf]
      %v685 = vld [vmem:[%s482 + $0x24] sm:$0xff]
      %v686 = vld [vmem:[%s482 + $0x2c] sm:$0xff]
      %v687 = vld [vmem:[%s482 + $0x34] sm:$0xff]
      %v688 = vld [vmem:[%s482 + $0x3c] sm:$0xff]
      %v689 = vld [vmem:[%s482 + $0x44] sm:$0xf]
      %v690 = vld [vmem:[%s482 + $0x48] sm:$0xff]
      %v691 = vld [vmem:[%s482 + $0x50] sm:$0xff]
      %v692 = vld [vmem:[%s482 + $0x58] sm:$0xff]
      %v693 = vld [vmem:[%s482 + $0x60] sm:$0xff]
      %v694 = vld [vmem:[%s482 + $0x68] sm:$0xf]
      %v695 = vld [vmem:[%s482 + $0x6c] sm:$0xff]
      %v696 = vld [vmem:[%s482 + $0x74] sm:$0xff]
      %v697 = vld [vmem:[%s482 + $0x7c] sm:$0xff]
      %v698 = vld [vmem:[%s482 + $0x84] sm:$0xff]
      %v699 = vld [vmem:[%s482 + $0x8c] sm:$0xf]
      %v700 = vld [vmem:[%s482 + $0x90] sm:$0xff]
      %v701 = vld [vmem:[%s482 + $0x98] sm:$0xff]
      %v702 = vld [vmem:[%s482 + $0xa0] sm:$0xff]
      %v703 = vld [vmem:[%s482 + $0xa8] sm:$0xff]
      %v704 = vld [vmem:[%s482 + $0xb0] sm:$0xf]
      %v705 = vld [vmem:[%s482 + $0xb4] sm:$0xff]
      %v706 = vld [vmem:[%s482 + $0xbc] sm:$0xff]
      %v707 = vld [vmem:[%s482 + $0xc4] sm:$0xff]
      %v708 = vld [vmem:[%s482 + $0xcc] sm:$0xff]
      %v709 = vld [vmem:[%s482 + $0xd4] sm:$0xf]
      %v710 = vld [vmem:[%s482 + $0xd8] sm:$0xff]
      %v711 = vld [vmem:[%s482 + $0xe0] sm:$0xff]
      %v712 = vld [vmem:[%s482 + $0xe8] sm:$0xff]
      %v713 = vld [vmem:[%s482 + $0xf0] sm:$0xff]
      %v714 = vld [vmem:[%s482 + $0xf8] sm:$0xf]
      %v715 = vld [vmem:[%s482 + $0xfc] sm:$0xff]
      %v716 = vld [vmem:[%s482 + $0x104] sm:$0xff]
      %v717 = vld [vmem:[%s482 + $0x10c] sm:$0xff]
      %v718 = vld [vmem:[%s482 + $0x114] sm:$0xff]
      %v719 = vld [vmem:[%s482 + $0x11c] sm:$0xf]
      %v720 = vld [vmem:[%s482 + $0x120] sm:$0xff]
      %v721 = vld [vmem:[%s482 + $0x128] sm:$0xff]
      %v722 = vld [vmem:[%s482 + $0x130] sm:$0xff]
      %v723 = vld [vmem:[%s482 + $0x138] sm:$0xff]
      %v724 = vld [vmem:[%s482 + $0x140] sm:$0xf]
      %v725 = vld [vmem:[%s482 + $0x144] sm:$0xff]
      %v726 = vld [vmem:[%s482 + $0x14c] sm:$0xff]
      %v727 = vld [vmem:[%s482 + $0x154] sm:$0xff]
      %v728 = vld [vmem:[%s482 + $0x15c] sm:$0xff]
      %v729 = vld [vmem:[%s482 + $0x164] sm:$0xf]
      %v730 = vld [vmem:[%s482 + $0x168] sm:$0xff]
      %v731 = vld [vmem:[%s482 + $0x170] sm:$0xff]
      %v732 = vld [vmem:[%s482 + $0x178] sm:$0xff]
      %v733 = vld [vmem:[%s482 + $0x180] sm:$0xff]
      %v734 = vld [vmem:[%s482 + $0x188] sm:$0xf]
      %v735 = vld [vmem:[%s482 + $0x18c] sm:$0xff]
      %v736 = vld [vmem:[%s482 + $0x194] sm:$0xff]
      %v737 = vld [vmem:[%s482 + $0x19c] sm:$0xff]
      %v738 = vld [vmem:[%s482 + $0x1a4] sm:$0xff]
      %v739 = vld [vmem:[%s482 + $0x1ac] sm:$0xf]
      %v740 = vld [vmem:[%s482 + $0x1b0] sm:$0xff]
      %v741 = vld [vmem:[%s482 + $0x1b8] sm:$0xff]
      %v742 = vld [vmem:[%s482 + $0x1c0] sm:$0xff]
      %v743 = vld [vmem:[%s482 + $0x1c8] sm:$0xff]
      %v744 = vld [vmem:[%s482 + $0x1d0] sm:$0xf]
      %v745 = vld [vmem:[%s482 + $0x1d4] sm:$0xff]
      %v746 = vld [vmem:[%s482 + $0x1dc] sm:$0xff]
      %v747 = vld [vmem:[%s482 + $0x1e4] sm:$0xff]
      %v748 = vld [vmem:[%s482 + $0x1ec] sm:$0xff]
      %v749 = vld [vmem:[%s482 + $0x1f4] sm:$0xf]
      %v750 = vld [vmem:[%s482 + $0x1f8] sm:$0xff]
      %v751 = vld [vmem:[%s482 + $0x200] sm:$0xff]
      %v752 = vld [vmem:[%s482 + $0x208] sm:$0xff]
      %v753 = vld [vmem:[%s482 + $0x210] sm:$0xff]
      %v754 = vld [vmem:[%s482 + $0x218] sm:$0xf]
      %v755 = vld [vmem:[%s482 + $0x21c] sm:$0xff]
      %v756 = vld [vmem:[%s482 + $0x224] sm:$0xff]
      %v757 = vld [vmem:[%s482 + $0x22c] sm:$0xff]
      %v758 = vld [vmem:[%s482 + $0x234] sm:$0xff]
      %v759 = vld [vmem:[%s482 + $0x23c] sm:$0xf]
      %v760 = vld [vmem:[%s482 + $0x240] sm:$0x77]
      %v761 = vld [vmem:[%s482 + $0x248] sm:$0x77]
      %v762 = vld [vmem:[%s482 + $0x250] sm:$0x77]
      %v763 = vld [vmem:[%s482 + $0x258] sm:$0x77]
      %v764 = vld [vmem:[%s482 + $0x260] sm:$0x7]
      %v765 = vld [vmem:[%s0] sm:$0xff]
      %v766 = vld [vmem:[%s0 + $0x8] sm:$0xff]
      %v767 = vld [vmem:[%s0 + $0x10] sm:$0xff]
      %v768 = vld [vmem:[%s0 + $0x18] sm:$0xff]
      %v769 = vld [vmem:[%s0 + $0x20] sm:$0xff]
      %v770 = vld [vmem:[%s0 + $0x28] sm:$0xff]
      %v771 = vld [vmem:[%s0 + $0x30] sm:$0xff]
      %v772 = vld [vmem:[%s0 + $0x38] sm:$0xff]
      %v773 = vld [vmem:[%s0 + $0x40] sm:$0xff]
      %v774 = vpack.c.bf16 %v765, %v765
      %v775 = vpack.c.bf16 %v766, %v766
      %v776 = vpack.c.bf16 %v767, %v767
      %v777 = vpack.c.bf16 %v768, %v768
      %v778 = vpack.c.bf16 %v769, %v769
      %v779 = vpack.c.bf16 %v770, %v770
      %v780 = vpack.c.bf16 %v771, %v771
      %v781 = vpack.c.bf16 %v772, %v772
      %v782 = vpack.c.bf16 %v773, %v773
      %v784 = vperm.slane %v677, 0
      %v785 = vperm.slane %v677, 1
      %v922 = vunpack.c.l.b16 %v507
      %v923 = vunpack.c.h.b16 %v507
      %v924 = vunpack.c.l.b16 %v508
      %v925 = vunpack.c.h.b16 %v508
      %v926 = vunpack.c.l.b16 %v509
      %v927 = vunpack.c.h.b16 %v509
      %v928 = vunpack.c.l.b16 %v510
      %v929 = vunpack.c.h.b16 %v510
      %v930 = vunpack.c.l.b16 %v511
      %v931 = vunpack.c.h.b16 %v511
      %v932 = vunpack.c.l.b16 %v512
      %v933 = vunpack.c.h.b16 %v512
      %v934 = vunpack.c.l.b16 %v513
      %v935 = vunpack.c.h.b16 %v513
      %v936 = vunpack.c.l.b16 %v514
      %v937 = vunpack.c.h.b16 %v514
      %v938 = vunpack.c.l.b16 %v515
      %v939 = vunpack.c.h.b16 %v515
      %v940 = vunpack.c.l.b16 %v516
      %v941 = vunpack.c.h.b16 %v516
      %v942 = vunpack.c.l.b16 %v517
      %v943 = vunpack.c.h.b16 %v517
      %v944 = vunpack.c.l.b16 %v518
      %v945 = vunpack.c.h.b16 %v518
      %v946 = vunpack.c.l.b16 %v519
      %v947 = vunpack.c.h.b16 %v519
      %v948 = vunpack.c.l.b16 %v520
      %v949 = vunpack.c.h.b16 %v520
      %v950 = vunpack.c.l.b16 %v521
      %v951 = vunpack.c.h.b16 %v521
      %v952 = vunpack.c.l.b16 %v522
      %v953 = vunpack.c.h.b16 %v522
      %v954 = vunpack.c.l.b16 %v523
      %v955 = vunpack.c.h.b16 %v523
      %v956 = vunpack.c.l.b16 %v524
      %v957 = vunpack.c.h.b16 %v524
      %v958 = vunpack.c.l.b16 %v525
      %v959 = vunpack.c.h.b16 %v525
      %v960 = vunpack.c.l.b16 %v526
      %v961 = vunpack.c.h.b16 %v526
      %v962 = vunpack.c.l.b16 %v527
      %v963 = vunpack.c.h.b16 %v527
      %v964 = vunpack.c.l.b16 %v528
      %v965 = vunpack.c.h.b16 %v528
      %v966 = vunpack.c.l.b16 %v529
      %v967 = vunpack.c.h.b16 %v529
      %v968 = vunpack.c.l.b16 %v530
      %v969 = vunpack.c.h.b16 %v530
      %v970 = vunpack.c.l.b16 %v531
      %v971 = vunpack.c.h.b16 %v531
      %v972 = vunpack.c.l.b16 %v532
      %v973 = vunpack.c.h.b16 %v532
      %v974 = vunpack.c.l.b16 %v533
      %v975 = vunpack.c.h.b16 %v533
      %v976 = vunpack.c.l.b16 %v534
      %v977 = vunpack.c.h.b16 %v534
      %v978 = vunpack.c.l.b16 %v535
      %v979 = vunpack.c.h.b16 %v535
      %v980 = vunpack.c.l.b16 %v536
      %v981 = vunpack.c.h.b16 %v536
      %v982 = vunpack.c.l.b16 %v537
      %v983 = vunpack.c.h.b16 %v537
      %v984 = vunpack.c.l.b16 %v538
      %v985 = vunpack.c.h.b16 %v538
      %v986 = vunpack.c.l.b16 %v539
      %v987 = vunpack.c.h.b16 %v539
      %v988 = vunpack.c.l.b16 %v540
      %v989 = vunpack.c.h.b16 %v540
      %v990 = vunpack.c.l.b16 %v541
      %v991 = vunpack.c.h.b16 %v541
      %v992 = vunpack.c.l.b16 %v542
      %v993 = vunpack.c.h.b16 %v542
      %v994 = vunpack.c.l.b16 %v543
      %v995 = vunpack.c.h.b16 %v543
      %v996 = vunpack.c.l.b16 %v544
      %v997 = vunpack.c.h.b16 %v544
      %v998 = vunpack.c.l.b16 %v545
      %v999 = vunpack.c.h.b16 %v545
      %v1000 = vunpack.c.l.b16 %v546
      %v1001 = vunpack.c.h.b16 %v546
      %v1002 = vunpack.c.l.b16 %v547
      %v1003 = vunpack.c.h.b16 %v547
      %v1004 = vunpack.c.l.b16 %v548
      %v1005 = vunpack.c.h.b16 %v548
      %v1006 = vunpack.c.l.b16 %v549
      %v1007 = vunpack.c.h.b16 %v549
      %v1008 = vunpack.c.l.b16 %v550
      %v1009 = vunpack.c.h.b16 %v550
      %v1010 = vunpack.c.l.b16 %v551
      %v1011 = vunpack.c.h.b16 %v551
      %v1012 = vunpack.c.l.b16 %v552
      %v1013 = vunpack.c.h.b16 %v552
      %v1014 = vunpack.c.l.b16 %v553
      %v1015 = vunpack.c.h.b16 %v553
      %v1016 = vunpack.c.l.b16 %v554
      %v1017 = vunpack.c.h.b16 %v554
      %v1018 = vunpack.c.l.b16 %v555
      %v1019 = vunpack.c.h.b16 %v555
      %v1020 = vunpack.c.l.b16 %v556
      %v1021 = vunpack.c.h.b16 %v556
      %v1022 = vunpack.c.l.b16 %v557
      %v1023 = vunpack.c.h.b16 %v557
      %v1024 = vunpack.c.l.b16 %v558
      %v1025 = vunpack.c.h.b16 %v558
      %v1026 = vunpack.c.l.b16 %v559
      %v1027 = vunpack.c.h.b16 %v559
      %v1028 = vunpack.c.l.b16 %v560
      %v1029 = vunpack.c.h.b16 %v560
      %v1030 = vunpack.c.l.b16 %v561
      %v1031 = vunpack.c.h.b16 %v561
      %v1032 = vunpack.c.l.b16 %v562
      %v1033 = vunpack.c.h.b16 %v562
      %v1034 = vunpack.c.l.b16 %v563
      %v1035 = vunpack.c.h.b16 %v563
      %v1036 = vunpack.c.l.b16 %v564
      %v1037 = vunpack.c.h.b16 %v564
      %v1038 = vunpack.c.l.b16 %v565
      %v1039 = vunpack.c.h.b16 %v565
      %v1040 = vunpack.c.l.b16 %v566
      %v1041 = vunpack.c.h.b16 %v566
      %v1042 = vunpack.c.l.b16 %v567
      %v1043 = vunpack.c.h.b16 %v567
      %v1044 = vunpack.c.l.b16 %v568
      %v1045 = vunpack.c.h.b16 %v568
      %v1046 = vunpack.c.l.b16 %v569
      %v1047 = vunpack.c.h.b16 %v569
      %v1048 = vunpack.c.l.b16 %v570
      %v1049 = vunpack.c.h.b16 %v570
      %v1050 = vunpack.c.l.b16 %v571
      %v1051 = vunpack.c.h.b16 %v571
      %v1052 = vunpack.c.l.b16 %v572
      %v1053 = vunpack.c.h.b16 %v572
      %v1054 = vunpack.c.l.b16 %v573
      %v1055 = vunpack.c.h.b16 %v573
      %v1056 = vunpack.c.l.b16 %v574
      %v1057 = vunpack.c.h.b16 %v574
      %v1058 = vunpack.c.l.b16 %v575
      %v1059 = vunpack.c.h.b16 %v575
      %v1060 = vunpack.c.l.b16 %v576
      %v1061 = vunpack.c.h.b16 %v576
      %v1062 = vunpack.c.l.b16 %v577
      %v1063 = vunpack.c.h.b16 %v577
      %v1064 = vunpack.c.l.b16 %v578
      %v1065 = vunpack.c.h.b16 %v578
      %v1066 = vunpack.c.l.b16 %v579
      %v1067 = vunpack.c.h.b16 %v579
      %v1068 = vunpack.c.l.b16 %v580
      %v1069 = vunpack.c.h.b16 %v580
      %v1070 = vunpack.c.l.b16 %v581
      %v1071 = vunpack.c.h.b16 %v581
      %v1072 = vunpack.c.l.b16 %v582
      %v1073 = vunpack.c.h.b16 %v582
      %v1074 = vunpack.c.l.b16 %v583
      %v1075 = vunpack.c.h.b16 %v583
      %v1076 = vunpack.c.l.b16 %v584
      %v1077 = vunpack.c.h.b16 %v584
      %v1078 = vunpack.c.l.b16 %v585
      %v1079 = vunpack.c.h.b16 %v585
      %v1080 = vunpack.c.l.b16 %v586
      %v1081 = vunpack.c.h.b16 %v586
      %v1082 = vunpack.c.l.b16 %v587
      %v1083 = vunpack.c.h.b16 %v587
      %v1084 = vunpack.c.l.b16 %v588
      %v1085 = vunpack.c.h.b16 %v588
      %v1086 = vunpack.c.l.b16 %v589
      %v1087 = vunpack.c.h.b16 %v589
      %v1088 = vunpack.c.l.b16 %v590
      %v1089 = vunpack.c.h.b16 %v590
      %v1090 = vunpack.c.l.b16 %v591
      %v1091 = vunpack.c.h.b16 %v591
      %v1092 = vunpack.c.l.b16 %v592
      %v1093 = vunpack.c.h.b16 %v592
      %v1094 = vunpack.c.l.b16 %v593
      %v1095 = vunpack.c.h.b16 %v593
      %v1096 = vunpack.c.l.b16 %v594
      %v1097 = vunpack.c.h.b16 %v594
      %v1098 = vunpack.c.l.b16 %v595
      %v1099 = vunpack.c.h.b16 %v595
      %v1100 = vunpack.c.l.b16 %v596
      %v1101 = vunpack.c.h.b16 %v596
      %v1102 = vunpack.c.l.b16 %v597
      %v1103 = vunpack.c.h.b16 %v597
      %v1104 = vunpack.c.l.b16 %v598
      %v1105 = vunpack.c.h.b16 %v598
      %v1106 = vunpack.c.l.b16 %v599
      %v1107 = vunpack.c.h.b16 %v599
      %v1108 = vunpack.c.l.b16 %v600
      %v1109 = vunpack.c.h.b16 %v600
      %v1110 = vunpack.c.l.b16 %v601
      %v1111 = vunpack.c.h.b16 %v601
      %v1112 = vunpack.c.l.b16 %v602
      %v1113 = vunpack.c.h.b16 %v602
      %v1114 = vunpack.c.l.b16 %v603
      %v1115 = vunpack.c.h.b16 %v603
      %v1116 = vunpack.c.l.b16 %v604
      %v1117 = vunpack.c.h.b16 %v604
      %v1118 = vunpack.c.l.b16 %v605
      %v1119 = vunpack.c.h.b16 %v605
      %v1120 = vunpack.c.l.b16 %v606
      %v1121 = vunpack.c.h.b16 %v606
      %v1122 = vunpack.c.l.b16 %v607
      %v1123 = vunpack.c.h.b16 %v607
      %v1124 = vunpack.c.l.b16 %v608
      %v1125 = vunpack.c.h.b16 %v608
      %v1126 = vunpack.c.l.b16 %v609
      %v1127 = vunpack.c.h.b16 %v609
      %v1128 = vunpack.c.l.b16 %v610
      %v1129 = vunpack.c.h.b16 %v610
      %v1130 = vunpack.c.l.b16 %v611
      %v1131 = vunpack.c.h.b16 %v611
      %v1132 = vunpack.c.l.b16 %v612
      %v1133 = vunpack.c.h.b16 %v612
      %v1134 = vunpack.c.l.b16 %v613
      %v1135 = vunpack.c.h.b16 %v613
      %v1136 = vunpack.c.l.b16 %v614
      %v1137 = vunpack.c.h.b16 %v614
      %v1138 = vunpack.c.l.b16 %v615
      %v1139 = vunpack.c.h.b16 %v615
      %v1140 = vunpack.c.l.b16 %v616
      %v1141 = vunpack.c.h.b16 %v616
      %v1142 = vunpack.c.l.b16 %v617
      %v1143 = vunpack.c.h.b16 %v617
      %v1144 = vunpack.c.l.b16 %v618
      %v1145 = vunpack.c.h.b16 %v618
      %v1146 = vunpack.c.l.b16 %v619
      %v1147 = vunpack.c.h.b16 %v619
      %v1148 = vunpack.c.l.b16 %v620
      %v1149 = vunpack.c.h.b16 %v620
      %v1150 = vunpack.c.l.b16 %v621
      %v1151 = vunpack.c.h.b16 %v621
      %v1152 = vunpack.c.l.b16 %v622
      %v1153 = vunpack.c.h.b16 %v622
      %v1154 = vunpack.c.l.b16 %v623
      %v1155 = vunpack.c.h.b16 %v623
      %v1156 = vunpack.c.l.b16 %v624
      %v1157 = vunpack.c.h.b16 %v624
      %v1158 = vunpack.c.l.b16 %v625
      %v1159 = vunpack.c.h.b16 %v625
      %v1160 = vunpack.c.l.b16 %v626
      %v1161 = vunpack.c.h.b16 %v626
      %v1162 = vunpack.c.l.b16 %v627
      %v1163 = vunpack.c.h.b16 %v627
      %v1164 = vunpack.c.l.b16 %v628
      %v1165 = vunpack.c.h.b16 %v628
      %v1166 = vunpack.c.l.b16 %v629
      %v1167 = vunpack.c.h.b16 %v629
      %v1168 = vunpack.c.l.b16 %v630
      %v1169 = vunpack.c.h.b16 %v630
      %v1170 = vunpack.c.l.b16 %v631
      %v1171 = vunpack.c.h.b16 %v631
      %v1172 = vunpack.c.l.b16 %v632
      %v1173 = vunpack.c.h.b16 %v632
      %v1174 = vunpack.c.l.b16 %v633
      %v1175 = vunpack.c.h.b16 %v633
      %v1176 = vunpack.c.l.b16 %v634
      %v1177 = vunpack.c.h.b16 %v634
      %v1178 = vunpack.c.l.b16 %v635
      %v1179 = vunpack.c.h.b16 %v635
      %v1180 = vunpack.c.l.b16 %v636
      %v1181 = vunpack.c.h.b16 %v636
      %v1182 = vunpack.c.l.b16 %v637
      %v1183 = vunpack.c.h.b16 %v637
      %v1184 = vunpack.c.l.b16 %v638
      %v1185 = vunpack.c.h.b16 %v638
      %v1186 = vunpack.c.l.b16 %v639
      %v1187 = vunpack.c.h.b16 %v639
      %v1188 = vunpack.c.l.b16 %v640
      %v1189 = vunpack.c.h.b16 %v640
      %v1190 = vpack.c.b16 %v924, %v922
      %v1191 = vpack.c.b16 %v925, %v923
      %v1192 = vpack.c.b16 %v928, %v926
      %v1193 = vpack.c.b16 %v929, %v927
      %v1194 = vpack.c.b16 %v932, %v930
      %v1195 = vpack.c.b16 %v933, %v931
      %v1196 = vpack.c.b16 %v936, %v934
      %v1197 = vpack.c.b16 %v937, %v935
      %v1198 = vpack.c.b16 %v940, %v938
      %v1199 = vpack.c.b16 %v941, %v939
      %v1200 = vpack.c.b16 %v944, %v942
      %v1201 = vpack.c.b16 %v945, %v943
      %v1202 = vpack.c.b16 %v948, %v946
      %v1203 = vpack.c.b16 %v949, %v947
      %v1204 = vpack.c.b16 %v952, %v950
      %v1205 = vpack.c.b16 %v953, %v951
      %v1206 = vpack.c.b16 %v956, %v954
      %v1207 = vpack.c.b16 %v957, %v955
      %v1208 = vpack.c.b16 %v960, %v958
      %v1209 = vpack.c.b16 %v961, %v959
      %v1210 = vpack.c.b16 %v964, %v962
      %v1211 = vpack.c.b16 %v965, %v963
      %v1212 = vpack.c.b16 %v968, %v966
      %v1213 = vpack.c.b16 %v969, %v967
      %v1214 = vpack.c.b16 %v972, %v970
      %v1215 = vpack.c.b16 %v973, %v971
      %v1216 = vpack.c.b16 %v976, %v974
      %v1217 = vpack.c.b16 %v977, %v975
      %v1218 = vpack.c.b16 %v980, %v978
      %v1219 = vpack.c.b16 %v981, %v979
      %v1220 = vpack.c.b16 %v984, %v982
      %v1221 = vpack.c.b16 %v985, %v983
      %v1222 = vpack.c.b16 %v988, %v986
      %v1223 = vpack.c.b16 %v989, %v987
      %v1224 = vpack.c.b16 %v992, %v990
      %v1225 = vpack.c.b16 %v993, %v991
      %v1226 = vpack.c.b16 %v996, %v994
      %v1227 = vpack.c.b16 %v997, %v995
      %v1228 = vpack.c.b16 %v1000, %v998
      %v1229 = vpack.c.b16 %v1001, %v999
      %v1230 = vpack.c.b16 %v1004, %v1002
      %v1231 = vpack.c.b16 %v1005, %v1003
      %v1232 = vpack.c.b16 %v1008, %v1006
      %v1233 = vpack.c.b16 %v1009, %v1007
      %v1234 = vpack.c.b16 %v1012, %v1010
      %v1235 = vpack.c.b16 %v1013, %v1011
      %v1236 = vpack.c.b16 %v1016, %v1014
      %v1237 = vpack.c.b16 %v1017, %v1015
      %v1238 = vpack.c.b16 %v1020, %v1018
      %v1239 = vpack.c.b16 %v1021, %v1019
      %v1240 = vpack.c.b16 %v1024, %v1022
      %v1241 = vpack.c.b16 %v1025, %v1023
      %v1242 = vpack.c.b16 %v1028, %v1026
      %v1243 = vpack.c.b16 %v1029, %v1027
      %v1244 = vpack.c.b16 %v1032, %v1030
      %v1245 = vpack.c.b16 %v1033, %v1031
      %v1246 = vpack.c.b16 %v1036, %v1034
      %v1247 = vpack.c.b16 %v1037, %v1035
      %v1248 = vpack.c.b16 %v1040, %v1038
      %v1249 = vpack.c.b16 %v1041, %v1039
      %v1250 = vpack.c.b16 %v1044, %v1042
      %v1251 = vpack.c.b16 %v1045, %v1043
      %v1252 = vpack.c.b16 %v1048, %v1046
      %v1253 = vpack.c.b16 %v1049, %v1047
      %v1254 = vpack.c.b16 %v1052, %v1050
      %v1255 = vpack.c.b16 %v1053, %v1051
      %v1256 = vpack.c.b16 %v1056, %v1054
      %v1257 = vpack.c.b16 %v1057, %v1055
      %v1258 = vpack.c.b16 %v1060, %v1058
      %v1259 = vpack.c.b16 %v1061, %v1059
      %v1260 = vpack.c.b16 %v1064, %v1062
      %v1261 = vpack.c.b16 %v1065, %v1063
      %v1262 = vpack.c.b16 %v1068, %v1066
      %v1263 = vpack.c.b16 %v1069, %v1067
      %v1264 = vpack.c.b16 %v1072, %v1070
      %v1265 = vpack.c.b16 %v1073, %v1071
      %v1266 = vpack.c.b16 %v1076, %v1074
      %v1267 = vpack.c.b16 %v1077, %v1075
      %v1268 = vpack.c.b16 %v1080, %v1078
      %v1269 = vpack.c.b16 %v1081, %v1079
      %v1270 = vpack.c.b16 %v1084, %v1082
      %v1271 = vpack.c.b16 %v1085, %v1083
      %v1272 = vpack.c.b16 %v1088, %v1086
      %v1273 = vpack.c.b16 %v1089, %v1087
      %v1274 = vpack.c.b16 %v1092, %v1090
      %v1275 = vpack.c.b16 %v1093, %v1091
      %v1276 = vpack.c.b16 %v1096, %v1094
      %v1277 = vpack.c.b16 %v1097, %v1095
      %v1278 = vpack.c.b16 %v1100, %v1098
      %v1279 = vpack.c.b16 %v1101, %v1099
      %v1280 = vpack.c.b16 %v1104, %v1102
      %v1281 = vpack.c.b16 %v1105, %v1103
      %v1282 = vpack.c.b16 %v1108, %v1106
      %v1283 = vpack.c.b16 %v1109, %v1107
      %v1284 = vpack.c.b16 %v1112, %v1110
      %v1285 = vpack.c.b16 %v1113, %v1111
      %v1286 = vpack.c.b16 %v1116, %v1114
      %v1287 = vpack.c.b16 %v1117, %v1115
      %v1288 = vpack.c.b16 %v1120, %v1118
      %v1289 = vpack.c.b16 %v1121, %v1119
      %v1290 = vpack.c.b16 %v1124, %v1122
      %v1291 = vpack.c.b16 %v1125, %v1123
      %v1292 = vpack.c.b16 %v1128, %v1126
      %v1293 = vpack.c.b16 %v1129, %v1127
      %v1294 = vpack.c.b16 %v1132, %v1130
      %v1295 = vpack.c.b16 %v1133, %v1131
      %v1296 = vpack.c.b16 %v1136, %v1134
      %v1297 = vpack.c.b16 %v1137, %v1135
      %v1298 = vpack.c.b16 %v1140, %v1138
      %v1299 = vpack.c.b16 %v1141, %v1139
      %v1300 = vpack.c.b16 %v1144, %v1142
      %v1301 = vpack.c.b16 %v1145, %v1143
      %v1302 = vpack.c.b16 %v1148, %v1146
      %v1303 = vpack.c.b16 %v1149, %v1147
      %v1304 = vpack.c.b16 %v1152, %v1150
      %v1305 = vpack.c.b16 %v1153, %v1151
      %v1306 = vpack.c.b16 %v1156, %v1154
      %v1307 = vpack.c.b16 %v1157, %v1155
      %v1308 = vpack.c.b16 %v1160, %v1158
      %v1309 = vpack.c.b16 %v1161, %v1159
      %v1310 = vpack.c.b16 %v1164, %v1162
      %v1311 = vpack.c.b16 %v1165, %v1163
      %v1312 = vpack.c.b16 %v1168, %v1166
      %v1313 = vpack.c.b16 %v1169, %v1167
      %v1314 = vpack.c.b16 %v1172, %v1170
      %v1315 = vpack.c.b16 %v1173, %v1171
      %v1316 = vpack.c.b16 %v1176, %v1174
      %v1317 = vpack.c.b16 %v1177, %v1175
      %v1318 = vpack.c.b16 %v1180, %v1178
      %v1319 = vpack.c.b16 %v1181, %v1179
      %v1320 = vpack.c.b16 %v1184, %v1182
      %v1321 = vpack.c.b16 %v1185, %v1183
      %v1322 = vpack.c.b16 %v1188, %v1186
      %v1323 = vpack.c.b16 %v1189, %v1187
      %vm1458 = vcmask 392192
      %v1460 = vsel %vm1458, %v782, 0
      %1462 = vmatpush.bf16.msra.mxu0 %v1204
      %1463 = vmatpush.bf16.msra.mxu0 %v1202
      %1464 = vmatpush.bf16.msra.mxu0 %v1200
      %1465 = vmatpush.bf16.msra.mxu0 %v1198
      %1466 = vmatpush.bf16.msra.mxu0 %v1196
      %1467 = vmatpush.bf16.msra.mxu0 %v1194
      %1468 = vmatpush.bf16.msra.mxu0 %v1192
      %1469 = vmatpush.bf16.msra.mxu0 %v1190
      %1470 = vmatmul.bf16.gmra.mxu0 %v774
      %v1471 = vpop.f32.mrf.mxu0
      %v1472 = vadd.f32 %v784, %v1471
      %v1473 = vpop.f32.mrf.mxu0
      %1474 = vdwg.mxu0
      %1475 = vmatpush.bf16.msra.mxu0 %v1220
      %1476 = vmatpush.bf16.msra.mxu0 %v1218
      %1477 = vmatpush.bf16.msra.mxu0 %v1216
      %1478 = vmatpush.bf16.msra.mxu0 %v1214
      %1479 = vmatpush.bf16.msra.mxu0 %v1212
      %1480 = vmatpush.bf16.msra.mxu0 %v1210
      %1481 = vmatpush.bf16.msra.mxu0 %v1208
      %1482 = vmatpush.bf16.msra.mxu0 %v1206
      %1483 = vmatmul.bf16.gmra.mxu0 %v775
      %v1484 = vpop.f32.mrf.mxu0
      %v1485 = vadd.f32 %v1472, %v1484
      %v1486 = vpop.f32.mrf.mxu0
      %1487 = vdwg.mxu0
      %1488 = vmatpush.bf16.msra.mxu0 %v1236
      %1489 = vmatpush.bf16.msra.mxu0 %v1234
      %1490 = vmatpush.bf16.msra.mxu0 %v1232
      %1491 = vmatpush.bf16.msra.mxu0 %v1230
      %1492 = vmatpush.bf16.msra.mxu0 %v1228
      %1493 = vmatpush.bf16.msra.mxu0 %v1226
      %1494 = vmatpush.bf16.msra.mxu0 %v1224
      %1495 = vmatpush.bf16.msra.mxu0 %v1222
      %1496 = vmatmul.bf16.gmra.mxu0 %v776
      %v1497 = vpop.f32.mrf.mxu0
      %v1498 = vadd.f32 %v1485, %v1497
      %v1499 = vpop.f32.mrf.mxu0
      %1500 = vdwg.mxu0
      %1501 = vmatpush.bf16.msra.mxu0 %v1252
      %1502 = vmatpush.bf16.msra.mxu0 %v1250
      %1503 = vmatpush.bf16.msra.mxu0 %v1248
      %1504 = vmatpush.bf16.msra.mxu0 %v1246
      %1505 = vmatpush.bf16.msra.mxu0 %v1244
      %1506 = vmatpush.bf16.msra.mxu0 %v1242
      %1507 = vmatpush.bf16.msra.mxu0 %v1240
      %1508 = vmatpush.bf16.msra.mxu0 %v1238
      %1509 = vmatmul.bf16.gmra.mxu0 %v777
      %v1510 = vpop.f32.mrf.mxu0
      %v1511 = vadd.f32 %v1498, %v1510
      %v1512 = vpop.f32.mrf.mxu0
      %1513 = vdwg.mxu0
      %1514 = vmatpush.bf16.msra.mxu0 %v1268
      %1515 = vmatpush.bf16.msra.mxu0 %v1266
      %1516 = vmatpush.bf16.msra.mxu0 %v1264
      %1517 = vmatpush.bf16.msra.mxu0 %v1262
      %1518 = vmatpush.bf16.msra.mxu0 %v1260
      %1519 = vmatpush.bf16.msra.mxu0 %v1258
      %1520 = vmatpush.bf16.msra.mxu0 %v1256
      %1521 = vmatpush.bf16.msra.mxu0 %v1254
      %1522 = vmatmul.bf16.gmra.mxu0 %v778
      %v1523 = vpop.f32.mrf.mxu0
      %v1524 = vadd.f32 %v1511, %v1523
      %v1525 = vpop.f32.mrf.mxu0
      %1526 = vdwg.mxu0
      %1527 = vmatpush.bf16.msra.mxu0 %v1284
      %1528 = vmatpush.bf16.msra.mxu0 %v1282
      %1529 = vmatpush.bf16.msra.mxu0 %v1280
      %1530 = vmatpush.bf16.msra.mxu0 %v1278
      %1531 = vmatpush.bf16.msra.mxu0 %v1276
      %1532 = vmatpush.bf16.msra.mxu0 %v1274
      %1533 = vmatpush.bf16.msra.mxu0 %v1272
      %1534 = vmatpush.bf16.msra.mxu0 %v1270
      %1535 = vmatmul.bf16.gmra.mxu0 %v779
      %v1536 = vpop.f32.mrf.mxu0
      %v1537 = vadd.f32 %v1524, %v1536
      %v1538 = vpop.f32.mrf.mxu0
      %1539 = vdwg.mxu0
      %1540 = vmatpush.bf16.msra.mxu0 %v1300
      %1541 = vmatpush.bf16.msra.mxu0 %v1298
      %1542 = vmatpush.bf16.msra.mxu0 %v1296
      %1543 = vmatpush.bf16.msra.mxu0 %v1294
      %1544 = vmatpush.bf16.msra.mxu0 %v1292
      %1545 = vmatpush.bf16.msra.mxu0 %v1290
      %1546 = vmatpush.bf16.msra.mxu0 %v1288
      %1547 = vmatpush.bf16.msra.mxu0 %v1286
      %1548 = vmatmul.bf16.gmra.mxu0 %v780
      %v1549 = vpop.f32.mrf.mxu0
      %v1550 = vadd.f32 %v1537, %v1549
      %v1551 = vpop.f32.mrf.mxu0
      %1552 = vdwg.mxu0
      %1553 = vmatpush.bf16.msra.mxu0 %v1316
      %1554 = vmatpush.bf16.msra.mxu0 %v1314
      %1555 = vmatpush.bf16.msra.mxu0 %v1312
      %1556 = vmatpush.bf16.msra.mxu0 %v1310
      %1557 = vmatpush.bf16.msra.mxu0 %v1308
      %1558 = vmatpush.bf16.msra.mxu0 %v1306
      %1559 = vmatpush.bf16.msra.mxu0 %v1304
      %1560 = vmatpush.bf16.msra.mxu0 %v1302
      %1561 = vmatmul.bf16.gmra.mxu0 %v781
      %v1562 = vpop.f32.mrf.mxu0
      %v1563 = vadd.f32 %v1550, %v1562
      %v1564 = vpop.f32.mrf.mxu0
      %1565 = vdwg.mxu0
      %1566 = vmatpush.bf16.msra.mxu0 0
      %1567 = vmatpush.bf16.msra.mxu0 0
      %1568 = vmatpush.bf16.msra.mxu0 0
      %1569 = vmatpush.bf16.msra.mxu0 0
      %1570 = vmatpush.bf16.msra.mxu0 0
      %1571 = vmatpush.bf16.msra.mxu0 %v1322
      %1572 = vmatpush.bf16.msra.mxu0 %v1320
      %1573 = vmatpush.bf16.msra.mxu0 %v1318
      %1574 = vmatmul.bf16.gmra.mxu0 %v1460
      %v1575 = vpop.f32.mrf.mxu0
      %v1576 = vadd.f32 %v1563, %v1575
      %v1577 = vpop.f32.mrf.mxu0
      %1578 = vdwg.mxu0
      %1579 = vmatpush.bf16.msra.mxu0 %v1205
      %1580 = vmatpush.bf16.msra.mxu0 %v1203
      %1581 = vmatpush.bf16.msra.mxu0 %v1201
      %1582 = vmatpush.bf16.msra.mxu0 %v1199
      %1583 = vmatpush.bf16.msra.mxu0 %v1197
      %1584 = vmatpush.bf16.msra.mxu0 %v1195
      %1585 = vmatpush.bf16.msra.mxu0 %v1193
      %1586 = vmatpush.bf16.msra.mxu0 %v1191
      %1587 = vmatmul.bf16.gmra.mxu0 %v774
      %v1588 = vpop.f32.mrf.mxu0
      %v1589 = vadd.f32 %v785, %v1588
      %v1590 = vpop.f32.mrf.mxu0
      %1591 = vdwg.mxu0
      %1592 = vmatpush.bf16.msra.mxu0 %v1221
      %1593 = vmatpush.bf16.msra.mxu0 %v1219
      %1594 = vmatpush.bf16.msra.mxu0 %v1217
      %1595 = vmatpush.bf16.msra.mxu0 %v1215
      %1596 = vmatpush.bf16.msra.mxu0 %v1213
      %1597 = vmatpush.bf16.msra.mxu0 %v1211
      %1598 = vmatpush.bf16.msra.mxu0 %v1209
      %1599 = vmatpush.bf16.msra.mxu0 %v1207
      %1600 = vmatmul.bf16.gmra.mxu0 %v775
      %v1601 = vpop.f32.mrf.mxu0
      %v1602 = vadd.f32 %v1589, %v1601
      %v1603 = vpop.f32.mrf.mxu0
      %1604 = vdwg.mxu0
      %1605 = vmatpush.bf16.msra.mxu0 %v1237
      %1606 = vmatpush.bf16.msra.mxu0 %v1235
      %1607 = vmatpush.bf16.msra.mxu0 %v1233
      %1608 = vmatpush.bf16.msra.mxu0 %v1231
      %1609 = vmatpush.bf16.msra.mxu0 %v1229
      %1610 = vmatpush.bf16.msra.mxu0 %v1227
      %1611 = vmatpush.bf16.msra.mxu0 %v1225
      %1612 = vmatpush.bf16.msra.mxu0 %v1223
      %1613 = vmatmul.bf16.gmra.mxu0 %v776
      %v1614 = vpop.f32.mrf.mxu0
      %v1615 = vadd.f32 %v1602, %v1614
      %v1616 = vpop.f32.mrf.mxu0
      %1617 = vdwg.mxu0
      %1618 = vmatpush.bf16.msra.mxu0 %v1253
      %1619 = vmatpush.bf16.msra.mxu0 %v1251
      %1620 = vmatpush.bf16.msra.mxu0 %v1249
      %1621 = vmatpush.bf16.msra.mxu0 %v1247
      %1622 = vmatpush.bf16.msra.mxu0 %v1245
      %1623 = vmatpush.bf16.msra.mxu0 %v1243
      %1624 = vmatpush.bf16.msra.mxu0 %v1241
      %1625 = vmatpush.bf16.msra.mxu0 %v1239
      %1626 = vmatmul.bf16.gmra.mxu0 %v777
      %v1627 = vpop.f32.mrf.mxu0
      %v1628 = vadd.f32 %v1615, %v1627
      %v1629 = vpop.f32.mrf.mxu0
      %1630 = vdwg.mxu0
      %1631 = vmatpush.bf16.msra.mxu0 %v1269
      %1632 = vmatpush.bf16.msra.mxu0 %v1267
      %1633 = vmatpush.bf16.msra.mxu0 %v1265
      %1634 = vmatpush.bf16.msra.mxu0 %v1263
      %1635 = vmatpush.bf16.msra.mxu0 %v1261
      %1636 = vmatpush.bf16.msra.mxu0 %v1259
      %1637 = vmatpush.bf16.msra.mxu0 %v1257
      %1638 = vmatpush.bf16.msra.mxu0 %v1255
      %1639 = vmatmul.bf16.gmra.mxu0 %v778
      %v1640 = vpop.f32.mrf.mxu0
      %v1641 = vadd.f32 %v1628, %v1640
      %v1642 = vpop.f32.mrf.mxu0
      %1643 = vdwg.mxu0
      %1644 = vmatpush.bf16.msra.mxu0 %v1285
      %1645 = vmatpush.bf16.msra.mxu0 %v1283
      %1646 = vmatpush.bf16.msra.mxu0 %v1281
      %1647 = vmatpush.bf16.msra.mxu0 %v1279
      %1648 = vmatpush.bf16.msra.mxu0 %v1277
      %1649 = vmatpush.bf16.msra.mxu0 %v1275
      %1650 = vmatpush.bf16.msra.mxu0 %v1273
      %1651 = vmatpush.bf16.msra.mxu0 %v1271
      %1652 = vmatmul.bf16.gmra.mxu0 %v779
      %v1653 = vpop.f32.mrf.mxu0
      %v1654 = vadd.f32 %v1641, %v1653
      %v1655 = vpop.f32.mrf.mxu0
      %1656 = vdwg.mxu0
      %1657 = vmatpush.bf16.msra.mxu0 %v1301
      %1658 = vmatpush.bf16.msra.mxu0 %v1299
      %1659 = vmatpush.bf16.msra.mxu0 %v1297
      %1660 = vmatpush.bf16.msra.mxu0 %v1295
      %1661 = vmatpush.bf16.msra.mxu0 %v1293
      %1662 = vmatpush.bf16.msra.mxu0 %v1291
      %1663 = vmatpush.bf16.msra.mxu0 %v1289
      %1664 = vmatpush.bf16.msra.mxu0 %v1287
      %1665 = vmatmul.bf16.gmra.mxu0 %v780
      %v1666 = vpop.f32.mrf.mxu0
      %v1667 = vadd.f32 %v1654, %v1666
      %v1668 = vpop.f32.mrf.mxu0
      %1669 = vdwg.mxu0
      %1670 = vmatpush.bf16.msra.mxu0 %v1317
      %1671 = vmatpush.bf16.msra.mxu0 %v1315
      %1672 = vmatpush.bf16.msra.mxu0 %v1313
      %1673 = vmatpush.bf16.msra.mxu0 %v1311
      %1674 = vmatpush.bf16.msra.mxu0 %v1309
      %1675 = vmatpush.bf16.msra.mxu0 %v1307
      %1676 = vmatpush.bf16.msra.mxu0 %v1305
      %1677 = vmatpush.bf16.msra.mxu0 %v1303
      %1678 = vmatmul.bf16.gmra.mxu0 %v781
      %v1679 = vpop.f32.mrf.mxu0
      %v1680 = vadd.f32 %v1667, %v1679
      %v1681 = vpop.f32.mrf.mxu0
      %1682 = vdwg.mxu0
      %1683 = vmatpush.bf16.msra.mxu0 0
      %1684 = vmatpush.bf16.msra.mxu0 0
      %1685 = vmatpush.bf16.msra.mxu0 0
      %1686 = vmatpush.bf16.msra.mxu0 0
      %1687 = vmatpush.bf16.msra.mxu0 0
      %1688 = vmatpush.bf16.msra.mxu0 %v1323
      %1689 = vmatpush.bf16.msra.mxu0 %v1321
      %1690 = vmatpush.bf16.msra.mxu0 %v1319
      %1691 = vmatmul.bf16.gmra.mxu0 %v1460
      %v1692 = vpop.f32.mrf.mxu0
      %v1693 = vadd.f32 %v1680, %v1692
      %v1694 = vpop.f32.mrf.mxu0
      %1695 = vdwg.mxu0
      %v1696 = vld [vmem:[%s1] sm:$0xff]
      %v1697 = vld [vmem:[%s1 + $0x8] sm:$0xff]
      %v1698 = vpack.c.bf16 %v1696, %v1696
      %v1699 = vpack.c.bf16 %v1697, %v1697
      %v1701 = vperm.slane %v678, 0
      %v1702 = vperm.slane %v678, 1
      %v1724 = vunpack.c.l.b16 %v641
      %v1725 = vunpack.c.h.b16 %v641
      %v1726 = vunpack.c.l.b16 %v642
      %v1727 = vunpack.c.h.b16 %v642
      %v1728 = vunpack.c.l.b16 %v643
      %v1729 = vunpack.c.h.b16 %v643
      %v1730 = vunpack.c.l.b16 %v644
      %v1731 = vunpack.c.h.b16 %v644
      %v1732 = vunpack.c.l.b16 %v645
      %v1733 = vunpack.c.h.b16 %v645
      %v1734 = vunpack.c.l.b16 %v646
      %v1735 = vunpack.c.h.b16 %v646
      %v1736 = vunpack.c.l.b16 %v647
      %v1737 = vunpack.c.h.b16 %v647
      %v1738 = vunpack.c.l.b16 %v648
      %v1739 = vunpack.c.h.b16 %v648
      %v1740 = vunpack.c.l.b16 %v649
      %v1741 = vunpack.c.h.b16 %v649
      %v1742 = vunpack.c.l.b16 %v650
      %v1743 = vunpack.c.h.b16 %v650
      %v1744 = vunpack.c.l.b16 %v651
      %v1745 = vunpack.c.h.b16 %v651
      %v1746 = vunpack.c.l.b16 %v652
      %v1747 = vunpack.c.h.b16 %v652
      %v1748 = vunpack.c.l.b16 %v653
      %v1749 = vunpack.c.h.b16 %v653
      %v1750 = vunpack.c.l.b16 %v654
      %v1751 = vunpack.c.h.b16 %v654
      %v1752 = vunpack.c.l.b16 %v655
      %v1753 = vunpack.c.h.b16 %v655
      %v1754 = vunpack.c.l.b16 %v656
      %v1755 = vunpack.c.h.b16 %v656
      %v1756 = vunpack.c.l.b16 %v657
      %v1757 = vunpack.c.h.b16 %v657
      %v1758 = vunpack.c.l.b16 %v658
      %v1759 = vunpack.c.h.b16 %v658
      %v1760 = vunpack.c.l.b16 %v659
      %v1761 = vunpack.c.h.b16 %v659
      %v1762 = vpack.c.b16 %v1726, %v1724
      %v1763 = vpack.c.b16 %v1727, %v1725
      %v1764 = vpack.c.b16 %v1730, %v1728
      %v1765 = vpack.c.b16 %v1731, %v1729
      %v1766 = vpack.c.b16 %v1734, %v1732
      %v1767 = vpack.c.b16 %v1735, %v1733
      %v1768 = vpack.c.b16 %v1738, %v1736
      %v1769 = vpack.c.b16 %v1739, %v1737
      %v1770 = vpack.c.b16 %v1742, %v1740
      %v1771 = vpack.c.b16 %v1743, %v1741
      %v1772 = vpack.c.b16 %v1746, %v1744
      %v1773 = vpack.c.b16 %v1747, %v1745
      %v1774 = vpack.c.b16 %v1750, %v1748
      %v1775 = vpack.c.b16 %v1751, %v1749
      %v1776 = vpack.c.b16 %v1754, %v1752
      %v1777 = vpack.c.b16 %v1755, %v1753
      %v1778 = vpack.c.b16 %v1758, %v1756
      %v1779 = vpack.c.b16 %v1759, %v1757
      %v1780 = vpack.c.b16 %v1760, %v1760
      %v1781 = vpack.c.b16 %v1761, %v1761
      %vm1800 = vcmask 171008
      %v1802 = vsel %vm1800, %v1699, 0
      %vm1804 = vcmask 1041408
      %vm1805 = vcmask 1042432
      %v1806 = vsel %vm1804, 4294967295, 65535
      %v1807 = vsel %vm1805, %v1806, 0
      %v1809 = vand.u32 %v1780, %v1807
      %v1812 = vand.u32 %v1781, %v1807
      %1814 = vmatpush.bf16.msra.mxu0 %v1776
      %1815 = vmatpush.bf16.msra.mxu0 %v1774
      %1816 = vmatpush.bf16.msra.mxu0 %v1772
      %1817 = vmatpush.bf16.msra.mxu0 %v1770
      %1818 = vmatpush.bf16.msra.mxu0 %v1768
      %1819 = vmatpush.bf16.msra.mxu0 %v1766
      %1820 = vmatpush.bf16.msra.mxu0 %v1764
      %1821 = vmatpush.bf16.msra.mxu0 %v1762
      %1822 = vmatmul.bf16.gmra.mxu0 %v1698
      %v1823 = vpop.f32.mrf.mxu0
      %v1824 = vadd.f32 %v1701, %v1823
      %v1825 = vpop.f32.mrf.mxu0
      %1826 = vdwg.mxu0
      %1827 = vmatpush.bf16.msra.mxu0 0
      %1828 = vmatpush.bf16.msra.mxu0 0
      %1829 = vmatpush.bf16.msra.mxu0 0
      %1830 = vmatpush.bf16.msra.mxu0 0
      %1831 = vmatpush.bf16.msra.mxu0 0
      %1832 = vmatpush.bf16.msra.mxu0 0
      %1833 = vmatpush.bf16.msra.mxu0 %v1809
      %1834 = vmatpush.bf16.msra.mxu0 %v1778
      %1835 = vmatmul.bf16.gmra.mxu0 %v1802
      %v1836 = vpop.f32.mrf.mxu0
      %v1837 = vadd.f32 %v1824, %v1836
      %v1838 = vpop.f32.mrf.mxu0
      %1839 = vdwg.mxu0
      %1840 = vmatpush.bf16.msra.mxu0 %v1777
      %1841 = vmatpush.bf16.msra.mxu0 %v1775
      %1842 = vmatpush.bf16.msra.mxu0 %v1773
      %1843 = vmatpush.bf16.msra.mxu0 %v1771
      %1844 = vmatpush.bf16.msra.mxu0 %v1769
      %1845 = vmatpush.bf16.msra.mxu0 %v1767
      %1846 = vmatpush.bf16.msra.mxu0 %v1765
      %1847 = vmatpush.bf16.msra.mxu0 %v1763
      %1848 = vmatmul.bf16.gmra.mxu0 %v1698
      %v1849 = vpop.f32.mrf.mxu0
      %v1850 = vadd.f32 %v1702, %v1849
      %v1851 = vpop.f32.mrf.mxu0
      %1852 = vdwg.mxu0
      %1853 = vmatpush.bf16.msra.mxu0 0
      %1854 = vmatpush.bf16.msra.mxu0 0
      %1855 = vmatpush.bf16.msra.mxu0 0
      %1856 = vmatpush.bf16.msra.mxu0 0
      %1857 = vmatpush.bf16.msra.mxu0 0
      %1858 = vmatpush.bf16.msra.mxu0 0
      %1859 = vmatpush.bf16.msra.mxu0 %v1812
      %1860 = vmatpush.bf16.msra.mxu0 %v1779
      %1861 = vmatmul.bf16.gmra.mxu0 %v1802
      %v1862 = vpop.f32.mrf.mxu0
      %v1863 = vadd.f32 %v1850, %v1862
      %v1864 = vpop.f32.mrf.mxu0
      %1865 = vdwg.mxu0
      %v1866 = vld [vmem:[%s2] sm:$0xff]
      %v1867 = vld [vmem:[%s2 + $0x8] sm:$0xff]
      %v1868 = vpack.c.bf16 %v1866, %v1866
      %v1869 = vpack.c.bf16 %v1867, %v1867
      %v1871 = vperm.slane %v679, 0
      %v1872 = vperm.slane %v679, 1
      %v1892 = vunpack.c.l.b16 %v660
      %v1893 = vunpack.c.h.b16 %v660
      %v1894 = vunpack.c.l.b16 %v661
      %v1895 = vunpack.c.h.b16 %v661
      %v1896 = vunpack.c.l.b16 %v662
      %v1897 = vunpack.c.h.b16 %v662
      %v1898 = vunpack.c.l.b16 %v663
      %v1899 = vunpack.c.h.b16 %v663
      %v1900 = vunpack.c.l.b16 %v664
      %v1901 = vunpack.c.h.b16 %v664
      %v1902 = vunpack.c.l.b16 %v665
      %v1903 = vunpack.c.h.b16 %v665
      %v1904 = vunpack.c.l.b16 %v666
      %v1905 = vunpack.c.h.b16 %v666
      %v1906 = vunpack.c.l.b16 %v667
      %v1907 = vunpack.c.h.b16 %v667
      %v1908 = vunpack.c.l.b16 %v668
      %v1909 = vunpack.c.h.b16 %v668
      %v1910 = vunpack.c.l.b16 %v669
      %v1911 = vunpack.c.h.b16 %v669
      %v1912 = vunpack.c.l.b16 %v670
      %v1913 = vunpack.c.h.b16 %v670
      %v1914 = vunpack.c.l.b16 %v671
      %v1915 = vunpack.c.h.b16 %v671
      %v1916 = vunpack.c.l.b16 %v672
      %v1917 = vunpack.c.h.b16 %v672
      %v1918 = vunpack.c.l.b16 %v673
      %v1919 = vunpack.c.h.b16 %v673
      %v1920 = vunpack.c.l.b16 %v674
      %v1921 = vunpack.c.h.b16 %v674
      %v1922 = vunpack.c.l.b16 %v675
      %v1923 = vunpack.c.h.b16 %v675
      %v1924 = vunpack.c.l.b16 %v676
      %v1925 = vunpack.c.h.b16 %v676
      %v1926 = vpack.c.b16 %v1894, %v1892
      %v1927 = vpack.c.b16 %v1895, %v1893
      %v1928 = vpack.c.b16 %v1898, %v1896
      %v1929 = vpack.c.b16 %v1899, %v1897
      %v1930 = vpack.c.b16 %v1902, %v1900
      %v1931 = vpack.c.b16 %v1903, %v1901
      %v1932 = vpack.c.b16 %v1906, %v1904
      %v1933 = vpack.c.b16 %v1907, %v1905
      %v1934 = vpack.c.b16 %v1910, %v1908
      %v1935 = vpack.c.b16 %v1911, %v1909
      %v1936 = vpack.c.b16 %v1914, %v1912
      %v1937 = vpack.c.b16 %v1915, %v1913
      %v1938 = vpack.c.b16 %v1918, %v1916
      %v1939 = vpack.c.b16 %v1919, %v1917
      %v1940 = vpack.c.b16 %v1922, %v1920
      %v1941 = vpack.c.b16 %v1923, %v1921
      %v1942 = vpack.c.b16 %v1924, %v1924
      %v1943 = vpack.c.b16 %v1925, %v1925
      %vm1960 = vcmask 48128
      %v1962 = vsel %vm1960, %v1869, 0
      %v1965 = vsel %vm1805, %v1942, 0
      %v1968 = vsel %vm1805, %v1943, 0
      %1970 = vmatpush.bf16.msra.mxu0 %v1940
      %1971 = vmatpush.bf16.msra.mxu0 %v1938
      %1972 = vmatpush.bf16.msra.mxu0 %v1936
      %1973 = vmatpush.bf16.msra.mxu0 %v1934
      %1974 = vmatpush.bf16.msra.mxu0 %v1932
      %1975 = vmatpush.bf16.msra.mxu0 %v1930
      %1976 = vmatpush.bf16.msra.mxu0 %v1928
      %1977 = vmatpush.bf16.msra.mxu0 %v1926
      %1978 = vmatmul.bf16.gmra.mxu0 %v1868
      %v1979 = vpop.f32.mrf.mxu0
      %v1980 = vadd.f32 %v1871, %v1979
      %v1981 = vpop.f32.mrf.mxu0
      %1982 = vdwg.mxu0
      %1983 = vmatpush.bf16.msra.mxu0 0
      %1984 = vmatpush.bf16.msra.mxu0 0
      %1985 = vmatpush.bf16.msra.mxu0 0
      %1986 = vmatpush.bf16.msra.mxu0 0
      %1987 = vmatpush.bf16.msra.mxu0 0
      %1988 = vmatpush.bf16.msra.mxu0 0
      %1989 = vmatpush.bf16.msra.mxu0 0
      %1990 = vmatpush.bf16.msra.mxu0 %v1965
      %1991 = vmatmul.bf16.gmra.mxu0 %v1962
      %v1992 = vpop.f32.mrf.mxu0
      %v1993 = vadd.f32 %v1980, %v1992
      %v1994 = vpop.f32.mrf.mxu0
      %1995 = vdwg.mxu0
      %1996 = vmatpush.bf16.msra.mxu0 %v1941
      %1997 = vmatpush.bf16.msra.mxu0 %v1939
      %1998 = vmatpush.bf16.msra.mxu0 %v1937
      %1999 = vmatpush.bf16.msra.mxu0 %v1935
      %2000 = vmatpush.bf16.msra.mxu0 %v1933
      %2001 = vmatpush.bf16.msra.mxu0 %v1931
      %2002 = vmatpush.bf16.msra.mxu0 %v1929
      %2003 = vmatpush.bf16.msra.mxu0 %v1927
      %2004 = vmatmul.bf16.gmra.mxu0 %v1868
      %v2005 = vpop.f32.mrf.mxu0
      %v2006 = vadd.f32 %v1872, %v2005
      %v2007 = vpop.f32.mrf.mxu0
      %2008 = vdwg.mxu0
      %2009 = vmatpush.bf16.msra.mxu0 0
      %2010 = vmatpush.bf16.msra.mxu0 0
      %2011 = vmatpush.bf16.msra.mxu0 0
      %2012 = vmatpush.bf16.msra.mxu0 0
      %2013 = vmatpush.bf16.msra.mxu0 0
      %2014 = vmatpush.bf16.msra.mxu0 0
      %2015 = vmatpush.bf16.msra.mxu0 0
      %2016 = vmatpush.bf16.msra.mxu0 %v1968
      %2017 = vmatmul.bf16.gmra.mxu0 %v1962
      %v2018 = vpop.f32.mrf.mxu0
      %v2019 = vadd.f32 %v2006, %v2018
      %v2020 = vpop.f32.mrf.mxu0
      %2021 = vdwg.mxu0
      %v2022 = vpack.c.bf16 %v1576, %v1576
      %v2023 = vpack.c.bf16 %v1693, %v1693
      %v2024 = vpack.c.bf16 %v1837, %v1837
      %v2025 = vpack.c.bf16 %v1863, %v1863
      %v2027 = vsel %vm1960, %v2023, 0
      %v2030 = vsel %vm1960, %v2025, 0
      %2032 = vmatpush.bf16.xpose.msra.mxu0 0
      %2033 = vmatpush.bf16.xpose.msra.mxu0 0
      %2034 = vmatpush.bf16.xpose.msra.mxu0 0
      %2035 = vmatpush.bf16.xpose.msra.mxu0 0
      %2036 = vmatpush.bf16.xpose.msra.mxu0 0
      %2037 = vmatpush.bf16.xpose.msra.mxu0 0
      %2038 = vmatpush.bf16.xpose.msra.mxu0 0
      %2039 = vmatpush.bf16.xpose.msra.mxu0 %v2024
      %2040 = vmatmul.bf16.gmra.mxu0 %v2022
      %v2041 = vpop.f32.mrf.mxu0
      %v2042 = vadd.f32 0.0, %v2041
      %v2043 = vpop.f32.mrf.mxu0
      %2044 = vdwg.mxu0
      %2045 = vmatpush.bf16.xpose.msra.mxu0 0
      %2046 = vmatpush.bf16.xpose.msra.mxu0 0
      %2047 = vmatpush.bf16.xpose.msra.mxu0 0
      %2048 = vmatpush.bf16.xpose.msra.mxu0 0
      %2049 = vmatpush.bf16.xpose.msra.mxu0 0
      %2050 = vmatpush.bf16.xpose.msra.mxu0 0
      %2051 = vmatpush.bf16.xpose.msra.mxu0 0
      %2052 = vmatpush.bf16.xpose.msra.mxu0 %v2030
      %2053 = vmatmul.bf16.gmra.mxu0 %v2027
      %v2054 = vpop.f32.mrf.mxu0
      %v2055 = vadd.f32 %v2042, %v2054
      %v2056 = vpop.f32.mrf.mxu0
      %2057 = vdwg.mxu0
      %v2058 = vmul.f32 %v2055, 0.086386845
      %vm2059 = vcmask 64512
      %v2060 = vsel %vm2059, %v2058, -inf
      %2061 = vmax.xlane.f32.xlu0 %v2060
      %v2062 = vpop.xlane.xlu0 %2061
      %v2063 = vsub.f32 %v2058, %v2062
      %v2064 = vmul.f32 %v2063, 1.442695
      %v2065 = vpow.pop %v2064
      %v2066 = vsel %vm2059, %v2065, 0.0
      %2067 = vadd.xlane.f32.xlu0 %v2066
      %v2068 = vpop.xlane.xlu0 %2067
      %v2069 = vrcp.pop %v2068
      %v2070 = vmul.f32 %v2065, %v2069
      %v2071 = vpack.c.bf16 %v2070, %v2070
      %v2072 = vpack.c.bf16 %v1993, %v1993
      %v2073 = vpack.c.bf16 %v2019, %v2019
      %v2075 = vsel %vm2059, %v2071, 0
      %vm2077 = vcmask 1043456
      %v2079 = vsel %vm2077, %v2072, 0
      %v2082 = vsel %vm2077, %v2073, 0
      %2084 = vmatpush.bf16.msra.mxu0 0
      %2085 = vmatpush.bf16.msra.mxu0 0
      %2086 = vmatpush.bf16.msra.mxu0 0
      %2087 = vmatpush.bf16.msra.mxu0 0
      %2088 = vmatpush.bf16.msra.mxu0 0
      %2089 = vmatpush.bf16.msra.mxu0 0
      %2090 = vmatpush.bf16.msra.mxu0 0
      %2091 = vmatpush.bf16.msra.mxu0 %v2079
      %2092 = vmatmul.bf16.gmra.mxu0 %v2075
      %v2093 = vpop.f32.mrf.mxu0
      %v2094 = vadd.f32 0.0, %v2093
      %v2095 = vpop.f32.mrf.mxu0
      %2096 = vdwg.mxu0
      %2097 = vmatpush.bf16.msra.mxu0 0
      %2098 = vmatpush.bf16.msra.mxu0 0
      %2099 = vmatpush.bf16.msra.mxu0 0
      %2100 = vmatpush.bf16.msra.mxu0 0
      %2101 = vmatpush.bf16.msra.mxu0 0
      %2102 = vmatpush.bf16.msra.mxu0 0
      %2103 = vmatpush.bf16.msra.mxu0 0
      %2104 = vmatpush.bf16.msra.mxu0 %v2082
      %2105 = vmatmul.bf16.gmra.mxu0 %v2075
      %v2106 = vpop.f32.mrf.mxu0
      %v2107 = vadd.f32 0.0, %v2106
      %v2108 = vpop.f32.mrf.mxu0
      %2109 = vdwg.mxu0
      %v2110 = vld [vmem:[%s11] sm:$0xff]
      %v2111 = vld [vmem:[%s11 + $0x8] sm:$0xff]
      %v2112 = vld [vmem:[%s11 + $0x10] sm:$0xff]
      %v2113 = vld [vmem:[%s11 + $0x18] sm:$0xff]
      %v2114 = vld [vmem:[%s11 + $0x20] sm:$0xff]
      %v2115 = vld [vmem:[%s11 + $0x28] sm:$0xff]
      %v2116 = vld [vmem:[%s11 + $0x30] sm:$0xff]
      %v2117 = vld [vmem:[%s11 + $0x38] sm:$0xff]
      %v2118 = vld [vmem:[%s11 + $0x40] sm:$0xff]
      %v2119 = vpack.c.bf16 %v2094, %v2094
      %v2120 = vpack.c.bf16 %v2107, %v2107
      %v2206 = vunpack.c.l.b16 %v680
      %v2207 = vunpack.c.h.b16 %v680
      %v2208 = vunpack.c.l.b16 %v681
      %v2209 = vunpack.c.h.b16 %v681
      %v2210 = vunpack.c.l.b16 %v682
      %v2211 = vunpack.c.h.b16 %v682
      %v2212 = vunpack.c.l.b16 %v683
      %v2213 = vunpack.c.h.b16 %v683
      %v2214 = vunpack.c.l.b16 %v684
      %v2215 = vunpack.c.l.b16 %v685
      %v2216 = vunpack.c.h.b16 %v685
      %v2217 = vunpack.c.l.b16 %v686
      %v2218 = vunpack.c.h.b16 %v686
      %v2219 = vunpack.c.l.b16 %v687
      %v2220 = vunpack.c.h.b16 %v687
      %v2221 = vunpack.c.l.b16 %v688
      %v2222 = vunpack.c.h.b16 %v688
      %v2223 = vunpack.c.l.b16 %v689
      %v2224 = vunpack.c.l.b16 %v690
      %v2225 = vunpack.c.h.b16 %v690
      %v2226 = vunpack.c.l.b16 %v691
      %v2227 = vunpack.c.h.b16 %v691
      %v2228 = vunpack.c.l.b16 %v692
      %v2229 = vunpack.c.h.b16 %v692
      %v2230 = vunpack.c.l.b16 %v693
      %v2231 = vunpack.c.h.b16 %v693
      %v2232 = vunpack.c.l.b16 %v694
      %v2233 = vunpack.c.l.b16 %v695
      %v2234 = vunpack.c.h.b16 %v695
      %v2235 = vunpack.c.l.b16 %v696
      %v2236 = vunpack.c.h.b16 %v696
      %v2237 = vunpack.c.l.b16 %v697
      %v2238 = vunpack.c.h.b16 %v697
      %v2239 = vunpack.c.l.b16 %v698
      %v2240 = vunpack.c.h.b16 %v698
      %v2241 = vunpack.c.l.b16 %v699
      %v2242 = vunpack.c.l.b16 %v700
      %v2243 = vunpack.c.h.b16 %v700
      %v2244 = vunpack.c.l.b16 %v701
      %v2245 = vunpack.c.h.b16 %v701
      %v2246 = vunpack.c.l.b16 %v702
      %v2247 = vunpack.c.h.b16 %v702
      %v2248 = vunpack.c.l.b16 %v703
      %v2249 = vunpack.c.h.b16 %v703
      %v2250 = vunpack.c.l.b16 %v704
      %v2251 = vunpack.c.l.b16 %v705
      %v2252 = vunpack.c.h.b16 %v705
      %v2253 = vunpack.c.l.b16 %v706
      %v2254 = vunpack.c.h.b16 %v706
      %v2255 = vunpack.c.l.b16 %v707
      %v2256 = vunpack.c.h.b16 %v707
      %v2257 = vunpack.c.l.b16 %v708
      %v2258 = vunpack.c.h.b16 %v708
      %v2259 = vunpack.c.l.b16 %v709
      %v2260 = vunpack.c.l.b16 %v710
      %v2261 = vunpack.c.h.b16 %v710
      %v2262 = vunpack.c.l.b16 %v711
      %v2263 = vunpack.c.h.b16 %v711
      %v2264 = vunpack.c.l.b16 %v712
      %v2265 = vunpack.c.h.b16 %v712
      %v2266 = vunpack.c.l.b16 %v713
      %v2267 = vunpack.c.h.b16 %v713
      %v2268 = vunpack.c.l.b16 %v714
      %v2269 = vunpack.c.l.b16 %v715
      %v2270 = vunpack.c.h.b16 %v715
      %v2271 = vunpack.c.l.b16 %v716
      %v2272 = vunpack.c.h.b16 %v716
      %v2273 = vunpack.c.l.b16 %v717
      %v2274 = vunpack.c.h.b16 %v717
      %v2275 = vunpack.c.l.b16 %v718
      %v2276 = vunpack.c.h.b16 %v718
      %v2277 = vunpack.c.l.b16 %v719
      %v2278 = vunpack.c.l.b16 %v720
      %v2279 = vunpack.c.h.b16 %v720
      %v2280 = vunpack.c.l.b16 %v721
      %v2281 = vunpack.c.h.b16 %v721
      %v2282 = vunpack.c.l.b16 %v722
      %v2283 = vunpack.c.h.b16 %v722
      %v2284 = vunpack.c.l.b16 %v723
      %v2285 = vunpack.c.h.b16 %v723
      %v2286 = vunpack.c.l.b16 %v724
      %v2287 = vunpack.c.l.b16 %v725
      %v2288 = vunpack.c.h.b16 %v725
      %v2289 = vunpack.c.l.b16 %v726
      %v2290 = vunpack.c.h.b16 %v726
      %v2291 = vunpack.c.l.b16 %v727
      %v2292 = vunpack.c.h.b16 %v727
      %v2293 = vunpack.c.l.b16 %v728
      %v2294 = vunpack.c.h.b16 %v728
      %v2295 = vunpack.c.l.b16 %v729
      %v2296 = vunpack.c.l.b16 %v730
      %v2297 = vunpack.c.h.b16 %v730
      %v2298 = vunpack.c.l.b16 %v731
      %v2299 = vunpack.c.h.b16 %v731
      %v2300 = vunpack.c.l.b16 %v732
      %v2301 = vunpack.c.h.b16 %v732
      %v2302 = vunpack.c.l.b16 %v733
      %v2303 = vunpack.c.h.b16 %v733
      %v2304 = vunpack.c.l.b16 %v734
      %v2305 = vunpack.c.l.b16 %v735
      %v2306 = vunpack.c.h.b16 %v735
      %v2307 = vunpack.c.l.b16 %v736
      %v2308 = vunpack.c.h.b16 %v736
      %v2309 = vunpack.c.l.b16 %v737
      %v2310 = vunpack.c.h.b16 %v737
      %v2311 = vunpack.c.l.b16 %v738
      %v2312 = vunpack.c.h.b16 %v738
      %v2313 = vunpack.c.l.b16 %v739
      %v2314 = vunpack.c.l.b16 %v740
      %v2315 = vunpack.c.h.b16 %v740
      %v2316 = vunpack.c.l.b16 %v741
      %v2317 = vunpack.c.h.b16 %v741
      %v2318 = vunpack.c.l.b16 %v742
      %v2319 = vunpack.c.h.b16 %v742
      %v2320 = vunpack.c.l.b16 %v743
      %v2321 = vunpack.c.h.b16 %v743
      %v2322 = vunpack.c.l.b16 %v744
      %v2323 = vunpack.c.l.b16 %v745
      %v2324 = vunpack.c.h.b16 %v745
      %v2325 = vunpack.c.l.b16 %v746
      %v2326 = vunpack.c.h.b16 %v746
      %v2327 = vunpack.c.l.b16 %v747
      %v2328 = vunpack.c.h.b16 %v747
      %v2329 = vunpack.c.l.b16 %v748
      %v2330 = vunpack.c.h.b16 %v748
      %v2331 = vunpack.c.l.b16 %v749
      %v2332 = vunpack.c.l.b16 %v750
      %v2333 = vunpack.c.h.b16 %v750
      %v2334 = vunpack.c.l.b16 %v751
      %v2335 = vunpack.c.h.b16 %v751
      %v2336 = vunpack.c.l.b16 %v752
      %v2337 = vunpack.c.h.b16 %v752
      %v2338 = vunpack.c.l.b16 %v753
      %v2339 = vunpack.c.h.b16 %v753
      %v2340 = vunpack.c.l.b16 %v754
      %v2341 = vunpack.c.l.b16 %v755
      %v2342 = vunpack.c.h.b16 %v755
      %v2343 = vunpack.c.l.b16 %v756
      %v2344 = vunpack.c.h.b16 %v756
      %v2345 = vunpack.c.l.b16 %v757
      %v2346 = vunpack.c.h.b16 %v757
      %v2347 = vunpack.c.l.b16 %v758
      %v2348 = vunpack.c.h.b16 %v758
      %v2349 = vunpack.c.l.b16 %v759
      %v2350 = vunpack.c.l.b16 %v760
      %v2351 = vunpack.c.h.b16 %v760
      %v2352 = vunpack.c.l.b16 %v761
      %v2353 = vunpack.c.h.b16 %v761
      %v2354 = vunpack.c.l.b16 %v762
      %v2355 = vunpack.c.h.b16 %v762
      %v2356 = vunpack.c.l.b16 %v763
      %v2357 = vunpack.c.h.b16 %v763
      %v2358 = vunpack.c.l.b16 %v764
      %v2359 = vpack.c.b16 %v2215, %v2206
      %v2360 = vpack.c.b16 %v2216, %v2207
      %v2361 = vpack.c.b16 %v2217, %v2208
      %v2362 = vpack.c.b16 %v2218, %v2209
      %v2363 = vpack.c.b16 %v2219, %v2210
      %v2364 = vpack.c.b16 %v2220, %v2211
      %v2365 = vpack.c.b16 %v2221, %v2212
      %v2366 = vpack.c.b16 %v2222, %v2213
      %v2367 = vpack.c.b16 %v2223, %v2214
      %v2368 = vpack.c.b16 %v2233, %v2224
      %v2369 = vpack.c.b16 %v2234, %v2225
      %v2370 = vpack.c.b16 %v2235, %v2226
      %v2371 = vpack.c.b16 %v2236, %v2227
      %v2372 = vpack.c.b16 %v2237, %v2228
      %v2373 = vpack.c.b16 %v2238, %v2229
      %v2374 = vpack.c.b16 %v2239, %v2230
      %v2375 = vpack.c.b16 %v2240, %v2231
      %v2376 = vpack.c.b16 %v2241, %v2232
      %v2377 = vpack.c.b16 %v2251, %v2242
      %v2378 = vpack.c.b16 %v2252, %v2243
      %v2379 = vpack.c.b16 %v2253, %v2244
      %v2380 = vpack.c.b16 %v2254, %v2245
      %v2381 = vpack.c.b16 %v2255, %v2246
      %v2382 = vpack.c.b16 %v2256, %v2247
      %v2383 = vpack.c.b16 %v2257, %v2248
      %v2384 = vpack.c.b16 %v2258, %v2249
      %v2385 = vpack.c.b16 %v2259, %v2250
      %v2386 = vpack.c.b16 %v2269, %v2260
      %v2387 = vpack.c.b16 %v2270, %v2261
      %v2388 = vpack.c.b16 %v2271, %v2262
      %v2389 = vpack.c.b16 %v2272, %v2263
      %v2390 = vpack.c.b16 %v2273, %v2264
      %v2391 = vpack.c.b16 %v2274, %v2265
      %v2392 = vpack.c.b16 %v2275, %v2266
      %v2393 = vpack.c.b16 %v2276, %v2267
      %v2394 = vpack.c.b16 %v2277, %v2268
      %v2395 = vpack.c.b16 %v2287, %v2278
      %v2396 = vpack.c.b16 %v2288, %v2279
      %v2397 = vpack.c.b16 %v2289, %v2280
      %v2398 = vpack.c.b16 %v2290, %v2281
      %v2399 = vpack.c.b16 %v2291, %v2282
      %v2400 = vpack.c.b16 %v2292, %v2283
      %v2401 = vpack.c.b16 %v2293, %v2284
      %v2402 = vpack.c.b16 %v2294, %v2285
      %v2403 = vpack.c.b16 %v2295, %v2286
      %v2404 = vpack.c.b16 %v2305, %v2296
      %v2405 = vpack.c.b16 %v2306, %v2297
      %v2406 = vpack.c.b16 %v2307, %v2298
      %v2407 = vpack.c.b16 %v2308, %v2299
      %v2408 = vpack.c.b16 %v2309, %v2300
      %v2409 = vpack.c.b16 %v2310, %v2301
      %v2410 = vpack.c.b16 %v2311, %v2302
      %v2411 = vpack.c.b16 %v2312, %v2303
      %v2412 = vpack.c.b16 %v2313, %v2304
      %v2413 = vpack.c.b16 %v2323, %v2314
      %v2414 = vpack.c.b16 %v2324, %v2315
      %v2415 = vpack.c.b16 %v2325, %v2316
      %v2416 = vpack.c.b16 %v2326, %v2317
      %v2417 = vpack.c.b16 %v2327, %v2318
      %v2418 = vpack.c.b16 %v2328, %v2319
      %v2419 = vpack.c.b16 %v2329, %v2320
      %v2420 = vpack.c.b16 %v2330, %v2321
      %v2421 = vpack.c.b16 %v2331, %v2322
      %v2422 = vpack.c.b16 %v2341, %v2332
      %v2423 = vpack.c.b16 %v2342, %v2333
      %v2424 = vpack.c.b16 %v2343, %v2334
      %v2425 = vpack.c.b16 %v2344, %v2335
      %v2426 = vpack.c.b16 %v2345, %v2336
      %v2427 = vpack.c.b16 %v2346, %v2337
      %v2428 = vpack.c.b16 %v2347, %v2338
      %v2429 = vpack.c.b16 %v2348, %v2339
      %v2430 = vpack.c.b16 %v2349, %v2340
      %v2431 = vpack.c.b16 %v2350, %v2350
      %v2432 = vpack.c.b16 %v2351, %v2351
      %v2433 = vpack.c.b16 %v2352, %v2352
      %v2434 = vpack.c.b16 %v2353, %v2353
      %v2435 = vpack.c.b16 %v2354, %v2354
      %v2436 = vpack.c.b16 %v2355, %v2355
      %v2437 = vpack.c.b16 %v2356, %v2356
      %v2438 = vpack.c.b16 %v2357, %v2357
      %v2439 = vpack.c.b16 %v2358, %v2358
      %v2513 = vsel %vm1960, %v2120, 0
      %v2516 = vsel %vm1805, %v2431, 0
      %v2519 = vsel %vm1805, %v2432, 0
      %v2522 = vsel %vm1805, %v2433, 0
      %v2525 = vsel %vm1805, %v2434, 0
      %v2528 = vsel %vm1805, %v2435, 0
      %v2531 = vsel %vm1805, %v2436, 0
      %v2534 = vsel %vm1805, %v2437, 0
      %v2537 = vsel %vm1805, %v2438, 0
      %v2540 = vsel %vm1805, %v2439, 0
      %2542 = vmatpush.bf16.msra.mxu0 %v2422
      %2543 = vmatpush.bf16.msra.mxu0 %v2413
      %2544 = vmatpush.bf16.msra.mxu0 %v2404
      %2545 = vmatpush.bf16.msra.mxu0 %v2395
      %2546 = vmatpush.bf16.msra.mxu0 %v2386
      %2547 = vmatpush.bf16.msra.mxu0 %v2377
      %2548 = vmatpush.bf16.msra.mxu0 %v2368
      %2549 = vmatpush.bf16.msra.mxu0 %v2359
      %2550 = vmatmul.bf16.gmra.mxu0 %v2119
      %v2551 = vpop.f32.mrf.mxu0
      %v2552 = vadd.f32 0.0, %v2551
      %v2553 = vpop.f32.mrf.mxu0
      %2554 = vdwg.mxu0
      %2555 = vmatpush.bf16.msra.mxu0 0
      %2556 = vmatpush.bf16.msra.mxu0 0
      %2557 = vmatpush.bf16.msra.mxu0 0
      %2558 = vmatpush.bf16.msra.mxu0 0
      %2559 = vmatpush.bf16.msra.mxu0 0
      %2560 = vmatpush.bf16.msra.mxu0 0
      %2561 = vmatpush.bf16.msra.mxu0 0
      %2562 = vmatpush.bf16.msra.mxu0 %v2516
      %2563 = vmatmul.bf16.gmra.mxu0 %v2513
      %v2564 = vpop.f32.mrf.mxu0
      %v2565 = vadd.f32 %v2552, %v2564
      %v2566 = vpop.f32.mrf.mxu0
      %2567 = vdwg.mxu0
      %2568 = vmatpush.bf16.msra.mxu0 %v2423
      %2569 = vmatpush.bf16.msra.mxu0 %v2414
      %2570 = vmatpush.bf16.msra.mxu0 %v2405
      %2571 = vmatpush.bf16.msra.mxu0 %v2396
      %2572 = vmatpush.bf16.msra.mxu0 %v2387
      %2573 = vmatpush.bf16.msra.mxu0 %v2378
      %2574 = vmatpush.bf16.msra.mxu0 %v2369
      %2575 = vmatpush.bf16.msra.mxu0 %v2360
      %2576 = vmatmul.bf16.gmra.mxu0 %v2119
      %v2577 = vpop.f32.mrf.mxu0
      %v2578 = vadd.f32 0.0, %v2577
      %v2579 = vpop.f32.mrf.mxu0
      %2580 = vdwg.mxu0
      %2581 = vmatpush.bf16.msra.mxu0 0
      %2582 = vmatpush.bf16.msra.mxu0 0
      %2583 = vmatpush.bf16.msra.mxu0 0
      %2584 = vmatpush.bf16.msra.mxu0 0
      %2585 = vmatpush.bf16.msra.mxu0 0
      %2586 = vmatpush.bf16.msra.mxu0 0
      %2587 = vmatpush.bf16.msra.mxu0 0
      %2588 = vmatpush.bf16.msra.mxu0 %v2519
      %2589 = vmatmul.bf16.gmra.mxu0 %v2513
      %v2590 = vpop.f32.mrf.mxu0
      %v2591 = vadd.f32 %v2578, %v2590
      %v2592 = vpop.f32.mrf.mxu0
      %2593 = vdwg.mxu0
      %2594 = vmatpush.bf16.msra.mxu0 %v2424
      %2595 = vmatpush.bf16.msra.mxu0 %v2415
      %2596 = vmatpush.bf16.msra.mxu0 %v2406
      %2597 = vmatpush.bf16.msra.mxu0 %v2397
      %2598 = vmatpush.bf16.msra.mxu0 %v2388
      %2599 = vmatpush.bf16.msra.mxu0 %v2379
      %2600 = vmatpush.bf16.msra.mxu0 %v2370
      %2601 = vmatpush.bf16.msra.mxu0 %v2361
      %2602 = vmatmul.bf16.gmra.mxu0 %v2119
      %v2603 = vpop.f32.mrf.mxu0
      %v2604 = vadd.f32 0.0, %v2603
      %v2605 = vpop.f32.mrf.mxu0
      %2606 = vdwg.mxu0
      %2607 = vmatpush.bf16.msra.mxu0 0
      %2608 = vmatpush.bf16.msra.mxu0 0
      %2609 = vmatpush.bf16.msra.mxu0 0
      %2610 = vmatpush.bf16.msra.mxu0 0
      %2611 = vmatpush.bf16.msra.mxu0 0
      %2612 = vmatpush.bf16.msra.mxu0 0
      %2613 = vmatpush.bf16.msra.mxu0 0
      %2614 = vmatpush.bf16.msra.mxu0 %v2522
      %2615 = vmatmul.bf16.gmra.mxu0 %v2513
      %v2616 = vpop.f32.mrf.mxu0
      %v2617 = vadd.f32 %v2604, %v2616
      %v2618 = vpop.f32.mrf.mxu0
      %2619 = vdwg.mxu0
      %2620 = vmatpush.bf16.msra.mxu0 %v2425
      %2621 = vmatpush.bf16.msra.mxu0 %v2416
      %2622 = vmatpush.bf16.msra.mxu0 %v2407
      %2623 = vmatpush.bf16.msra.mxu0 %v2398
      %2624 = vmatpush.bf16.msra.mxu0 %v2389
      %2625 = vmatpush.bf16.msra.mxu0 %v2380
      %2626 = vmatpush.bf16.msra.mxu0 %v2371
      %2627 = vmatpush.bf16.msra.mxu0 %v2362
      %2628 = vmatmul.bf16.gmra.mxu0 %v2119
      %v2629 = vpop.f32.mrf.mxu0
      %v2630 = vadd.f32 0.0, %v2629
      %v2631 = vpop.f32.mrf.mxu0
      %2632 = vdwg.mxu0
      %2633 = vmatpush.bf16.msra.mxu0 0
      %2634 = vmatpush.bf16.msra.mxu0 0
      %2635 = vmatpush.bf16.msra.mxu0 0
      %2636 = vmatpush.bf16.msra.mxu0 0
      %2637 = vmatpush.bf16.msra.mxu0 0
      %2638 = vmatpush.bf16.msra.mxu0 0
      %2639 = vmatpush.bf16.msra.mxu0 0
      %2640 = vmatpush.bf16.msra.mxu0 %v2525
      %2641 = vmatmul.bf16.gmra.mxu0 %v2513
      %v2642 = vpop.f32.mrf.mxu0
      %v2643 = vadd.f32 %v2630, %v2642
      %v2644 = vpop.f32.mrf.mxu0
      %2645 = vdwg.mxu0
      %2646 = vmatpush.bf16.msra.mxu0 %v2426
      %2647 = vmatpush.bf16.msra.mxu0 %v2417
      %2648 = vmatpush.bf16.msra.mxu0 %v2408
      %2649 = vmatpush.bf16.msra.mxu0 %v2399
      %2650 = vmatpush.bf16.msra.mxu0 %v2390
      %2651 = vmatpush.bf16.msra.mxu0 %v2381
      %2652 = vmatpush.bf16.msra.mxu0 %v2372
      %2653 = vmatpush.bf16.msra.mxu0 %v2363
      %2654 = vmatmul.bf16.gmra.mxu0 %v2119
      %v2655 = vpop.f32.mrf.mxu0
      %v2656 = vadd.f32 0.0, %v2655
      %v2657 = vpop.f32.mrf.mxu0
      %2658 = vdwg.mxu0
      %2659 = vmatpush.bf16.msra.mxu0 0
      %2660 = vmatpush.bf16.msra.mxu0 0
      %2661 = vmatpush.bf16.msra.mxu0 0
      %2662 = vmatpush.bf16.msra.mxu0 0
      %2663 = vmatpush.bf16.msra.mxu0 0
      %2664 = vmatpush.bf16.msra.mxu0 0
      %2665 = vmatpush.bf16.msra.mxu0 0
      %2666 = vmatpush.bf16.msra.mxu0 %v2528
      %2667 = vmatmul.bf16.gmra.mxu0 %v2513
      %v2668 = vpop.f32.mrf.mxu0
      %v2669 = vadd.f32 %v2656, %v2668
      %v2670 = vpop.f32.mrf.mxu0
      %2671 = vdwg.mxu0
      %2672 = vmatpush.bf16.msra.mxu0 %v2427
      %2673 = vmatpush.bf16.msra.mxu0 %v2418
      %2674 = vmatpush.bf16.msra.mxu0 %v2409
      %2675 = vmatpush.bf16.msra.mxu0 %v2400
      %2676 = vmatpush.bf16.msra.mxu0 %v2391
      %2677 = vmatpush.bf16.msra.mxu0 %v2382
      %2678 = vmatpush.bf16.msra.mxu0 %v2373
      %2679 = vmatpush.bf16.msra.mxu0 %v2364
      %2680 = vmatmul.bf16.gmra.mxu0 %v2119
      %v2681 = vpop.f32.mrf.mxu0
      %v2682 = vadd.f32 0.0, %v2681
      %v2683 = vpop.f32.mrf.mxu0
      %2684 = vdwg.mxu0
      %2685 = vmatpush.bf16.msra.mxu0 0
      %2686 = vmatpush.bf16.msra.mxu0 0
      %2687 = vmatpush.bf16.msra.mxu0 0
      %2688 = vmatpush.bf16.msra.mxu0 0
      %2689 = vmatpush.bf16.msra.mxu0 0
      %2690 = vmatpush.bf16.msra.mxu0 0
      %2691 = vmatpush.bf16.msra.mxu0 0
      %2692 = vmatpush.bf16.msra.mxu0 %v2531
      %2693 = vmatmul.bf16.gmra.mxu0 %v2513
      %v2694 = vpop.f32.mrf.mxu0
      %v2695 = vadd.f32 %v2682, %v2694
      %v2696 = vpop.f32.mrf.mxu0
      %2697 = vdwg.mxu0
      %2698 = vmatpush.bf16.msra.mxu0 %v2428
      %2699 = vmatpush.bf16.msra.mxu0 %v2419
      %2700 = vmatpush.bf16.msra.mxu0 %v2410
      %2701 = vmatpush.bf16.msra.mxu0 %v2401
      %2702 = vmatpush.bf16.msra.mxu0 %v2392
      %2703 = vmatpush.bf16.msra.mxu0 %v2383
      %2704 = vmatpush.bf16.msra.mxu0 %v2374
      %2705 = vmatpush.bf16.msra.mxu0 %v2365
      %2706 = vmatmul.bf16.gmra.mxu0 %v2119
      %v2707 = vpop.f32.mrf.mxu0
      %v2708 = vadd.f32 0.0, %v2707
      %v2709 = vpop.f32.mrf.mxu0
      %2710 = vdwg.mxu0
      %2711 = vmatpush.bf16.msra.mxu0 0
      %2712 = vmatpush.bf16.msra.mxu0 0
      %2713 = vmatpush.bf16.msra.mxu0 0
      %2714 = vmatpush.bf16.msra.mxu0 0
      %2715 = vmatpush.bf16.msra.mxu0 0
      %2716 = vmatpush.bf16.msra.mxu0 0
      %2717 = vmatpush.bf16.msra.mxu0 0
      %2718 = vmatpush.bf16.msra.mxu0 %v2534
      %2719 = vmatmul.bf16.gmra.mxu0 %v2513
      %v2720 = vpop.f32.mrf.mxu0
      %v2721 = vadd.f32 %v2708, %v2720
      %v2722 = vpop.f32.mrf.mxu0
      %2723 = vdwg.mxu0
      %2724 = vmatpush.bf16.msra.mxu0 %v2429
      %2725 = vmatpush.bf16.msra.mxu0 %v2420
      %2726 = vmatpush.bf16.msra.mxu0 %v2411
      %2727 = vmatpush.bf16.msra.mxu0 %v2402
      %2728 = vmatpush.bf16.msra.mxu0 %v2393
      %2729 = vmatpush.bf16.msra.mxu0 %v2384
      %2730 = vmatpush.bf16.msra.mxu0 %v2375
      %2731 = vmatpush.bf16.msra.mxu0 %v2366
      %2732 = vmatmul.bf16.gmra.mxu0 %v2119
      %v2733 = vpop.f32.mrf.mxu0
      %v2734 = vadd.f32 0.0, %v2733
      %v2735 = vpop.f32.mrf.mxu0
      %2736 = vdwg.mxu0
      %2737 = vmatpush.bf16.msra.mxu0 0
      %2738 = vmatpush.bf16.msra.mxu0 0
      %2739 = vmatpush.bf16.msra.mxu0 0
      %2740 = vmatpush.bf16.msra.mxu0 0
      %2741 = vmatpush.bf16.msra.mxu0 0
      %2742 = vmatpush.bf16.msra.mxu0 0
      %2743 = vmatpush.bf16.msra.mxu0 0
      %2744 = vmatpush.bf16.msra.mxu0 %v2537
      %2745 = vmatmul.bf16.gmra.mxu0 %v2513
      %v2746 = vpop.f32.mrf.mxu0
      %v2747 = vadd.f32 %v2734, %v2746
      %v2748 = vpop.f32.mrf.mxu0
      %2749 = vdwg.mxu0
      %2750 = vmatpush.bf16.msra.mxu0 %v2430
      %2751 = vmatpush.bf16.msra.mxu0 %v2421
      %2752 = vmatpush.bf16.msra.mxu0 %v2412
      %2753 = vmatpush.bf16.msra.mxu0 %v2403
      %2754 = vmatpush.bf16.msra.mxu0 %v2394
      %2755 = vmatpush.bf16.msra.mxu0 %v2385
      %2756 = vmatpush.bf16.msra.mxu0 %v2376
      %2757 = vmatpush.bf16.msra.mxu0 %v2367
      %2758 = vmatmul.bf16.gmra.mxu0 %v2119
      %v2759 = vpop.f32.mrf.mxu0
      %v2760 = vadd.f32 0.0, %v2759
      %v2761 = vpop.f32.mrf.mxu0
      %2762 = vdwg.mxu0
      %2763 = vmatpush.bf16.msra.mxu0 0
      %2764 = vmatpush.bf16.msra.mxu0 0
      %2765 = vmatpush.bf16.msra.mxu0 0
      %2766 = vmatpush.bf16.msra.mxu0 0
      %2767 = vmatpush.bf16.msra.mxu0 0
      %2768 = vmatpush.bf16.msra.mxu0 0
      %2769 = vmatpush.bf16.msra.mxu0 0
      %2770 = vmatpush.bf16.msra.mxu0 %v2540
      %2771 = vmatmul.bf16.gmra.mxu0 %v2513
      %v2772 = vpop.f32.mrf.mxu0
      %v2773 = vadd.f32 %v2760, %v2772
      %v2774 = vpop.f32.mrf.mxu0
      %2775 = vdwg.mxu0
      %v2776 = vadd.f32 %v2110, %v2565
      %v2777 = vadd.f32 %v2111, %v2591
      %v2778 = vadd.f32 %v2112, %v2617
      %v2779 = vadd.f32 %v2113, %v2643
      %v2780 = vadd.f32 %v2114, %v2669
      %v2781 = vadd.f32 %v2115, %v2695
      %v2782 = vadd.f32 %v2116, %v2721
      %v2783 = vadd.f32 %v2117, %v2747
      %v2784 = vadd.f32 %v2118, %v2773
      %2785 = vst [vmem:[%s11] sm:$0xff] %v2776
      %2786 = vst [vmem:[%s11 + $0x8] sm:$0xff] %v2777
      %2787 = vst [vmem:[%s11 + $0x10] sm:$0xff] %v2778
      %2788 = vst [vmem:[%s11 + $0x18] sm:$0xff] %v2779
      %2789 = vst [vmem:[%s11 + $0x20] sm:$0xff] %v2780
      %2790 = vst [vmem:[%s11 + $0x28] sm:$0xff] %v2781
      %2791 = vst [vmem:[%s11 + $0x30] sm:$0xff] %v2782
      %2792 = vst [vmem:[%s11 + $0x38] sm:$0xff] %v2783
      %2793 = vst.msk [vmem:[%s11 + $0x40] sm:$0xff] %vm1458, %v2784
      %s2794 = scalar_lea.vmem %s0, 72
      %v2795 = vld [vmem:[%s2794] sm:$0xff]
      %v2796 = vld [vmem:[%s2794 + $0x8] sm:$0xff]
      %v2797 = vld [vmem:[%s2794 + $0x10] sm:$0xff]
      %v2798 = vld [vmem:[%s2794 + $0x18] sm:$0xff]
      %v2799 = vld [vmem:[%s2794 + $0x20] sm:$0xff]
      %v2800 = vld [vmem:[%s2794 + $0x28] sm:$0xff]
      %v2801 = vld [vmem:[%s2794 + $0x30] sm:$0xff]
      %v2802 = vld [vmem:[%s2794 + $0x38] sm:$0xff]
      %v2803 = vld [vmem:[%s2794 + $0x40] sm:$0xff]
      %v2804 = vpack.c.bf16 %v2795, %v2795
      %v2805 = vpack.c.bf16 %v2796, %v2796
      %v2806 = vpack.c.bf16 %v2797, %v2797
      %v2807 = vpack.c.bf16 %v2798, %v2798
      %v2808 = vpack.c.bf16 %v2799, %v2799
      %v2809 = vpack.c.bf16 %v2800, %v2800
      %v2810 = vpack.c.bf16 %v2801, %v2801
      %v2811 = vpack.c.bf16 %v2802, %v2802
      %v2812 = vpack.c.bf16 %v2803, %v2803
      %v2814 = vsel %vm1458, %v2812, 0
      %2816 = vmatpush.bf16.msra.mxu0 %v1204
      %2817 = vmatpush.bf16.msra.mxu0 %v1202
      %2818 = vmatpush.bf16.msra.mxu0 %v1200
      %2819 = vmatpush.bf16.msra.mxu0 %v1198
      %2820 = vmatpush.bf16.msra.mxu0 %v1196
      %2821 = vmatpush.bf16.msra.mxu0 %v1194
      %2822 = vmatpush.bf16.msra.mxu0 %v1192
      %2823 = vmatpush.bf16.msra.mxu0 %v1190
      %2824 = vmatmul.bf16.gmra.mxu0 %v2804
      %v2825 = vpop.f32.mrf.mxu0
      %v2826 = vadd.f32 %v784, %v2825
      %v2827 = vpop.f32.mrf.mxu0
      %2828 = vdwg.mxu0
      %2829 = vmatpush.bf16.msra.mxu0 %v1220
      %2830 = vmatpush.bf16.msra.mxu0 %v1218
      %2831 = vmatpush.bf16.msra.mxu0 %v1216
      %2832 = vmatpush.bf16.msra.mxu0 %v1214
      %2833 = vmatpush.bf16.msra.mxu0 %v1212
      %2834 = vmatpush.bf16.msra.mxu0 %v1210
      %2835 = vmatpush.bf16.msra.mxu0 %v1208
      %2836 = vmatpush.bf16.msra.mxu0 %v1206
      %2837 = vmatmul.bf16.gmra.mxu0 %v2805
      %v2838 = vpop.f32.mrf.mxu0
      %v2839 = vadd.f32 %v2826, %v2838
      %v2840 = vpop.f32.mrf.mxu0
      %2841 = vdwg.mxu0
      %2842 = vmatpush.bf16.msra.mxu0 %v1236
      %2843 = vmatpush.bf16.msra.mxu0 %v1234
      %2844 = vmatpush.bf16.msra.mxu0 %v1232
      %2845 = vmatpush.bf16.msra.mxu0 %v1230
      %2846 = vmatpush.bf16.msra.mxu0 %v1228
      %2847 = vmatpush.bf16.msra.mxu0 %v1226
      %2848 = vmatpush.bf16.msra.mxu0 %v1224
      %2849 = vmatpush.bf16.msra.mxu0 %v1222
      %2850 = vmatmul.bf16.gmra.mxu0 %v2806
      %v2851 = vpop.f32.mrf.mxu0
      %v2852 = vadd.f32 %v2839, %v2851
      %v2853 = vpop.f32.mrf.mxu0
      %2854 = vdwg.mxu0
      %2855 = vmatpush.bf16.msra.mxu0 %v1252
      %2856 = vmatpush.bf16.msra.mxu0 %v1250
      %2857 = vmatpush.bf16.msra.mxu0 %v1248
      %2858 = vmatpush.bf16.msra.mxu0 %v1246
      %2859 = vmatpush.bf16.msra.mxu0 %v1244
      %2860 = vmatpush.bf16.msra.mxu0 %v1242
      %2861 = vmatpush.bf16.msra.mxu0 %v1240
      %2862 = vmatpush.bf16.msra.mxu0 %v1238
      %2863 = vmatmul.bf16.gmra.mxu0 %v2807
      %v2864 = vpop.f32.mrf.mxu0
      %v2865 = vadd.f32 %v2852, %v2864
      %v2866 = vpop.f32.mrf.mxu0
      %2867 = vdwg.mxu0
      %2868 = vmatpush.bf16.msra.mxu0 %v1268
      %2869 = vmatpush.bf16.msra.mxu0 %v1266
      %2870 = vmatpush.bf16.msra.mxu0 %v1264
      %2871 = vmatpush.bf16.msra.mxu0 %v1262
      %2872 = vmatpush.bf16.msra.mxu0 %v1260
      %2873 = vmatpush.bf16.msra.mxu0 %v1258
      %2874 = vmatpush.bf16.msra.mxu0 %v1256
      %2875 = vmatpush.bf16.msra.mxu0 %v1254
      %2876 = vmatmul.bf16.gmra.mxu0 %v2808
      %v2877 = vpop.f32.mrf.mxu0
      %v2878 = vadd.f32 %v2865, %v2877
      %v2879 = vpop.f32.mrf.mxu0
      %2880 = vdwg.mxu0
      %2881 = vmatpush.bf16.msra.mxu0 %v1284
      %2882 = vmatpush.bf16.msra.mxu0 %v1282
      %2883 = vmatpush.bf16.msra.mxu0 %v1280
      %2884 = vmatpush.bf16.msra.mxu0 %v1278
      %2885 = vmatpush.bf16.msra.mxu0 %v1276
      %2886 = vmatpush.bf16.msra.mxu0 %v1274
      %2887 = vmatpush.bf16.msra.mxu0 %v1272
      %2888 = vmatpush.bf16.msra.mxu0 %v1270
      %2889 = vmatmul.bf16.gmra.mxu0 %v2809
      %v2890 = vpop.f32.mrf.mxu0
      %v2891 = vadd.f32 %v2878, %v2890
      %v2892 = vpop.f32.mrf.mxu0
      %2893 = vdwg.mxu0
      %2894 = vmatpush.bf16.msra.mxu0 %v1300
      %2895 = vmatpush.bf16.msra.mxu0 %v1298
      %2896 = vmatpush.bf16.msra.mxu0 %v1296
      %2897 = vmatpush.bf16.msra.mxu0 %v1294
      %2898 = vmatpush.bf16.msra.mxu0 %v1292
      %2899 = vmatpush.bf16.msra.mxu0 %v1290
      %2900 = vmatpush.bf16.msra.mxu0 %v1288
      %2901 = vmatpush.bf16.msra.mxu0 %v1286
      %2902 = vmatmul.bf16.gmra.mxu0 %v2810
      %v2903 = vpop.f32.mrf.mxu0
      %v2904 = vadd.f32 %v2891, %v2903
      %v2905 = vpop.f32.mrf.mxu0
      %2906 = vdwg.mxu0
      %2907 = vmatpush.bf16.msra.mxu0 %v1316
      %2908 = vmatpush.bf16.msra.mxu0 %v1314
      %2909 = vmatpush.bf16.msra.mxu0 %v1312
      %2910 = vmatpush.bf16.msra.mxu0 %v1310
      %2911 = vmatpush.bf16.msra.mxu0 %v1308
      %2912 = vmatpush.bf16.msra.mxu0 %v1306
      %2913 = vmatpush.bf16.msra.mxu0 %v1304
      %2914 = vmatpush.bf16.msra.mxu0 %v1302
      %2915 = vmatmul.bf16.gmra.mxu0 %v2811
      %v2916 = vpop.f32.mrf.mxu0
      %v2917 = vadd.f32 %v2904, %v2916
      %v2918 = vpop.f32.mrf.mxu0
      %2919 = vdwg.mxu0
      %2920 = vmatpush.bf16.msra.mxu0 0
      %2921 = vmatpush.bf16.msra.mxu0 0
      %2922 = vmatpush.bf16.msra.mxu0 0
      %2923 = vmatpush.bf16.msra.mxu0 0
      %2924 = vmatpush.bf16.msra.mxu0 0
      %2925 = vmatpush.bf16.msra.mxu0 %v1322
      %2926 = vmatpush.bf16.msra.mxu0 %v1320
      %2927 = vmatpush.bf16.msra.mxu0 %v1318
      %2928 = vmatmul.bf16.gmra.mxu0 %v2814
      %v2929 = vpop.f32.mrf.mxu0
      %v2930 = vadd.f32 %v2917, %v2929
      %v2931 = vpop.f32.mrf.mxu0
      %2932 = vdwg.mxu0
      %2933 = vmatpush.bf16.msra.mxu0 %v1205
      %2934 = vmatpush.bf16.msra.mxu0 %v1203
      %2935 = vmatpush.bf16.msra.mxu0 %v1201
      %2936 = vmatpush.bf16.msra.mxu0 %v1199
      %2937 = vmatpush.bf16.msra.mxu0 %v1197
      %2938 = vmatpush.bf16.msra.mxu0 %v1195
      %2939 = vmatpush.bf16.msra.mxu0 %v1193
      %2940 = vmatpush.bf16.msra.mxu0 %v1191
      %2941 = vmatmul.bf16.gmra.mxu0 %v2804
      %v2942 = vpop.f32.mrf.mxu0
      %v2943 = vadd.f32 %v785, %v2942
      %v2944 = vpop.f32.mrf.mxu0
      %2945 = vdwg.mxu0
      %2946 = vmatpush.bf16.msra.mxu0 %v1221
      %2947 = vmatpush.bf16.msra.mxu0 %v1219
      %2948 = vmatpush.bf16.msra.mxu0 %v1217
      %2949 = vmatpush.bf16.msra.mxu0 %v1215
      %2950 = vmatpush.bf16.msra.mxu0 %v1213
      %2951 = vmatpush.bf16.msra.mxu0 %v1211
      %2952 = vmatpush.bf16.msra.mxu0 %v1209
      %2953 = vmatpush.bf16.msra.mxu0 %v1207
      %2954 = vmatmul.bf16.gmra.mxu0 %v2805
      %v2955 = vpop.f32.mrf.mxu0
      %v2956 = vadd.f32 %v2943, %v2955
      %v2957 = vpop.f32.mrf.mxu0
      %2958 = vdwg.mxu0
      %2959 = vmatpush.bf16.msra.mxu0 %v1237
      %2960 = vmatpush.bf16.msra.mxu0 %v1235
      %2961 = vmatpush.bf16.msra.mxu0 %v1233
      %2962 = vmatpush.bf16.msra.mxu0 %v1231
      %2963 = vmatpush.bf16.msra.mxu0 %v1229
      %2964 = vmatpush.bf16.msra.mxu0 %v1227
      %2965 = vmatpush.bf16.msra.mxu0 %v1225
      %2966 = vmatpush.bf16.msra.mxu0 %v1223
      %2967 = vmatmul.bf16.gmra.mxu0 %v2806
      %v2968 = vpop.f32.mrf.mxu0
      %v2969 = vadd.f32 %v2956, %v2968
      %v2970 = vpop.f32.mrf.mxu0
      %2971 = vdwg.mxu0
      %2972 = vmatpush.bf16.msra.mxu0 %v1253
      %2973 = vmatpush.bf16.msra.mxu0 %v1251
      %2974 = vmatpush.bf16.msra.mxu0 %v1249
      %2975 = vmatpush.bf16.msra.mxu0 %v1247
      %2976 = vmatpush.bf16.msra.mxu0 %v1245
      %2977 = vmatpush.bf16.msra.mxu0 %v1243
      %2978 = vmatpush.bf16.msra.mxu0 %v1241
      %2979 = vmatpush.bf16.msra.mxu0 %v1239
      %2980 = vmatmul.bf16.gmra.mxu0 %v2807
      %v2981 = vpop.f32.mrf.mxu0
      %v2982 = vadd.f32 %v2969, %v2981
      %v2983 = vpop.f32.mrf.mxu0
      %2984 = vdwg.mxu0
      %2985 = vmatpush.bf16.msra.mxu0 %v1269
      %2986 = vmatpush.bf16.msra.mxu0 %v1267
      %2987 = vmatpush.bf16.msra.mxu0 %v1265
      %2988 = vmatpush.bf16.msra.mxu0 %v1263
      %2989 = vmatpush.bf16.msra.mxu0 %v1261
      %2990 = vmatpush.bf16.msra.mxu0 %v1259
      %2991 = vmatpush.bf16.msra.mxu0 %v1257
      %2992 = vmatpush.bf16.msra.mxu0 %v1255
      %2993 = vmatmul.bf16.gmra.mxu0 %v2808
      %v2994 = vpop.f32.mrf.mxu0
      %v2995 = vadd.f32 %v2982, %v2994
      %v2996 = vpop.f32.mrf.mxu0
      %2997 = vdwg.mxu0
      %2998 = vmatpush.bf16.msra.mxu0 %v1285
      %2999 = vmatpush.bf16.msra.mxu0 %v1283
      %3000 = vmatpush.bf16.msra.mxu0 %v1281
      %3001 = vmatpush.bf16.msra.mxu0 %v1279
      %3002 = vmatpush.bf16.msra.mxu0 %v1277
      %3003 = vmatpush.bf16.msra.mxu0 %v1275
      %3004 = vmatpush.bf16.msra.mxu0 %v1273
      %3005 = vmatpush.bf16.msra.mxu0 %v1271
      %3006 = vmatmul.bf16.gmra.mxu0 %v2809
      %v3007 = vpop.f32.mrf.mxu0
      %v3008 = vadd.f32 %v2995, %v3007
      %v3009 = vpop.f32.mrf.mxu0
      %3010 = vdwg.mxu0
      %3011 = vmatpush.bf16.msra.mxu0 %v1301
      %3012 = vmatpush.bf16.msra.mxu0 %v1299
      %3013 = vmatpush.bf16.msra.mxu0 %v1297
      %3014 = vmatpush.bf16.msra.mxu0 %v1295
      %3015 = vmatpush.bf16.msra.mxu0 %v1293
      %3016 = vmatpush.bf16.msra.mxu0 %v1291
      %3017 = vmatpush.bf16.msra.mxu0 %v1289
      %3018 = vmatpush.bf16.msra.mxu0 %v1287
      %3019 = vmatmul.bf16.gmra.mxu0 %v2810
      %v3020 = vpop.f32.mrf.mxu0
      %v3021 = vadd.f32 %v3008, %v3020
      %v3022 = vpop.f32.mrf.mxu0
      %3023 = vdwg.mxu0
      %3024 = vmatpush.bf16.msra.mxu0 %v1317
      %3025 = vmatpush.bf16.msra.mxu0 %v1315
      %3026 = vmatpush.bf16.msra.mxu0 %v1313
      %3027 = vmatpush.bf16.msra.mxu0 %v1311
      %3028 = vmatpush.bf16.msra.mxu0 %v1309
      %3029 = vmatpush.bf16.msra.mxu0 %v1307
      %3030 = vmatpush.bf16.msra.mxu0 %v1305
      %3031 = vmatpush.bf16.msra.mxu0 %v1303
      %3032 = vmatmul.bf16.gmra.mxu0 %v2811
      %v3033 = vpop.f32.mrf.mxu0
      %v3034 = vadd.f32 %v3021, %v3033
      %v3035 = vpop.f32.mrf.mxu0
      %3036 = vdwg.mxu0
      %3037 = vmatpush.bf16.msra.mxu0 0
      %3038 = vmatpush.bf16.msra.mxu0 0
      %3039 = vmatpush.bf16.msra.mxu0 0
      %3040 = vmatpush.bf16.msra.mxu0 0
      %3041 = vmatpush.bf16.msra.mxu0 0
      %3042 = vmatpush.bf16.msra.mxu0 %v1323
      %3043 = vmatpush.bf16.msra.mxu0 %v1321
      %3044 = vmatpush.bf16.msra.mxu0 %v1319
      %3045 = vmatmul.bf16.gmra.mxu0 %v2814
      %v3046 = vpop.f32.mrf.mxu0
      %v3047 = vadd.f32 %v3034, %v3046
      %v3048 = vpop.f32.mrf.mxu0
      %3049 = vdwg.mxu0
      %s3050 = scalar_lea.vmem %s1, 16
      %v3051 = vld [vmem:[%s3050] sm:$0xff]
      %v3052 = vld [vmem:[%s3050 + $0x8] sm:$0xff]
      %v3053 = vpack.c.bf16 %v3051, %v3051
      %v3054 = vpack.c.bf16 %v3052, %v3052
      %v3056 = vsel %vm1800, %v3054, 0
      %3058 = vmatpush.bf16.msra.mxu0 %v1776
      %3059 = vmatpush.bf16.msra.mxu0 %v1774
      %3060 = vmatpush.bf16.msra.mxu0 %v1772
      %3061 = vmatpush.bf16.msra.mxu0 %v1770
      %3062 = vmatpush.bf16.msra.mxu0 %v1768
      %3063 = vmatpush.bf16.msra.mxu0 %v1766
      %3064 = vmatpush.bf16.msra.mxu0 %v1764
      %3065 = vmatpush.bf16.msra.mxu0 %v1762
      %3066 = vmatmul.bf16.gmra.mxu0 %v3053
      %v3067 = vpop.f32.mrf.mxu0
      %v3068 = vadd.f32 %v1701, %v3067
      %v3069 = vpop.f32.mrf.mxu0
      %3070 = vdwg.mxu0
      %3071 = vmatpush.bf16.msra.mxu0 0
      %3072 = vmatpush.bf16.msra.mxu0 0
      %3073 = vmatpush.bf16.msra.mxu0 0
      %3074 = vmatpush.bf16.msra.mxu0 0
      %3075 = vmatpush.bf16.msra.mxu0 0
      %3076 = vmatpush.bf16.msra.mxu0 0
      %3077 = vmatpush.bf16.msra.mxu0 %v1809
      %3078 = vmatpush.bf16.msra.mxu0 %v1778
      %3079 = vmatmul.bf16.gmra.mxu0 %v3056
      %v3080 = vpop.f32.mrf.mxu0
      %v3081 = vadd.f32 %v3068, %v3080
      %v3082 = vpop.f32.mrf.mxu0
      %3083 = vdwg.mxu0
      %3084 = vmatpush.bf16.msra.mxu0 %v1777
      %3085 = vmatpush.bf16.msra.mxu0 %v1775
      %3086 = vmatpush.bf16.msra.mxu0 %v1773
      %3087 = vmatpush.bf16.msra.mxu0 %v1771
      %3088 = vmatpush.bf16.msra.mxu0 %v1769
      %3089 = vmatpush.bf16.msra.mxu0 %v1767
      %3090 = vmatpush.bf16.msra.mxu0 %v1765
      %3091 = vmatpush.bf16.msra.mxu0 %v1763
      %3092 = vmatmul.bf16.gmra.mxu0 %v3053
      %v3093 = vpop.f32.mrf.mxu0
      %v3094 = vadd.f32 %v1702, %v3093
      %v3095 = vpop.f32.mrf.mxu0
      %3096 = vdwg.mxu0
      %3097 = vmatpush.bf16.msra.mxu0 0
      %3098 = vmatpush.bf16.msra.mxu0 0
      %3099 = vmatpush.bf16.msra.mxu0 0
      %3100 = vmatpush.bf16.msra.mxu0 0
      %3101 = vmatpush.bf16.msra.mxu0 0
      %3102 = vmatpush.bf16.msra.mxu0 0
      %3103 = vmatpush.bf16.msra.mxu0 %v1812
      %3104 = vmatpush.bf16.msra.mxu0 %v1779
      %3105 = vmatmul.bf16.gmra.mxu0 %v3056
      %v3106 = vpop.f32.mrf.mxu0
      %v3107 = vadd.f32 %v3094, %v3106
      %v3108 = vpop.f32.mrf.mxu0
      %3109 = vdwg.mxu0
      %s3110 = scalar_lea.vmem %s2, 16
      %v3111 = vld [vmem:[%s3110] sm:$0xff]
      %v3112 = vld [vmem:[%s3110 + $0x8] sm:$0xff]
      %v3113 = vpack.c.bf16 %v3111, %v3111
      %v3114 = vpack.c.bf16 %v3112, %v3112
      %v3116 = vsel %vm1960, %v3114, 0
      %3118 = vmatpush.bf16.msra.mxu0 %v1940
      %3119 = vmatpush.bf16.msra.mxu0 %v1938
      %3120 = vmatpush.bf16.msra.mxu0 %v1936
      %3121 = vmatpush.bf16.msra.mxu0 %v1934
      %3122 = vmatpush.bf16.msra.mxu0 %v1932
      %3123 = vmatpush.bf16.msra.mxu0 %v1930
      %3124 = vmatpush.bf16.msra.mxu0 %v1928
      %3125 = vmatpush.bf16.msra.mxu0 %v1926
      %3126 = vmatmul.bf16.gmra.mxu0 %v3113
      %v3127 = vpop.f32.mrf.mxu0
      %v3128 = vadd.f32 %v1871, %v3127
      %v3129 = vpop.f32.mrf.mxu0
      %3130 = vdwg.mxu0
      %3131 = vmatpush.bf16.msra.mxu0 0
      %3132 = vmatpush.bf16.msra.mxu0 0
      %3133 = vmatpush.bf16.msra.mxu0 0
      %3134 = vmatpush.bf16.msra.mxu0 0
      %3135 = vmatpush.bf16.msra.mxu0 0
      %3136 = vmatpush.bf16.msra.mxu0 0
      %3137 = vmatpush.bf16.msra.mxu0 0
      %3138 = vmatpush.bf16.msra.mxu0 %v1965
      %3139 = vmatmul.bf16.gmra.mxu0 %v3116
      %v3140 = vpop.f32.mrf.mxu0
      %v3141 = vadd.f32 %v3128, %v3140
      %v3142 = vpop.f32.mrf.mxu0
      %3143 = vdwg.mxu0
      %3144 = vmatpush.bf16.msra.mxu0 %v1941
      %3145 = vmatpush.bf16.msra.mxu0 %v1939
      %3146 = vmatpush.bf16.msra.mxu0 %v1937
      %3147 = vmatpush.bf16.msra.mxu0 %v1935
      %3148 = vmatpush.bf16.msra.mxu0 %v1933
      %3149 = vmatpush.bf16.msra.mxu0 %v1931
      %3150 = vmatpush.bf16.msra.mxu0 %v1929
      %3151 = vmatpush.bf16.msra.mxu0 %v1927
      %3152 = vmatmul.bf16.gmra.mxu0 %v3113
      %v3153 = vpop.f32.mrf.mxu0
      %v3154 = vadd.f32 %v1872, %v3153
      %v3155 = vpop.f32.mrf.mxu0
      %3156 = vdwg.mxu0
      %3157 = vmatpush.bf16.msra.mxu0 0
      %3158 = vmatpush.bf16.msra.mxu0 0
      %3159 = vmatpush.bf16.msra.mxu0 0
      %3160 = vmatpush.bf16.msra.mxu0 0
      %3161 = vmatpush.bf16.msra.mxu0 0
      %3162 = vmatpush.bf16.msra.mxu0 0
      %3163 = vmatpush.bf16.msra.mxu0 0
      %3164 = vmatpush.bf16.msra.mxu0 %v1968
      %3165 = vmatmul.bf16.gmra.mxu0 %v3116
      %v3166 = vpop.f32.mrf.mxu0
      %v3167 = vadd.f32 %v3154, %v3166
      %v3168 = vpop.f32.mrf.mxu0
      %3169 = vdwg.mxu0
      %v3170 = vpack.c.bf16 %v2930, %v2930
      %v3171 = vpack.c.bf16 %v3047, %v3047
      %v3172 = vpack.c.bf16 %v3081, %v3081
      %v3173 = vpack.c.bf16 %v3107, %v3107
      %v3175 = vsel %vm1960, %v3171, 0
      %v3178 = vsel %vm1960, %v3173, 0
      %3180 = vmatpush.bf16.xpose.msra.mxu0 0
      %3181 = vmatpush.bf16.xpose.msra.mxu0 0
      %3182 = vmatpush.bf16.xpose.msra.mxu0 0
      %3183 = vmatpush.bf16.xpose.msra.mxu0 0
      %3184 = vmatpush.bf16.xpose.msra.mxu0 0
      %3185 = vmatpush.bf16.xpose.msra.mxu0 0
      %3186 = vmatpush.bf16.xpose.msra.mxu0 0
      %3187 = vmatpush.bf16.xpose.msra.mxu0 %v3172
      %3188 = vmatmul.bf16.gmra.mxu0 %v3170
      %v3189 = vpop.f32.mrf.mxu0
      %v3190 = vadd.f32 0.0, %v3189
      %v3191 = vpop.f32.mrf.mxu0
      %3192 = vdwg.mxu0
      %3193 = vmatpush.bf16.xpose.msra.mxu0 0
      %3194 = vmatpush.bf16.xpose.msra.mxu0 0
      %3195 = vmatpush.bf16.xpose.msra.mxu0 0
      %3196 = vmatpush.bf16.xpose.msra.mxu0 0
      %3197 = vmatpush.bf16.xpose.msra.mxu0 0
      %3198 = vmatpush.bf16.xpose.msra.mxu0 0
      %3199 = vmatpush.bf16.xpose.msra.mxu0 0
      %3200 = vmatpush.bf16.xpose.msra.mxu0 %v3178
      %3201 = vmatmul.bf16.gmra.mxu0 %v3175
      %v3202 = vpop.f32.mrf.mxu0
      %v3203 = vadd.f32 %v3190, %v3202
      %v3204 = vpop.f32.mrf.mxu0
      %3205 = vdwg.mxu0
      %v3206 = vmul.f32 %v3203, 0.086386845
      %v3207 = vsel %vm2059, %v3206, -inf
      %3208 = vmax.xlane.f32.xlu0 %v3207
      %v3209 = vpop.xlane.xlu0 %3208
      %v3210 = vsub.f32 %v3206, %v3209
      %v3211 = vmul.f32 %v3210, 1.442695
      %v3212 = vpow.pop %v3211
      %v3213 = vsel %vm2059, %v3212, 0.0
      %3214 = vadd.xlane.f32.xlu0 %v3213
      %v3215 = vpop.xlane.xlu0 %3214
      %v3216 = vrcp.pop %v3215
      %v3217 = vmul.f32 %v3212, %v3216
      %v3218 = vpack.c.bf16 %v3217, %v3217
      %v3219 = vpack.c.bf16 %v3141, %v3141
      %v3220 = vpack.c.bf16 %v3167, %v3167
      %v3222 = vsel %vm2059, %v3218, 0
      %v3225 = vsel %vm2077, %v3219, 0
      %v3228 = vsel %vm2077, %v3220, 0
      %3230 = vmatpush.bf16.msra.mxu0 0
      %3231 = vmatpush.bf16.msra.mxu0 0
      %3232 = vmatpush.bf16.msra.mxu0 0
      %3233 = vmatpush.bf16.msra.mxu0 0
      %3234 = vmatpush.bf16.msra.mxu0 0
      %3235 = vmatpush.bf16.msra.mxu0 0
      %3236 = vmatpush.bf16.msra.mxu0 0
      %3237 = vmatpush.bf16.msra.mxu0 %v3225
      %3238 = vmatmul.bf16.gmra.mxu0 %v3222
      %v3239 = vpop.f32.mrf.mxu0
      %v3240 = vadd.f32 0.0, %v3239
      %v3241 = vpop.f32.mrf.mxu0
      %3242 = vdwg.mxu0
      %3243 = vmatpush.bf16.msra.mxu0 0
      %3244 = vmatpush.bf16.msra.mxu0 0
      %3245 = vmatpush.bf16.msra.mxu0 0
      %3246 = vmatpush.bf16.msra.mxu0 0
      %3247 = vmatpush.bf16.msra.mxu0 0
      %3248 = vmatpush.bf16.msra.mxu0 0
      %3249 = vmatpush.bf16.msra.mxu0 0
      %3250 = vmatpush.bf16.msra.mxu0 %v3228
      %3251 = vmatmul.bf16.gmra.mxu0 %v3222
      %v3252 = vpop.f32.mrf.mxu0
      %v3253 = vadd.f32 0.0, %v3252
      %v3254 = vpop.f32.mrf.mxu0
      %3255 = vdwg.mxu0
      %s3256 = scalar_lea.vmem %s11, 72
      %v3257 = vld [vmem:[%s3256] sm:$0xff]
      %v3258 = vld [vmem:[%s3256 + $0x8] sm:$0xff]
      %v3259 = vld [vmem:[%s3256 + $0x10] sm:$0xff]
      %v3260 = vld [vmem:[%s3256 + $0x18] sm:$0xff]
      %v3261 = vld [vmem:[%s3256 + $0x20] sm:$0xff]
      %v3262 = vld [vmem:[%s3256 + $0x28] sm:$0xff]
      %v3263 = vld [vmem:[%s3256 + $0x30] sm:$0xff]
      %v3264 = vld [vmem:[%s3256 + $0x38] sm:$0xff]
      %v3265 = vld [vmem:[%s3256 + $0x40] sm:$0xff]
      %v3266 = vpack.c.bf16 %v3240, %v3240
      %v3267 = vpack.c.bf16 %v3253, %v3253
      %v3269 = vsel %vm1960, %v3267, 0
      %3271 = vmatpush.bf16.msra.mxu0 %v2422
      %3272 = vmatpush.bf16.msra.mxu0 %v2413
      %3273 = vmatpush.bf16.msra.mxu0 %v2404
      %3274 = vmatpush.bf16.msra.mxu0 %v2395
      %3275 = vmatpush.bf16.msra.mxu0 %v2386
      %3276 = vmatpush.bf16.msra.mxu0 %v2377
      %3277 = vmatpush.bf16.msra.mxu0 %v2368
      %3278 = vmatpush.bf16.msra.mxu0 %v2359
      %3279 = vmatmul.bf16.gmra.mxu0 %v3266
      %v3280 = vpop.f32.mrf.mxu0
      %v3281 = vadd.f32 0.0, %v3280
      %v3282 = vpop.f32.mrf.mxu0
      %3283 = vdwg.mxu0
      %3284 = vmatpush.bf16.msra.mxu0 0
      %3285 = vmatpush.bf16.msra.mxu0 0
      %3286 = vmatpush.bf16.msra.mxu0 0
      %3287 = vmatpush.bf16.msra.mxu0 0
      %3288 = vmatpush.bf16.msra.mxu0 0
      %3289 = vmatpush.bf16.msra.mxu0 0
      %3290 = vmatpush.bf16.msra.mxu0 0
      %3291 = vmatpush.bf16.msra.mxu0 %v2516
      %3292 = vmatmul.bf16.gmra.mxu0 %v3269
      %v3293 = vpop.f32.mrf.mxu0
      %v3294 = vadd.f32 %v3281, %v3293
      %v3295 = vpop.f32.mrf.mxu0
      %3296 = vdwg.mxu0
      %3297 = vmatpush.bf16.msra.mxu0 %v2423
      %3298 = vmatpush.bf16.msra.mxu0 %v2414
      %3299 = vmatpush.bf16.msra.mxu0 %v2405
      %3300 = vmatpush.bf16.msra.mxu0 %v2396
      %3301 = vmatpush.bf16.msra.mxu0 %v2387
      %3302 = vmatpush.bf16.msra.mxu0 %v2378
      %3303 = vmatpush.bf16.msra.mxu0 %v2369
      %3304 = vmatpush.bf16.msra.mxu0 %v2360
      %3305 = vmatmul.bf16.gmra.mxu0 %v3266
      %v3306 = vpop.f32.mrf.mxu0
      %v3307 = vadd.f32 0.0, %v3306
      %v3308 = vpop.f32.mrf.mxu0
      %3309 = vdwg.mxu0
      %3310 = vmatpush.bf16.msra.mxu0 0
      %3311 = vmatpush.bf16.msra.mxu0 0
      %3312 = vmatpush.bf16.msra.mxu0 0
      %3313 = vmatpush.bf16.msra.mxu0 0
      %3314 = vmatpush.bf16.msra.mxu0 0
      %3315 = vmatpush.bf16.msra.mxu0 0
      %3316 = vmatpush.bf16.msra.mxu0 0
      %3317 = vmatpush.bf16.msra.mxu0 %v2519
      %3318 = vmatmul.bf16.gmra.mxu0 %v3269
      %v3319 = vpop.f32.mrf.mxu0
      %v3320 = vadd.f32 %v3307, %v3319
      %v3321 = vpop.f32.mrf.mxu0
      %3322 = vdwg.mxu0
      %3323 = vmatpush.bf16.msra.mxu0 %v2424
      %3324 = vmatpush.bf16.msra.mxu0 %v2415
      %3325 = vmatpush.bf16.msra.mxu0 %v2406
      %3326 = vmatpush.bf16.msra.mxu0 %v2397
      %3327 = vmatpush.bf16.msra.mxu0 %v2388
      %3328 = vmatpush.bf16.msra.mxu0 %v2379
      %3329 = vmatpush.bf16.msra.mxu0 %v2370
      %3330 = vmatpush.bf16.msra.mxu0 %v2361
      %3331 = vmatmul.bf16.gmra.mxu0 %v3266
      %v3332 = vpop.f32.mrf.mxu0
      %v3333 = vadd.f32 0.0, %v3332
      %v3334 = vpop.f32.mrf.mxu0
      %3335 = vdwg.mxu0
      %3336 = vmatpush.bf16.msra.mxu0 0
      %3337 = vmatpush.bf16.msra.mxu0 0
      %3338 = vmatpush.bf16.msra.mxu0 0
      %3339 = vmatpush.bf16.msra.mxu0 0
      %3340 = vmatpush.bf16.msra.mxu0 0
      %3341 = vmatpush.bf16.msra.mxu0 0
      %3342 = vmatpush.bf16.msra.mxu0 0
      %3343 = vmatpush.bf16.msra.mxu0 %v2522
      %3344 = vmatmul.bf16.gmra.mxu0 %v3269
      %v3345 = vpop.f32.mrf.mxu0
      %v3346 = vadd.f32 %v3333, %v3345
      %v3347 = vpop.f32.mrf.mxu0
      %3348 = vdwg.mxu0
      %3349 = vmatpush.bf16.msra.mxu0 %v2425
      %3350 = vmatpush.bf16.msra.mxu0 %v2416
      %3351 = vmatpush.bf16.msra.mxu0 %v2407
      %3352 = vmatpush.bf16.msra.mxu0 %v2398
      %3353 = vmatpush.bf16.msra.mxu0 %v2389
      %3354 = vmatpush.bf16.msra.mxu0 %v2380
      %3355 = vmatpush.bf16.msra.mxu0 %v2371
      %3356 = vmatpush.bf16.msra.mxu0 %v2362
      %3357 = vmatmul.bf16.gmra.mxu0 %v3266
      %v3358 = vpop.f32.mrf.mxu0
      %v3359 = vadd.f32 0.0, %v3358
      %v3360 = vpop.f32.mrf.mxu0
      %3361 = vdwg.mxu0
      %3362 = vmatpush.bf16.msra.mxu0 0
      %3363 = vmatpush.bf16.msra.mxu0 0
      %3364 = vmatpush.bf16.msra.mxu0 0
      %3365 = vmatpush.bf16.msra.mxu0 0
      %3366 = vmatpush.bf16.msra.mxu0 0
      %3367 = vmatpush.bf16.msra.mxu0 0
      %3368 = vmatpush.bf16.msra.mxu0 0
      %3369 = vmatpush.bf16.msra.mxu0 %v2525
      %3370 = vmatmul.bf16.gmra.mxu0 %v3269
      %v3371 = vpop.f32.mrf.mxu0
      %v3372 = vadd.f32 %v3359, %v3371
      %v3373 = vpop.f32.mrf.mxu0
      %3374 = vdwg.mxu0
      %3375 = vmatpush.bf16.msra.mxu0 %v2426
      %3376 = vmatpush.bf16.msra.mxu0 %v2417
      %3377 = vmatpush.bf16.msra.mxu0 %v2408
      %3378 = vmatpush.bf16.msra.mxu0 %v2399
      %3379 = vmatpush.bf16.msra.mxu0 %v2390
      %3380 = vmatpush.bf16.msra.mxu0 %v2381
      %3381 = vmatpush.bf16.msra.mxu0 %v2372
      %3382 = vmatpush.bf16.msra.mxu0 %v2363
      %3383 = vmatmul.bf16.gmra.mxu0 %v3266
      %v3384 = vpop.f32.mrf.mxu0
      %v3385 = vadd.f32 0.0, %v3384
      %v3386 = vpop.f32.mrf.mxu0
      %3387 = vdwg.mxu0
      %3388 = vmatpush.bf16.msra.mxu0 0
      %3389 = vmatpush.bf16.msra.mxu0 0
      %3390 = vmatpush.bf16.msra.mxu0 0
      %3391 = vmatpush.bf16.msra.mxu0 0
      %3392 = vmatpush.bf16.msra.mxu0 0
      %3393 = vmatpush.bf16.msra.mxu0 0
      %3394 = vmatpush.bf16.msra.mxu0 0
      %3395 = vmatpush.bf16.msra.mxu0 %v2528
      %3396 = vmatmul.bf16.gmra.mxu0 %v3269
      %v3397 = vpop.f32.mrf.mxu0
      %v3398 = vadd.f32 %v3385, %v3397
      %v3399 = vpop.f32.mrf.mxu0
      %3400 = vdwg.mxu0
      %3401 = vmatpush.bf16.msra.mxu0 %v2427
      %3402 = vmatpush.bf16.msra.mxu0 %v2418
      %3403 = vmatpush.bf16.msra.mxu0 %v2409
      %3404 = vmatpush.bf16.msra.mxu0 %v2400
      %3405 = vmatpush.bf16.msra.mxu0 %v2391
      %3406 = vmatpush.bf16.msra.mxu0 %v2382
      %3407 = vmatpush.bf16.msra.mxu0 %v2373
      %3408 = vmatpush.bf16.msra.mxu0 %v2364
      %3409 = vmatmul.bf16.gmra.mxu0 %v3266
      %v3410 = vpop.f32.mrf.mxu0
      %v3411 = vadd.f32 0.0, %v3410
      %v3412 = vpop.f32.mrf.mxu0
      %3413 = vdwg.mxu0
      %3414 = vmatpush.bf16.msra.mxu0 0
      %3415 = vmatpush.bf16.msra.mxu0 0
      %3416 = vmatpush.bf16.msra.mxu0 0
      %3417 = vmatpush.bf16.msra.mxu0 0
      %3418 = vmatpush.bf16.msra.mxu0 0
      %3419 = vmatpush.bf16.msra.mxu0 0
      %3420 = vmatpush.bf16.msra.mxu0 0
      %3421 = vmatpush.bf16.msra.mxu0 %v2531
      %3422 = vmatmul.bf16.gmra.mxu0 %v3269
      %v3423 = vpop.f32.mrf.mxu0
      %v3424 = vadd.f32 %v3411, %v3423
      %v3425 = vpop.f32.mrf.mxu0
      %3426 = vdwg.mxu0
      %3427 = vmatpush.bf16.msra.mxu0 %v2428
      %3428 = vmatpush.bf16.msra.mxu0 %v2419
      %3429 = vmatpush.bf16.msra.mxu0 %v2410
      %3430 = vmatpush.bf16.msra.mxu0 %v2401
      %3431 = vmatpush.bf16.msra.mxu0 %v2392
      %3432 = vmatpush.bf16.msra.mxu0 %v2383
      %3433 = vmatpush.bf16.msra.mxu0 %v2374
      %3434 = vmatpush.bf16.msra.mxu0 %v2365
      %3435 = vmatmul.bf16.gmra.mxu0 %v3266
      %v3436 = vpop.f32.mrf.mxu0
      %v3437 = vadd.f32 0.0, %v3436
      %v3438 = vpop.f32.mrf.mxu0
      %3439 = vdwg.mxu0
      %3440 = vmatpush.bf16.msra.mxu0 0
      %3441 = vmatpush.bf16.msra.mxu0 0
      %3442 = vmatpush.bf16.msra.mxu0 0
      %3443 = vmatpush.bf16.msra.mxu0 0
      %3444 = vmatpush.bf16.msra.mxu0 0
      %3445 = vmatpush.bf16.msra.mxu0 0
      %3446 = vmatpush.bf16.msra.mxu0 0
      %3447 = vmatpush.bf16.msra.mxu0 %v2534
      %3448 = vmatmul.bf16.gmra.mxu0 %v3269
      %v3449 = vpop.f32.mrf.mxu0
      %v3450 = vadd.f32 %v3437, %v3449
      %v3451 = vpop.f32.mrf.mxu0
      %3452 = vdwg.mxu0
      %3453 = vmatpush.bf16.msra.mxu0 %v2429
      %3454 = vmatpush.bf16.msra.mxu0 %v2420
      %3455 = vmatpush.bf16.msra.mxu0 %v2411
      %3456 = vmatpush.bf16.msra.mxu0 %v2402
      %3457 = vmatpush.bf16.msra.mxu0 %v2393
      %3458 = vmatpush.bf16.msra.mxu0 %v2384
      %3459 = vmatpush.bf16.msra.mxu0 %v2375
      %3460 = vmatpush.bf16.msra.mxu0 %v2366
      %3461 = vmatmul.bf16.gmra.mxu0 %v3266
      %v3462 = vpop.f32.mrf.mxu0
      %v3463 = vadd.f32 0.0, %v3462
      %v3464 = vpop.f32.mrf.mxu0
      %3465 = vdwg.mxu0
      %3466 = vmatpush.bf16.msra.mxu0 0
      %3467 = vmatpush.bf16.msra.mxu0 0
      %3468 = vmatpush.bf16.msra.mxu0 0
      %3469 = vmatpush.bf16.msra.mxu0 0
      %3470 = vmatpush.bf16.msra.mxu0 0
      %3471 = vmatpush.bf16.msra.mxu0 0
      %3472 = vmatpush.bf16.msra.mxu0 0
      %3473 = vmatpush.bf16.msra.mxu0 %v2537
      %3474 = vmatmul.bf16.gmra.mxu0 %v3269
      %v3475 = vpop.f32.mrf.mxu0
      %v3476 = vadd.f32 %v3463, %v3475
      %v3477 = vpop.f32.mrf.mxu0
      %3478 = vdwg.mxu0
      %3479 = vmatpush.bf16.msra.mxu0 %v2430
      %3480 = vmatpush.bf16.msra.mxu0 %v2421
      %3481 = vmatpush.bf16.msra.mxu0 %v2412
      %3482 = vmatpush.bf16.msra.mxu0 %v2403
      %3483 = vmatpush.bf16.msra.mxu0 %v2394
      %3484 = vmatpush.bf16.msra.mxu0 %v2385
      %3485 = vmatpush.bf16.msra.mxu0 %v2376
      %3486 = vmatpush.bf16.msra.mxu0 %v2367
      %3487 = vmatmul.bf16.gmra.mxu0 %v3266
      %v3488 = vpop.f32.mrf.mxu0
      %v3489 = vadd.f32 0.0, %v3488
      %v3490 = vpop.f32.mrf.mxu0
      %3491 = vdwg.mxu0
      %3492 = vmatpush.bf16.msra.mxu0 0
      %3493 = vmatpush.bf16.msra.mxu0 0
      %3494 = vmatpush.bf16.msra.mxu0 0
      %3495 = vmatpush.bf16.msra.mxu0 0
      %3496 = vmatpush.bf16.msra.mxu0 0
      %3497 = vmatpush.bf16.msra.mxu0 0
      %3498 = vmatpush.bf16.msra.mxu0 0
      %3499 = vmatpush.bf16.msra.mxu0 %v2540
      %3500 = vmatmul.bf16.gmra.mxu0 %v3269
      %v3501 = vpop.f32.mrf.mxu0
      %v3502 = vadd.f32 %v3489, %v3501
      %v3503 = vpop.f32.mrf.mxu0
      %3504 = vdwg.mxu0
      %v3505 = vadd.f32 %v3257, %v3294
      %v3506 = vadd.f32 %v3258, %v3320
      %v3507 = vadd.f32 %v3259, %v3346
      %v3508 = vadd.f32 %v3260, %v3372
      %v3509 = vadd.f32 %v3261, %v3398
      %v3510 = vadd.f32 %v3262, %v3424
      %v3511 = vadd.f32 %v3263, %v3450
      %v3512 = vadd.f32 %v3264, %v3476
      %v3513 = vadd.f32 %v3265, %v3502
      %3514 = vst [vmem:[%s3256] sm:$0xff] %v3505
      %3515 = vst [vmem:[%s3256 + $0x8] sm:$0xff] %v3506
      %3516 = vst [vmem:[%s3256 + $0x10] sm:$0xff] %v3507
      %3517 = vst [vmem:[%s3256 + $0x18] sm:$0xff] %v3508
      %3518 = vst [vmem:[%s3256 + $0x20] sm:$0xff] %v3509
      %3519 = vst [vmem:[%s3256 + $0x28] sm:$0xff] %v3510
      %3520 = vst [vmem:[%s3256 + $0x30] sm:$0xff] %v3511
      %3521 = vst [vmem:[%s3256 + $0x38] sm:$0xff] %v3512
      %3522 = vst.msk [vmem:[%s3256 + $0x40] sm:$0xff] %vm1458, %v3513
      %p3523 = scmp.eq.s32.totalorder %s22, 7
      // Predicated region
      $region69: #{gru_att_forward.2} parent=63 // pred_check
        %p3524 = pneg %p3523
      $region70: #{gru_att_forward.2} parent=63 // pred_check_branch
        %3526 = sbr.rel (%p3524) target = $region72
      $region71: #{gru_att_forward.2} parent=63 // pred_region
        %v3527 = vld [vmem:[%s11] sm:$0xff]
        %v3528 = vld [vmem:[%s11 + $0x8] sm:$0xff]
        %v3529 = vld [vmem:[%s11 + $0x10] sm:$0xff]
        %v3530 = vld [vmem:[%s11 + $0x18] sm:$0xff]
        %v3531 = vld [vmem:[%s11 + $0x20] sm:$0xff]
        %v3532 = vld [vmem:[%s11 + $0x28] sm:$0xff]
        %v3533 = vld [vmem:[%s11 + $0x30] sm:$0xff]
        %v3534 = vld [vmem:[%s11 + $0x38] sm:$0xff]
        %v3535 = vld [vmem:[%s11 + $0x40] sm:$0xff]
        %v3536 = vld [vmem:[%s11 + $0x48] sm:$0xff]
        %v3537 = vld [vmem:[%s11 + $0x50] sm:$0xff]
        %v3538 = vld [vmem:[%s11 + $0x58] sm:$0xff]
        %v3539 = vld [vmem:[%s11 + $0x60] sm:$0xff]
        %v3540 = vld [vmem:[%s11 + $0x68] sm:$0xff]
        %v3541 = vld [vmem:[%s11 + $0x70] sm:$0xff]
        %v3542 = vld [vmem:[%s11 + $0x78] sm:$0xff]
        %v3543 = vld [vmem:[%s11 + $0x80] sm:$0xff]
        %v3544 = vld [vmem:[%s11 + $0x88] sm:$0xff]
        %v3545 = vld [vmem:[%s10] sm:$0xff]
        %v3546 = vld [vmem:[%s10 + $0x8] sm:$0x1]
        %v3549 = vperm.slane %v3545, 0
        %v3550 = vperm.slane %v3545, 1
        %v3551 = vperm.slane %v3545, 2
        %v3552 = vperm.slane %v3545, 3
        %v3553 = vperm.slane %v3545, 4
        %v3554 = vperm.slane %v3545, 5
        %v3555 = vperm.slane %v3545, 6
        %v3556 = vperm.slane %v3545, 7
        %v3557 = vperm.slane %v3546, 0
        %v3567 = vadd.f32 %v3527, %v3549
        %v3568 = vadd.f32 %v3528, %v3550
        %v3569 = vadd.f32 %v3529, %v3551
        %v3570 = vadd.f32 %v3530, %v3552
        %v3571 = vadd.f32 %v3531, %v3553
        %v3572 = vadd.f32 %v3532, %v3554
        %v3573 = vadd.f32 %v3533, %v3555
        %v3574 = vadd.f32 %v3534, %v3556
        %v3575 = vadd.f32 %v3535, %v3557
        %v3576 = vadd.f32 %v3536, %v3549
        %v3577 = vadd.f32 %v3537, %v3550
        %v3578 = vadd.f32 %v3538, %v3551
        %v3579 = vadd.f32 %v3539, %v3552
        %v3580 = vadd.f32 %v3540, %v3553
        %v3581 = vadd.f32 %v3541, %v3554
        %v3582 = vadd.f32 %v3542, %v3555
        %v3583 = vadd.f32 %v3543, %v3556
        %v3584 = vadd.f32 %v3544, %v3557
        %v3585 = vld [vmem:[%s0] sm:$0xff]
        %v3586 = vld [vmem:[%s0 + $0x8] sm:$0xff]
        %v3587 = vld [vmem:[%s0 + $0x10] sm:$0xff]
        %v3588 = vld [vmem:[%s0 + $0x18] sm:$0xff]
        %v3589 = vld [vmem:[%s0 + $0x20] sm:$0xff]
        %v3590 = vld [vmem:[%s0 + $0x28] sm:$0xff]
        %v3591 = vld [vmem:[%s0 + $0x30] sm:$0xff]
        %v3592 = vld [vmem:[%s0 + $0x38] sm:$0xff]
        %v3593 = vld [vmem:[%s0 + $0x40] sm:$0xff]
        %v3594 = vld [vmem:[%s0 + $0x48] sm:$0xff]
        %v3595 = vld [vmem:[%s0 + $0x50] sm:$0xff]
        %v3596 = vld [vmem:[%s0 + $0x58] sm:$0xff]
        %v3597 = vld [vmem:[%s0 + $0x60] sm:$0xff]
        %v3598 = vld [vmem:[%s0 + $0x68] sm:$0xff]
        %v3599 = vld [vmem:[%s0 + $0x70] sm:$0xff]
        %v3600 = vld [vmem:[%s0 + $0x78] sm:$0xff]
        %v3601 = vld [vmem:[%s0 + $0x80] sm:$0xff]
        %v3602 = vld [vmem:[%s0 + $0x88] sm:$0xff]
        %v3603 = vmul.f32 %v3567, %v3585
        %v3604 = vmul.f32 %v3568, %v3586
        %v3605 = vmul.f32 %v3569, %v3587
        %v3606 = vmul.f32 %v3570, %v3588
        %v3607 = vmul.f32 %v3571, %v3589
        %v3608 = vmul.f32 %v3572, %v3590
        %v3609 = vmul.f32 %v3573, %v3591
        %v3610 = vmul.f32 %v3574, %v3592
        %v3611 = vmul.f32 %v3575, %v3593
        %v3612 = vmul.f32 %v3576, %v3594
        %v3613 = vmul.f32 %v3577, %v3595
        %v3614 = vmul.f32 %v3578, %v3596
        %v3615 = vmul.f32 %v3579, %v3597
        %v3616 = vmul.f32 %v3580, %v3598
        %v3617 = vmul.f32 %v3581, %v3599
        %v3618 = vmul.f32 %v3582, %v3600
        %v3619 = vmul.f32 %v3583, %v3601
        %v3620 = vmul.f32 %v3584, %v3602
        %3621 = vst [vmem:[%s11] sm:$0xff] %v3603
        %3622 = vst [vmem:[%s11 + $0x8] sm:$0xff] %v3604
        %3623 = vst [vmem:[%s11 + $0x10] sm:$0xff] %v3605
        %3624 = vst [vmem:[%s11 + $0x18] sm:$0xff] %v3606
        %3625 = vst [vmem:[%s11 + $0x20] sm:$0xff] %v3607
        %3626 = vst [vmem:[%s11 + $0x28] sm:$0xff] %v3608
        %3627 = vst [vmem:[%s11 + $0x30] sm:$0xff] %v3609
        %3628 = vst [vmem:[%s11 + $0x38] sm:$0xff] %v3610
        %3629 = vst.msk [vmem:[%s11 + $0x40] sm:$0xff] %vm1458, %v3611
        %3630 = vst [vmem:[%s11 + $0x48] sm:$0xff] %v3612
        %3631 = vst [vmem:[%s11 + $0x50] sm:$0xff] %v3613
        %3632 = vst [vmem:[%s11 + $0x58] sm:$0xff] %v3614
        %3633 = vst [vmem:[%s11 + $0x60] sm:$0xff] %v3615
        %3634 = vst [vmem:[%s11 + $0x68] sm:$0xff] %v3616
        %3635 = vst [vmem:[%s11 + $0x70] sm:$0xff] %v3617
        %3636 = vst [vmem:[%s11 + $0x78] sm:$0xff] %v3618
        %3637 = vst [vmem:[%s11 + $0x80] sm:$0xff] %v3619
        %3638 = vst.msk [vmem:[%s11 + $0x88] sm:$0xff] %vm1458, %v3620
      $region72: #{gru_att_forward.2} parent=63 // pred_fallthru
        _
      // Predicated region
      $region73: #{gru_att_forward.2} parent=63 // pred_check
        %p3639 = pneg %p301
      $region74: #{gru_att_forward.2} parent=63 // pred_check_branch
        %3641 = sbr.rel (%p3639) target = $region76
      $region75: #{gru_att_forward.2} parent=63 // pred_region
        _
      $region76: #{gru_att_forward.2} parent=63 // pred_fallthru
        _
      // Predicated region
      $region77: #{gru_att_forward.2} parent=63 // pred_check
        %p3642 = pneg %p301
      $region78: #{gru_att_forward.2} parent=63 // pred_check_branch
        %3644 = sbr.rel (%p3642) target = $region80
      $region79: #{gru_att_forward.2} parent=63 // pred_region
        _
      $region80: #{gru_att_forward.2} parent=63 // pred_fallthru
        _
    $region64: #{gru_att_forward.2} parent=5 // pred_fallthru
      _
    %p3645 = scmp.le.s32.totalorder 2, %s17
    // Predicated region
    $region81: #{gru_att_forward.2} parent=5 // pred_check
      %p3646 = pneg %p3645
    $region82: #{gru_att_forward.2} parent=5 // pred_check_branch
      %3648 = sbr.rel (%p3646) target = $region84
    $region83: #{gru_att_forward.2} parent=5 // pred_region
      %s3649 = ssub.s32 %s17, 2
    $region84: #{gru_att_forward.2} parent=5 // pred_fallthru
      _
  $region6: #{gru_att_forward.2} parent=0 // loop_footer
    %s21 = sadd.s32 1, %s17
  $region7: #{gru_att_forward.2} parent=0 // loop_footer_branch
    %16 = sbr.rel target = $region3
  $region8: #{gru_att_forward.2} parent=0 // loop_exit
    _

// kernel: gru_att_forward.3
$region0: #{gru_att_forward.3}
  #allocation0 [shape = 'u32[]', space=smem, size = 0x4, offset = 0x4, fixed_abs, tag = 'smem constant byte address 0x4 - core index']
  #allocation1 [shape = 'u32[72,128]{1,0:T(1,128)}', space=vmem, size = 0x9000, scoped, tag = 'internal scratch']
  #allocation2 [shape = 'f32[1,1]{1,0:T(1,128)S(1)}', space=vmem, size = 0x200, scoped, tag = 'scoped memory for gru_att_forward.3']
  %s0 = inlined_call_operand.vmem [shape: f32[8,272,8], index: 0, kind: input, shape index: {}]
  %s1 = inlined_call_operand.vmem [shape: f32[8,192], index: 1, kind: input, shape index: {}]
  %s2 = inlined_call_operand.vmem [shape: f32[1,192], index: 2, kind: input, shape index: {}]
  %s3 = inlined_call_operand.vmem [shape: f32[64,192], index: 3, kind: input, shape index: {}]
  %s4 = inlined_call_operand.vmem [shape: f32[1,192], index: 4, kind: input, shape index: {}]
  %s5 = inlined_call_operand.vmem [shape: f32[1,64], index: 5, kind: input, shape index: {}]
  %s6 = inlined_call_operand.<no memory space> [shape: f32[1,1], index: 6, kind: input, shape index: {}]
  %s7 = inlined_call_operand.vmem [shape: f32[272,128], index: 7, kind: output, shape index: {}]
  %s8 = sld [smem:[#allocation0]]
  $region45: #{gru_att_forward.3} parent=0
    _
  %s10 = ssub.s32 1, %s8
  %s11 = scalar_select 0, %s10, %s8
  %v12 = vstv %s6
  %13 = vst [vmem:[#allocation2] sm:$0x1] %v12
  // Predicated region
  $region2: #{gru_att_forward.3} parent=0 // pred_check
    _
  $region3: #{gru_att_forward.3} parent=0 // pred_check_branch
    %15 = sbr.rel (0) target = $region5
  $region4: #{gru_att_forward.3} parent=0 // pred_region
    _
  $region5: #{gru_att_forward.3} parent=0 // pred_fallthru
    _
  // Predicated region
  $region6: #{gru_att_forward.3} parent=0 // pred_check
    _
  $region7: #{gru_att_forward.3} parent=0 // pred_check_branch
    %17 = sbr.rel (0) target = $region9
  $region8: #{gru_att_forward.3} parent=0 // pred_region
    _
  $region9: #{gru_att_forward.3} parent=0 // pred_fallthru
    _
  // Predicated region
  $region10: #{gru_att_forward.3} parent=0 // pred_check
    _
  $region11: #{gru_att_forward.3} parent=0 // pred_check_branch
    %19 = sbr.rel (0) target = $region13
  $region12: #{gru_att_forward.3} parent=0 // pred_region
    _
  $region13: #{gru_att_forward.3} parent=0 // pred_fallthru
    _
  // Predicated region
  $region14: #{gru_att_forward.3} parent=0 // pred_check
    _
  $region15: #{gru_att_forward.3} parent=0 // pred_check_branch
    %21 = sbr.rel (0) target = $region17
  $region16: #{gru_att_forward.3} parent=0 // pred_region
    _
  $region17: #{gru_att_forward.3} parent=0 // pred_fallthru
    _
  // Predicated region
  $region18: #{gru_att_forward.3} parent=0 // pred_check
    _
  $region19: #{gru_att_forward.3} parent=0 // pred_check_branch
    %23 = sbr.rel (0) target = $region21
  $region20: #{gru_att_forward.3} parent=0 // pred_region
    _
  $region21: #{gru_att_forward.3} parent=0 // pred_fallthru
    _
  // Predicated region
  $region22: #{gru_att_forward.3} parent=0 // pred_check
    _
  $region23: #{gru_att_forward.3} parent=0 // pred_check_branch
    %25 = sbr.rel (0) target = $region25
  $region24: #{gru_att_forward.3} parent=0 // pred_region
    _
  $region25: #{gru_att_forward.3} parent=0 // pred_fallthru
    _
  // Predicated region
  $region26: #{gru_att_forward.3} parent=0 // pred_check
    _
  $region27: #{gru_att_forward.3} parent=0 // pred_check_branch
    %27 = sbr.rel (0) target = $region29
  $region28: #{gru_att_forward.3} parent=0 // pred_region
    _
  $region29: #{gru_att_forward.3} parent=0 // pred_fallthru
    _
  %v28 = vld [vmem:[%s1] sm:$0xff]
  %v29 = vld [vmem:[%s1 + $0x8] sm:$0xff]
  %v30 = vld [vmem:[%s2] sm:$0x3]
  %v31 = vld [vmem:[%s3] sm:$0xff]
  %v32 = vld [vmem:[%s3 + $0x8] sm:$0xff]
  %v33 = vld [vmem:[%s3 + $0x10] sm:$0xff]
  %v34 = vld [vmem:[%s3 + $0x18] sm:$0xff]
  %v35 = vld [vmem:[%s3 + $0x20] sm:$0xff]
  %v36 = vld [vmem:[%s3 + $0x28] sm:$0xff]
  %v37 = vld [vmem:[%s3 + $0x30] sm:$0xff]
  %v38 = vld [vmem:[%s3 + $0x38] sm:$0xff]
  %v39 = vld [vmem:[%s3 + $0x40] sm:$0xff]
  %v40 = vld [vmem:[%s3 + $0x48] sm:$0xff]
  %v41 = vld [vmem:[%s3 + $0x50] sm:$0xff]
  %v42 = vld [vmem:[%s3 + $0x58] sm:$0xff]
  %v43 = vld [vmem:[%s3 + $0x60] sm:$0xff]
  %v44 = vld [vmem:[%s3 + $0x68] sm:$0xff]
  %v45 = vld [vmem:[%s3 + $0x70] sm:$0xff]
  %v46 = vld [vmem:[%s3 + $0x78] sm:$0xff]
  %v47 = vld [vmem:[%s4] sm:$0x3]
  %v48 = vld [vmem:[%s5] sm:$0x1]
  %v49 = vld [vmem:[#allocation2] sm:$0x1]
  %v50 = vlaneseq
  %v51 = vand.u32 %v50, 127
  loop: start=0, step=1, limit=8
  $region30: #{gru_att_forward.3} parent=0 // loop_pre_header
    _
  $region31: #{gru_att_forward.3} parent=0 // loop_header
    %s53 = sphi 0, %s57
    %p54 = scmp.ge.s32.totalorder %s53, 8
    %v58 = vphi 0.0, %v1942
    %v59 = vphi 0.0, %v1943
    %v60 = vphi 0.0, %v1944
    %v61 = vphi 0.0, %v1945
    %v62 = vphi 0.0, %v1946
    %v63 = vphi 0.0, %v1947
    %v64 = vphi 0.0, %v1948
    %v65 = vphi 0.0, %v1949
    %v66 = vphi 0.0, %v1950
    %v67 = vphi 0.0, %v1951
    %v68 = vphi 0.0, %v1952
    %v69 = vphi 0.0, %v1953
    %v70 = vphi 0.0, %v1954
    %v71 = vphi 0.0, %v1955
    %v72 = vphi 0.0, %v1956
    %v73 = vphi 0.0, %v1957
    %v74 = vphi 0.0, %v1958
    %v75 = vphi 0.0, %v1959
    %v76 = vphi 0.0, %v1960
    %v77 = vphi 0.0, %v1961
    %v78 = vphi 0.0, %v1962
    %v79 = vphi 0.0, %v1963
    %v80 = vphi 0.0, %v1964
    %v81 = vphi 0.0, %v1965
    %v82 = vphi 0.0, %v1966
    %v83 = vphi 0.0, %v1967
    %v84 = vphi 0.0, %v1968
    %v85 = vphi 0.0, %v1969
    %v86 = vphi 0.0, %v1970
    %v87 = vphi 0.0, %v1971
    %v88 = vphi 0.0, %v1972
    %v89 = vphi 0.0, %v1973
    %v90 = vphi 0.0, %v1974
    %v91 = vphi 0.0, %v1975
    %v92 = vphi 0.0, %v2463
    %v93 = vphi 0.0, %v2464
    %v94 = vphi 0.0, %v2465
    %v95 = vphi 0.0, %v2466
    %v96 = vphi 0.0, %v2467
    %v97 = vphi 0.0, %v2468
    %v98 = vphi 0.0, %v2469
    %v99 = vphi 0.0, %v2470
    %v100 = vphi 0.0, %v2471
    %v101 = vphi 0.0, %v2472
    %v102 = vphi 0.0, %v2473
    %v103 = vphi 0.0, %v2474
    %v104 = vphi 0.0, %v2475
    %v105 = vphi 0.0, %v2476
    %v106 = vphi 0.0, %v2477
    %v107 = vphi 0.0, %v2478
    %v108 = vphi 0.0, %v2479
    %v109 = vphi 0.0, %v2480
    %v110 = vphi 0.0, %v2481
    %v111 = vphi 0.0, %v2482
    %v112 = vphi 0.0, %v2483
    %v113 = vphi 0.0, %v2484
    %v114 = vphi 0.0, %v2485
    %v115 = vphi 0.0, %v2486
    %v116 = vphi 0.0, %v2487
    %v117 = vphi 0.0, %v2488
    %v118 = vphi 0.0, %v2489
    %v119 = vphi 0.0, %v2490
    %v120 = vphi 0.0, %v2491
    %v121 = vphi 0.0, %v2492
    %v122 = vphi 0.0, %v2493
    %v123 = vphi 0.0, %v2494
    %v124 = vphi 0.0, %v2495
    %v125 = vphi 0.0, %v2496
  $region32: #{gru_att_forward.3} parent=0 // loop_header_branch
    %56 = sbr.rel (%p54) target = $region36
  $region33: #{gru_att_forward.3} parent=0 // loop_body
    %s126 = smul.u32 %s53, 272
    %s127 = scalar_lea.vmem %s0, %s126
    %v128 = vld [vmem:[%s127] sm:$0xff]
    %v129 = vld [vmem:[%s127 + $0x8] sm:$0xff]
    %v130 = vld [vmem:[%s127 + $0x10] sm:$0xff]
    %v131 = vld [vmem:[%s127 + $0x18] sm:$0xff]
    %v132 = vld [vmem:[%s127 + $0x20] sm:$0xff]
    %v133 = vld [vmem:[%s127 + $0x28] sm:$0xff]
    %v134 = vld [vmem:[%s127 + $0x30] sm:$0xff]
    %v135 = vld [vmem:[%s127 + $0x38] sm:$0xff]
    %v136 = vld [vmem:[%s127 + $0x40] sm:$0xff]
    %v137 = vld [vmem:[%s127 + $0x48] sm:$0xff]
    %v138 = vld [vmem:[%s127 + $0x50] sm:$0xff]
    %v139 = vld [vmem:[%s127 + $0x58] sm:$0xff]
    %v140 = vld [vmem:[%s127 + $0x60] sm:$0xff]
    %v141 = vld [vmem:[%s127 + $0x68] sm:$0xff]
    %v142 = vld [vmem:[%s127 + $0x70] sm:$0xff]
    %v143 = vld [vmem:[%s127 + $0x78] sm:$0xff]
    %v144 = vld [vmem:[%s127 + $0x80] sm:$0xff]
    %v145 = vld [vmem:[%s127 + $0x88] sm:$0xff]
    %v146 = vld [vmem:[%s127 + $0x90] sm:$0xff]
    %v147 = vld [vmem:[%s127 + $0x98] sm:$0xff]
    %v148 = vld [vmem:[%s127 + $0xa0] sm:$0xff]
    %v149 = vld [vmem:[%s127 + $0xa8] sm:$0xff]
    %v150 = vld [vmem:[%s127 + $0xb0] sm:$0xff]
    %v151 = vld [vmem:[%s127 + $0xb8] sm:$0xff]
    %v152 = vld [vmem:[%s127 + $0xc0] sm:$0xff]
    %v153 = vld [vmem:[%s127 + $0xc8] sm:$0xff]
    %v154 = vld [vmem:[%s127 + $0xd0] sm:$0xff]
    %v155 = vld [vmem:[%s127 + $0xd8] sm:$0xff]
    %v156 = vld [vmem:[%s127 + $0xe0] sm:$0xff]
    %v157 = vld [vmem:[%s127 + $0xe8] sm:$0xff]
    %v158 = vld [vmem:[%s127 + $0xf0] sm:$0xff]
    %v159 = vld [vmem:[%s127 + $0xf8] sm:$0xff]
    %v160 = vld [vmem:[%s127 + $0x100] sm:$0xff]
    %v161 = vld [vmem:[%s127 + $0x108] sm:$0xff]
    %v163 = vperm.slane %v30, 0
    %v164 = vperm.slane %v30, 1
    %vm167 = vcmask 64512
    %v169 = vsel %vm167, %v128, 0
    %v172 = vsel %vm167, %v129, 0
    %v175 = vsel %vm167, %v130, 0
    %v178 = vsel %vm167, %v131, 0
    %v181 = vsel %vm167, %v132, 0
    %v184 = vsel %vm167, %v133, 0
    %v187 = vsel %vm167, %v134, 0
    %v190 = vsel %vm167, %v135, 0
    %v193 = vsel %vm167, %v136, 0
    %v196 = vsel %vm167, %v137, 0
    %v199 = vsel %vm167, %v138, 0
    %v202 = vsel %vm167, %v139, 0
    %v205 = vsel %vm167, %v140, 0
    %v208 = vsel %vm167, %v141, 0
    %v211 = vsel %vm167, %v142, 0
    %v214 = vsel %vm167, %v143, 0
    %v217 = vsel %vm167, %v144, 0
    %v220 = vsel %vm167, %v145, 0
    %v223 = vsel %vm167, %v146, 0
    %v226 = vsel %vm167, %v147, 0
    %v229 = vsel %vm167, %v148, 0
    %v232 = vsel %vm167, %v149, 0
    %v235 = vsel %vm167, %v150, 0
    %v238 = vsel %vm167, %v151, 0
    %v241 = vsel %vm167, %v152, 0
    %v244 = vsel %vm167, %v153, 0
    %v247 = vsel %vm167, %v154, 0
    %v250 = vsel %vm167, %v155, 0
    %v253 = vsel %vm167, %v156, 0
    %v256 = vsel %vm167, %v157, 0
    %v259 = vsel %vm167, %v158, 0
    %v262 = vsel %vm167, %v159, 0
    %v265 = vsel %vm167, %v160, 0
    %v268 = vsel %vm167, %v161, 0
    %270 = vmatpush.msra.mxu0 0.0
    %271 = vmatpush.msra.mxu0 0.0
    %272 = vmatpush.msra.mxu0 0.0
    %273 = vmatpush.msra.mxu0 0.0
    %274 = vmatpush.msra.mxu0 0.0
    %275 = vmatpush.msra.mxu0 0.0
    %276 = vmatpush.msra.mxu0 0.0
    %277 = vmatpush.msra.mxu0 0.0
    %278 = vmatpush.msra.mxu0 0.0
    %279 = vmatpush.msra.mxu0 0.0
    %280 = vmatpush.msra.mxu0 0.0
    %281 = vmatpush.msra.mxu0 0.0
    %282 = vmatpush.msra.mxu0 0.0
    %283 = vmatpush.msra.mxu0 0.0
    %284 = vmatpush.msra.mxu0 0.0
    %285 = vmatpush.msra.mxu0 %v28
    %286 = vmatmul.f32.gmra.mxu0 %v169
    %v287 = vpop.f32.mrf.mxu0
    %v288 = vadd.f32 %v163, %v287
    %289 = vmatmul.f32.gmra.mxu0 %v172
    %v290 = vpop.f32.mrf.mxu0
    %v291 = vadd.f32 %v163, %v290
    %292 = vmatmul.f32.gmra.mxu0 %v175
    %v293 = vpop.f32.mrf.mxu0
    %v294 = vadd.f32 %v163, %v293
    %295 = vmatmul.f32.gmra.mxu0 %v178
    %v296 = vpop.f32.mrf.mxu0
    %v297 = vadd.f32 %v163, %v296
    %298 = vmatmul.f32.gmra.mxu0 %v181
    %v299 = vpop.f32.mrf.mxu0
    %v300 = vadd.f32 %v163, %v299
    %301 = vmatmul.f32.gmra.mxu0 %v184
    %v302 = vpop.f32.mrf.mxu0
    %v303 = vadd.f32 %v163, %v302
    %304 = vmatmul.f32.gmra.mxu0 %v187
    %v305 = vpop.f32.mrf.mxu0
    %v306 = vadd.f32 %v163, %v305
    %307 = vmatmul.f32.gmra.mxu0 %v190
    %v308 = vpop.f32.mrf.mxu0
    %v309 = vadd.f32 %v163, %v308
    %310 = vmatmul.f32.gmra.mxu0 %v193
    %v311 = vpop.f32.mrf.mxu0
    %v312 = vadd.f32 %v163, %v311
    %313 = vmatmul.f32.gmra.mxu0 %v196
    %v314 = vpop.f32.mrf.mxu0
    %v315 = vadd.f32 %v163, %v314
    %316 = vmatmul.f32.gmra.mxu0 %v199
    %v317 = vpop.f32.mrf.mxu0
    %v318 = vadd.f32 %v163, %v317
    %319 = vmatmul.f32.gmra.mxu0 %v202
    %v320 = vpop.f32.mrf.mxu0
    %v321 = vadd.f32 %v163, %v320
    %322 = vmatmul.f32.gmra.mxu0 %v205
    %v323 = vpop.f32.mrf.mxu0
    %v324 = vadd.f32 %v163, %v323
    %325 = vmatmul.f32.gmra.mxu0 %v208
    %v326 = vpop.f32.mrf.mxu0
    %v327 = vadd.f32 %v163, %v326
    %328 = vmatmul.f32.gmra.mxu0 %v211
    %v329 = vpop.f32.mrf.mxu0
    %v330 = vadd.f32 %v163, %v329
    %331 = vmatmul.f32.gmra.mxu0 %v214
    %v332 = vpop.f32.mrf.mxu0
    %v333 = vadd.f32 %v163, %v332
    %334 = vmatmul.f32.gmra.mxu0 %v217
    %v335 = vpop.f32.mrf.mxu0
    %v336 = vadd.f32 %v163, %v335
    %337 = vmatmul.f32.gmra.mxu0 %v220
    %v338 = vpop.f32.mrf.mxu0
    %v339 = vadd.f32 %v163, %v338
    %340 = vmatmul.f32.gmra.mxu0 %v223
    %v341 = vpop.f32.mrf.mxu0
    %v342 = vadd.f32 %v163, %v341
    %343 = vmatmul.f32.gmra.mxu0 %v226
    %v344 = vpop.f32.mrf.mxu0
    %v345 = vadd.f32 %v163, %v344
    %346 = vmatmul.f32.gmra.mxu0 %v229
    %v347 = vpop.f32.mrf.mxu0
    %v348 = vadd.f32 %v163, %v347
    %349 = vmatmul.f32.gmra.mxu0 %v232
    %v350 = vpop.f32.mrf.mxu0
    %v351 = vadd.f32 %v163, %v350
    %352 = vmatmul.f32.gmra.mxu0 %v235
    %v353 = vpop.f32.mrf.mxu0
    %v354 = vadd.f32 %v163, %v353
    %355 = vmatmul.f32.gmra.mxu0 %v238
    %v356 = vpop.f32.mrf.mxu0
    %v357 = vadd.f32 %v163, %v356
    %358 = vmatmul.f32.gmra.mxu0 %v241
    %v359 = vpop.f32.mrf.mxu0
    %v360 = vadd.f32 %v163, %v359
    %361 = vmatmul.f32.gmra.mxu0 %v244
    %v362 = vpop.f32.mrf.mxu0
    %v363 = vadd.f32 %v163, %v362
    %364 = vmatmul.f32.gmra.mxu0 %v247
    %v365 = vpop.f32.mrf.mxu0
    %v366 = vadd.f32 %v163, %v365
    %367 = vmatmul.f32.gmra.mxu0 %v250
    %v368 = vpop.f32.mrf.mxu0
    %v369 = vadd.f32 %v163, %v368
    %370 = vmatmul.f32.gmra.mxu0 %v253
    %v371 = vpop.f32.mrf.mxu0
    %v372 = vadd.f32 %v163, %v371
    %373 = vmatmul.f32.gmra.mxu0 %v256
    %v374 = vpop.f32.mrf.mxu0
    %v375 = vadd.f32 %v163, %v374
    %376 = vmatmul.f32.gmra.mxu0 %v259
    %v377 = vpop.f32.mrf.mxu0
    %v378 = vadd.f32 %v163, %v377
    %379 = vmatmul.f32.gmra.mxu0 %v262
    %v380 = vpop.f32.mrf.mxu0
    %v381 = vadd.f32 %v163, %v380
    %382 = vmatmul.f32.gmra.mxu0 %v265
    %v383 = vpop.f32.mrf.mxu0
    %v384 = vadd.f32 %v163, %v383
    %385 = vmatmul.f32.gmra.mxu0 %v268
    %v386 = vpop.f32.mrf.mxu0
    %v387 = vadd.f32 %v163, %v386
    %388 = vdwg.mxu0
    %389 = vmatpush.msra.mxu0 0.0
    %390 = vmatpush.msra.mxu0 0.0
    %391 = vmatpush.msra.mxu0 0.0
    %392 = vmatpush.msra.mxu0 0.0
    %393 = vmatpush.msra.mxu0 0.0
    %394 = vmatpush.msra.mxu0 0.0
    %395 = vmatpush.msra.mxu0 0.0
    %396 = vmatpush.msra.mxu0 0.0
    %397 = vmatpush.msra.mxu0 0.0
    %398 = vmatpush.msra.mxu0 0.0
    %399 = vmatpush.msra.mxu0 0.0
    %400 = vmatpush.msra.mxu0 0.0
    %401 = vmatpush.msra.mxu0 0.0
    %402 = vmatpush.msra.mxu0 0.0
    %403 = vmatpush.msra.mxu0 0.0
    %404 = vmatpush.msra.mxu0 %v29
    %405 = vmatmul.f32.gmra.mxu0 %v169
    %v406 = vpop.f32.mrf.mxu0
    %v407 = vadd.f32 %v164, %v406
    %408 = vmatmul.f32.gmra.mxu0 %v172
    %v409 = vpop.f32.mrf.mxu0
    %v410 = vadd.f32 %v164, %v409
    %411 = vmatmul.f32.gmra.mxu0 %v175
    %v412 = vpop.f32.mrf.mxu0
    %v413 = vadd.f32 %v164, %v412
    %414 = vmatmul.f32.gmra.mxu0 %v178
    %v415 = vpop.f32.mrf.mxu0
    %v416 = vadd.f32 %v164, %v415
    %417 = vmatmul.f32.gmra.mxu0 %v181
    %v418 = vpop.f32.mrf.mxu0
    %v419 = vadd.f32 %v164, %v418
    %420 = vmatmul.f32.gmra.mxu0 %v184
    %v421 = vpop.f32.mrf.mxu0
    %v422 = vadd.f32 %v164, %v421
    %423 = vmatmul.f32.gmra.mxu0 %v187
    %v424 = vpop.f32.mrf.mxu0
    %v425 = vadd.f32 %v164, %v424
    %426 = vmatmul.f32.gmra.mxu0 %v190
    %v427 = vpop.f32.mrf.mxu0
    %v428 = vadd.f32 %v164, %v427
    %429 = vmatmul.f32.gmra.mxu0 %v193
    %v430 = vpop.f32.mrf.mxu0
    %v431 = vadd.f32 %v164, %v430
    %432 = vmatmul.f32.gmra.mxu0 %v196
    %v433 = vpop.f32.mrf.mxu0
    %v434 = vadd.f32 %v164, %v433
    %435 = vmatmul.f32.gmra.mxu0 %v199
    %v436 = vpop.f32.mrf.mxu0
    %v437 = vadd.f32 %v164, %v436
    %438 = vmatmul.f32.gmra.mxu0 %v202
    %v439 = vpop.f32.mrf.mxu0
    %v440 = vadd.f32 %v164, %v439
    %441 = vmatmul.f32.gmra.mxu0 %v205
    %v442 = vpop.f32.mrf.mxu0
    %v443 = vadd.f32 %v164, %v442
    %444 = vmatmul.f32.gmra.mxu0 %v208
    %v445 = vpop.f32.mrf.mxu0
    %v446 = vadd.f32 %v164, %v445
    %447 = vmatmul.f32.gmra.mxu0 %v211
    %v448 = vpop.f32.mrf.mxu0
    %v449 = vadd.f32 %v164, %v448
    %450 = vmatmul.f32.gmra.mxu0 %v214
    %v451 = vpop.f32.mrf.mxu0
    %v452 = vadd.f32 %v164, %v451
    %453 = vmatmul.f32.gmra.mxu0 %v217
    %v454 = vpop.f32.mrf.mxu0
    %v455 = vadd.f32 %v164, %v454
    %456 = vmatmul.f32.gmra.mxu0 %v220
    %v457 = vpop.f32.mrf.mxu0
    %v458 = vadd.f32 %v164, %v457
    %459 = vmatmul.f32.gmra.mxu0 %v223
    %v460 = vpop.f32.mrf.mxu0
    %v461 = vadd.f32 %v164, %v460
    %462 = vmatmul.f32.gmra.mxu0 %v226
    %v463 = vpop.f32.mrf.mxu0
    %v464 = vadd.f32 %v164, %v463
    %465 = vmatmul.f32.gmra.mxu0 %v229
    %v466 = vpop.f32.mrf.mxu0
    %v467 = vadd.f32 %v164, %v466
    %468 = vmatmul.f32.gmra.mxu0 %v232
    %v469 = vpop.f32.mrf.mxu0
    %v470 = vadd.f32 %v164, %v469
    %471 = vmatmul.f32.gmra.mxu0 %v235
    %v472 = vpop.f32.mrf.mxu0
    %v473 = vadd.f32 %v164, %v472
    %474 = vmatmul.f32.gmra.mxu0 %v238
    %v475 = vpop.f32.mrf.mxu0
    %v476 = vadd.f32 %v164, %v475
    %477 = vmatmul.f32.gmra.mxu0 %v241
    %v478 = vpop.f32.mrf.mxu0
    %v479 = vadd.f32 %v164, %v478
    %480 = vmatmul.f32.gmra.mxu0 %v244
    %v481 = vpop.f32.mrf.mxu0
    %v482 = vadd.f32 %v164, %v481
    %483 = vmatmul.f32.gmra.mxu0 %v247
    %v484 = vpop.f32.mrf.mxu0
    %v485 = vadd.f32 %v164, %v484
    %486 = vmatmul.f32.gmra.mxu0 %v250
    %v487 = vpop.f32.mrf.mxu0
    %v488 = vadd.f32 %v164, %v487
    %489 = vmatmul.f32.gmra.mxu0 %v253
    %v490 = vpop.f32.mrf.mxu0
    %v491 = vadd.f32 %v164, %v490
    %492 = vmatmul.f32.gmra.mxu0 %v256
    %v493 = vpop.f32.mrf.mxu0
    %v494 = vadd.f32 %v164, %v493
    %495 = vmatmul.f32.gmra.mxu0 %v259
    %v496 = vpop.f32.mrf.mxu0
    %v497 = vadd.f32 %v164, %v496
    %498 = vmatmul.f32.gmra.mxu0 %v262
    %v499 = vpop.f32.mrf.mxu0
    %v500 = vadd.f32 %v164, %v499
    %501 = vmatmul.f32.gmra.mxu0 %v265
    %v502 = vpop.f32.mrf.mxu0
    %v503 = vadd.f32 %v164, %v502
    %504 = vmatmul.f32.gmra.mxu0 %v268
    %v505 = vpop.f32.mrf.mxu0
    %v506 = vadd.f32 %v164, %v505
    %507 = vdwg.mxu0
    %v509 = vperm.slane %v47, 0
    %v510 = vperm.slane %v47, 1
    %547 = vrot.lane.b32.xlu0 %v58, 64
    %v548 = vpop.permute.xlu0 %547
    %549 = vrot.lane.b32.xlu0 %v59, 64
    %v550 = vpop.permute.xlu0 %549
    %551 = vrot.lane.b32.xlu0 %v60, 64
    %v552 = vpop.permute.xlu0 %551
    %553 = vrot.lane.b32.xlu0 %v61, 64
    %v554 = vpop.permute.xlu0 %553
    %555 = vrot.lane.b32.xlu0 %v62, 64
    %v556 = vpop.permute.xlu0 %555
    %557 = vrot.lane.b32.xlu0 %v63, 64
    %v558 = vpop.permute.xlu0 %557
    %559 = vrot.lane.b32.xlu0 %v64, 64
    %v560 = vpop.permute.xlu0 %559
    %561 = vrot.lane.b32.xlu0 %v65, 64
    %v562 = vpop.permute.xlu0 %561
    %563 = vrot.lane.b32.xlu0 %v66, 64
    %v564 = vpop.permute.xlu0 %563
    %565 = vrot.lane.b32.xlu0 %v67, 64
    %v566 = vpop.permute.xlu0 %565
    %567 = vrot.lane.b32.xlu0 %v68, 64
    %v568 = vpop.permute.xlu0 %567
    %569 = vrot.lane.b32.xlu0 %v69, 64
    %v570 = vpop.permute.xlu0 %569
    %571 = vrot.lane.b32.xlu0 %v70, 64
    %v572 = vpop.permute.xlu0 %571
    %573 = vrot.lane.b32.xlu0 %v71, 64
    %v574 = vpop.permute.xlu0 %573
    %575 = vrot.lane.b32.xlu0 %v72, 64
    %v576 = vpop.permute.xlu0 %575
    %577 = vrot.lane.b32.xlu0 %v73, 64
    %v578 = vpop.permute.xlu0 %577
    %579 = vrot.lane.b32.xlu0 %v74, 64
    %v580 = vpop.permute.xlu0 %579
    %581 = vrot.lane.b32.xlu0 %v75, 64
    %v582 = vpop.permute.xlu0 %581
    %583 = vrot.lane.b32.xlu0 %v76, 64
    %v584 = vpop.permute.xlu0 %583
    %585 = vrot.lane.b32.xlu0 %v77, 64
    %v586 = vpop.permute.xlu0 %585
    %587 = vrot.lane.b32.xlu0 %v78, 64
    %v588 = vpop.permute.xlu0 %587
    %589 = vrot.lane.b32.xlu0 %v79, 64
    %v590 = vpop.permute.xlu0 %589
    %591 = vrot.lane.b32.xlu0 %v80, 64
    %v592 = vpop.permute.xlu0 %591
    %593 = vrot.lane.b32.xlu0 %v81, 64
    %v594 = vpop.permute.xlu0 %593
    %595 = vrot.lane.b32.xlu0 %v82, 64
    %v596 = vpop.permute.xlu0 %595
    %597 = vrot.lane.b32.xlu0 %v83, 64
    %v598 = vpop.permute.xlu0 %597
    %599 = vrot.lane.b32.xlu0 %v84, 64
    %v600 = vpop.permute.xlu0 %599
    %601 = vrot.lane.b32.xlu0 %v85, 64
    %v602 = vpop.permute.xlu0 %601
    %603 = vrot.lane.b32.xlu0 %v86, 64
    %v604 = vpop.permute.xlu0 %603
    %605 = vrot.lane.b32.xlu0 %v87, 64
    %v606 = vpop.permute.xlu0 %605
    %607 = vrot.lane.b32.xlu0 %v88, 64
    %v608 = vpop.permute.xlu0 %607
    %609 = vrot.lane.b32.xlu0 %v89, 64
    %v610 = vpop.permute.xlu0 %609
    %611 = vrot.lane.b32.xlu0 %v90, 64
    %v612 = vpop.permute.xlu0 %611
    %613 = vrot.lane.b32.xlu0 %v91, 64
    %v614 = vpop.permute.xlu0 %613
    %vm615 = vcmask 523264
    %v616 = vsel %vm615, %v548, 0
    %v618 = vsel %vm615, %v550, 0
    %v620 = vsel %vm615, %v552, 0
    %v622 = vsel %vm615, %v554, 0
    %v624 = vsel %vm615, %v556, 0
    %v626 = vsel %vm615, %v558, 0
    %v628 = vsel %vm615, %v560, 0
    %v630 = vsel %vm615, %v562, 0
    %v632 = vsel %vm615, %v564, 0
    %v634 = vsel %vm615, %v566, 0
    %v636 = vsel %vm615, %v568, 0
    %v638 = vsel %vm615, %v570, 0
    %v640 = vsel %vm615, %v572, 0
    %v642 = vsel %vm615, %v574, 0
    %v644 = vsel %vm615, %v576, 0
    %v646 = vsel %vm615, %v578, 0
    %v648 = vsel %vm615, %v580, 0
    %v650 = vsel %vm615, %v582, 0
    %v652 = vsel %vm615, %v584, 0
    %v654 = vsel %vm615, %v586, 0
    %v656 = vsel %vm615, %v588, 0
    %v658 = vsel %vm615, %v590, 0
    %v660 = vsel %vm615, %v592, 0
    %v662 = vsel %vm615, %v594, 0
    %v664 = vsel %vm615, %v596, 0
    %v666 = vsel %vm615, %v598, 0
    %v668 = vsel %vm615, %v600, 0
    %v670 = vsel %vm615, %v602, 0
    %v672 = vsel %vm615, %v604, 0
    %v674 = vsel %vm615, %v606, 0
    %v676 = vsel %vm615, %v608, 0
    %v678 = vsel %vm615, %v610, 0
    %v680 = vsel %vm615, %v612, 0
    %v682 = vsel %vm615, %v614, 0
    %684 = vmatpush.msra.mxu0 0.0
    %685 = vmatpush.msra.mxu0 0.0
    %686 = vmatpush.msra.mxu0 0.0
    %687 = vmatpush.msra.mxu0 0.0
    %688 = vmatpush.msra.mxu0 0.0
    %689 = vmatpush.msra.mxu0 0.0
    %690 = vmatpush.msra.mxu0 0.0
    %691 = vmatpush.msra.mxu0 0.0
    %692 = vmatpush.msra.mxu0 %v45
    %693 = vmatpush.msra.mxu0 %v43
    %694 = vmatpush.msra.mxu0 %v41
    %695 = vmatpush.msra.mxu0 %v39
    %696 = vmatpush.msra.mxu0 %v37
    %697 = vmatpush.msra.mxu0 %v35
    %698 = vmatpush.msra.mxu0 %v33
    %699 = vmatpush.msra.mxu0 %v31
    %700 = vmatmul.f32.gmra.mxu0 %v616
    %v701 = vpop.f32.mrf.mxu0
    %v702 = vadd.f32 %v509, %v701
    %703 = vmatmul.f32.gmra.mxu0 %v618
    %v704 = vpop.f32.mrf.mxu0
    %v705 = vadd.f32 %v509, %v704
    %706 = vmatmul.f32.gmra.mxu0 %v620
    %v707 = vpop.f32.mrf.mxu0
    %v708 = vadd.f32 %v509, %v707
    %709 = vmatmul.f32.gmra.mxu0 %v622
    %v710 = vpop.f32.mrf.mxu0
    %v711 = vadd.f32 %v509, %v710
    %712 = vmatmul.f32.gmra.mxu0 %v624
    %v713 = vpop.f32.mrf.mxu0
    %v714 = vadd.f32 %v509, %v713
    %715 = vmatmul.f32.gmra.mxu0 %v626
    %v716 = vpop.f32.mrf.mxu0
    %v717 = vadd.f32 %v509, %v716
    %718 = vmatmul.f32.gmra.mxu0 %v628
    %v719 = vpop.f32.mrf.mxu0
    %v720 = vadd.f32 %v509, %v719
    %721 = vmatmul.f32.gmra.mxu0 %v630
    %v722 = vpop.f32.mrf.mxu0
    %v723 = vadd.f32 %v509, %v722
    %724 = vmatmul.f32.gmra.mxu0 %v632
    %v725 = vpop.f32.mrf.mxu0
    %v726 = vadd.f32 %v509, %v725
    %727 = vmatmul.f32.gmra.mxu0 %v634
    %v728 = vpop.f32.mrf.mxu0
    %v729 = vadd.f32 %v509, %v728
    %730 = vmatmul.f32.gmra.mxu0 %v636
    %v731 = vpop.f32.mrf.mxu0
    %v732 = vadd.f32 %v509, %v731
    %733 = vmatmul.f32.gmra.mxu0 %v638
    %v734 = vpop.f32.mrf.mxu0
    %v735 = vadd.f32 %v509, %v734
    %736 = vmatmul.f32.gmra.mxu0 %v640
    %v737 = vpop.f32.mrf.mxu0
    %v738 = vadd.f32 %v509, %v737
    %739 = vmatmul.f32.gmra.mxu0 %v642
    %v740 = vpop.f32.mrf.mxu0
    %v741 = vadd.f32 %v509, %v740
    %742 = vmatmul.f32.gmra.mxu0 %v644
    %v743 = vpop.f32.mrf.mxu0
    %v744 = vadd.f32 %v509, %v743
    %745 = vmatmul.f32.gmra.mxu0 %v646
    %v746 = vpop.f32.mrf.mxu0
    %v747 = vadd.f32 %v509, %v746
    %748 = vmatmul.f32.gmra.mxu0 %v648
    %v749 = vpop.f32.mrf.mxu0
    %v750 = vadd.f32 %v509, %v749
    %751 = vmatmul.f32.gmra.mxu0 %v650
    %v752 = vpop.f32.mrf.mxu0
    %v753 = vadd.f32 %v509, %v752
    %754 = vmatmul.f32.gmra.mxu0 %v652
    %v755 = vpop.f32.mrf.mxu0
    %v756 = vadd.f32 %v509, %v755
    %757 = vmatmul.f32.gmra.mxu0 %v654
    %v758 = vpop.f32.mrf.mxu0
    %v759 = vadd.f32 %v509, %v758
    %760 = vmatmul.f32.gmra.mxu0 %v656
    %v761 = vpop.f32.mrf.mxu0
    %v762 = vadd.f32 %v509, %v761
    %763 = vmatmul.f32.gmra.mxu0 %v658
    %v764 = vpop.f32.mrf.mxu0
    %v765 = vadd.f32 %v509, %v764
    %766 = vmatmul.f32.gmra.mxu0 %v660
    %v767 = vpop.f32.mrf.mxu0
    %v768 = vadd.f32 %v509, %v767
    %769 = vmatmul.f32.gmra.mxu0 %v662
    %v770 = vpop.f32.mrf.mxu0
    %v771 = vadd.f32 %v509, %v770
    %772 = vmatmul.f32.gmra.mxu0 %v664
    %v773 = vpop.f32.mrf.mxu0
    %v774 = vadd.f32 %v509, %v773
    %775 = vmatmul.f32.gmra.mxu0 %v666
    %v776 = vpop.f32.mrf.mxu0
    %v777 = vadd.f32 %v509, %v776
    %778 = vmatmul.f32.gmra.mxu0 %v668
    %v779 = vpop.f32.mrf.mxu0
    %v780 = vadd.f32 %v509, %v779
    %781 = vmatmul.f32.gmra.mxu0 %v670
    %v782 = vpop.f32.mrf.mxu0
    %v783 = vadd.f32 %v509, %v782
    %784 = vmatmul.f32.gmra.mxu0 %v672
    %v785 = vpop.f32.mrf.mxu0
    %v786 = vadd.f32 %v509, %v785
    %787 = vmatmul.f32.gmra.mxu0 %v674
    %v788 = vpop.f32.mrf.mxu0
    %v789 = vadd.f32 %v509, %v788
    %790 = vmatmul.f32.gmra.mxu0 %v676
    %v791 = vpop.f32.mrf.mxu0
    %v792 = vadd.f32 %v509, %v791
    %793 = vmatmul.f32.gmra.mxu0 %v678
    %v794 = vpop.f32.mrf.mxu0
    %v795 = vadd.f32 %v509, %v794
    %796 = vmatmul.f32.gmra.mxu0 %v680
    %v797 = vpop.f32.mrf.mxu0
    %v798 = vadd.f32 %v509, %v797
    %799 = vmatmul.f32.gmra.mxu0 %v682
    %v800 = vpop.f32.mrf.mxu0
    %v801 = vadd.f32 %v509, %v800
    %802 = vdwg.mxu0
    %803 = vmatpush.msra.mxu0 0.0
    %804 = vmatpush.msra.mxu0 0.0
    %805 = vmatpush.msra.mxu0 0.0
    %806 = vmatpush.msra.mxu0 0.0
    %807 = vmatpush.msra.mxu0 0.0
    %808 = vmatpush.msra.mxu0 0.0
    %809 = vmatpush.msra.mxu0 0.0
    %810 = vmatpush.msra.mxu0 0.0
    %811 = vmatpush.msra.mxu0 %v46
    %812 = vmatpush.msra.mxu0 %v44
    %813 = vmatpush.msra.mxu0 %v42
    %814 = vmatpush.msra.mxu0 %v40
    %815 = vmatpush.msra.mxu0 %v38
    %816 = vmatpush.msra.mxu0 %v36
    %817 = vmatpush.msra.mxu0 %v34
    %818 = vmatpush.msra.mxu0 %v32
    %819 = vmatmul.f32.gmra.mxu0 %v616
    %v820 = vpop.f32.mrf.mxu0
    %v821 = vadd.f32 %v510, %v820
    %822 = vmatmul.f32.gmra.mxu0 %v618
    %v823 = vpop.f32.mrf.mxu0
    %v824 = vadd.f32 %v510, %v823
    %825 = vmatmul.f32.gmra.mxu0 %v620
    %v826 = vpop.f32.mrf.mxu0
    %v827 = vadd.f32 %v510, %v826
    %828 = vmatmul.f32.gmra.mxu0 %v622
    %v829 = vpop.f32.mrf.mxu0
    %v830 = vadd.f32 %v510, %v829
    %831 = vmatmul.f32.gmra.mxu0 %v624
    %v832 = vpop.f32.mrf.mxu0
    %v833 = vadd.f32 %v510, %v832
    %834 = vmatmul.f32.gmra.mxu0 %v626
    %v835 = vpop.f32.mrf.mxu0
    %v836 = vadd.f32 %v510, %v835
    %837 = vmatmul.f32.gmra.mxu0 %v628
    %v838 = vpop.f32.mrf.mxu0
    %v839 = vadd.f32 %v510, %v838
    %840 = vmatmul.f32.gmra.mxu0 %v630
    %v841 = vpop.f32.mrf.mxu0
    %v842 = vadd.f32 %v510, %v841
    %843 = vmatmul.f32.gmra.mxu0 %v632
    %v844 = vpop.f32.mrf.mxu0
    %v845 = vadd.f32 %v510, %v844
    %846 = vmatmul.f32.gmra.mxu0 %v634
    %v847 = vpop.f32.mrf.mxu0
    %v848 = vadd.f32 %v510, %v847
    %849 = vmatmul.f32.gmra.mxu0 %v636
    %v850 = vpop.f32.mrf.mxu0
    %v851 = vadd.f32 %v510, %v850
    %852 = vmatmul.f32.gmra.mxu0 %v638
    %v853 = vpop.f32.mrf.mxu0
    %v854 = vadd.f32 %v510, %v853
    %855 = vmatmul.f32.gmra.mxu0 %v640
    %v856 = vpop.f32.mrf.mxu0
    %v857 = vadd.f32 %v510, %v856
    %858 = vmatmul.f32.gmra.mxu0 %v642
    %v859 = vpop.f32.mrf.mxu0
    %v860 = vadd.f32 %v510, %v859
    %861 = vmatmul.f32.gmra.mxu0 %v644
    %v862 = vpop.f32.mrf.mxu0
    %v863 = vadd.f32 %v510, %v862
    %864 = vmatmul.f32.gmra.mxu0 %v646
    %v865 = vpop.f32.mrf.mxu0
    %v866 = vadd.f32 %v510, %v865
    %867 = vmatmul.f32.gmra.mxu0 %v648
    %v868 = vpop.f32.mrf.mxu0
    %v869 = vadd.f32 %v510, %v868
    %870 = vmatmul.f32.gmra.mxu0 %v650
    %v871 = vpop.f32.mrf.mxu0
    %v872 = vadd.f32 %v510, %v871
    %873 = vmatmul.f32.gmra.mxu0 %v652
    %v874 = vpop.f32.mrf.mxu0
    %v875 = vadd.f32 %v510, %v874
    %876 = vmatmul.f32.gmra.mxu0 %v654
    %v877 = vpop.f32.mrf.mxu0
    %v878 = vadd.f32 %v510, %v877
    %879 = vmatmul.f32.gmra.mxu0 %v656
    %v880 = vpop.f32.mrf.mxu0
    %v881 = vadd.f32 %v510, %v880
    %882 = vmatmul.f32.gmra.mxu0 %v658
    %v883 = vpop.f32.mrf.mxu0
    %v884 = vadd.f32 %v510, %v883
    %885 = vmatmul.f32.gmra.mxu0 %v660
    %v886 = vpop.f32.mrf.mxu0
    %v887 = vadd.f32 %v510, %v886
    %888 = vmatmul.f32.gmra.mxu0 %v662
    %v889 = vpop.f32.mrf.mxu0
    %v890 = vadd.f32 %v510, %v889
    %891 = vmatmul.f32.gmra.mxu0 %v664
    %v892 = vpop.f32.mrf.mxu0
    %v893 = vadd.f32 %v510, %v892
    %894 = vmatmul.f32.gmra.mxu0 %v666
    %v895 = vpop.f32.mrf.mxu0
    %v896 = vadd.f32 %v510, %v895
    %897 = vmatmul.f32.gmra.mxu0 %v668
    %v898 = vpop.f32.mrf.mxu0
    %v899 = vadd.f32 %v510, %v898
    %900 = vmatmul.f32.gmra.mxu0 %v670
    %v901 = vpop.f32.mrf.mxu0
    %v902 = vadd.f32 %v510, %v901
    %903 = vmatmul.f32.gmra.mxu0 %v672
    %v904 = vpop.f32.mrf.mxu0
    %v905 = vadd.f32 %v510, %v904
    %906 = vmatmul.f32.gmra.mxu0 %v674
    %v907 = vpop.f32.mrf.mxu0
    %v908 = vadd.f32 %v510, %v907
    %909 = vmatmul.f32.gmra.mxu0 %v676
    %v910 = vpop.f32.mrf.mxu0
    %v911 = vadd.f32 %v510, %v910
    %912 = vmatmul.f32.gmra.mxu0 %v678
    %v913 = vpop.f32.mrf.mxu0
    %v914 = vadd.f32 %v510, %v913
    %915 = vmatmul.f32.gmra.mxu0 %v680
    %v916 = vpop.f32.mrf.mxu0
    %v917 = vadd.f32 %v510, %v916
    %918 = vmatmul.f32.gmra.mxu0 %v682
    %v919 = vpop.f32.mrf.mxu0
    %v920 = vadd.f32 %v510, %v919
    %921 = vdwg.mxu0
    %v922 = vadd.f32 %v288, %v702
    %v923 = vadd.f32 %v291, %v705
    %v924 = vadd.f32 %v294, %v708
    %v925 = vadd.f32 %v297, %v711
    %v926 = vadd.f32 %v300, %v714
    %v927 = vadd.f32 %v303, %v717
    %v928 = vadd.f32 %v306, %v720
    %v929 = vadd.f32 %v309, %v723
    %v930 = vadd.f32 %v312, %v726
    %v931 = vadd.f32 %v315, %v729
    %v932 = vadd.f32 %v318, %v732
    %v933 = vadd.f32 %v321, %v735
    %v934 = vadd.f32 %v324, %v738
    %v935 = vadd.f32 %v327, %v741
    %v936 = vadd.f32 %v330, %v744
    %v937 = vadd.f32 %v333, %v747
    %v938 = vadd.f32 %v336, %v750
    %v939 = vadd.f32 %v339, %v753
    %v940 = vadd.f32 %v342, %v756
    %v941 = vadd.f32 %v345, %v759
    %v942 = vadd.f32 %v348, %v762
    %v943 = vadd.f32 %v351, %v765
    %v944 = vadd.f32 %v354, %v768
    %v945 = vadd.f32 %v357, %v771
    %v946 = vadd.f32 %v360, %v774
    %v947 = vadd.f32 %v363, %v777
    %v948 = vadd.f32 %v366, %v780
    %v949 = vadd.f32 %v369, %v783
    %v950 = vadd.f32 %v372, %v786
    %v951 = vadd.f32 %v375, %v789
    %v952 = vadd.f32 %v378, %v792
    %v953 = vadd.f32 %v381, %v795
    %v954 = vadd.f32 %v384, %v798
    %v955 = vadd.f32 %v387, %v801
    %v956 = vxor.u32 %v922, 2147483648
    %v957 = vxor.u32 %v923, 2147483648
    %v958 = vxor.u32 %v924, 2147483648
    %v959 = vxor.u32 %v925, 2147483648
    %v960 = vxor.u32 %v926, 2147483648
    %v961 = vxor.u32 %v927, 2147483648
    %v962 = vxor.u32 %v928, 2147483648
    %v963 = vxor.u32 %v929, 2147483648
    %v964 = vxor.u32 %v930, 2147483648
    %v965 = vxor.u32 %v931, 2147483648
    %v966 = vxor.u32 %v932, 2147483648
    %v967 = vxor.u32 %v933, 2147483648
    %v968 = vxor.u32 %v934, 2147483648
    %v969 = vxor.u32 %v935, 2147483648
    %v970 = vxor.u32 %v936, 2147483648
    %v971 = vxor.u32 %v937, 2147483648
    %v972 = vxor.u32 %v938, 2147483648
    %v973 = vxor.u32 %v939, 2147483648
    %v974 = vxor.u32 %v940, 2147483648
    %v975 = vxor.u32 %v941, 2147483648
    %v976 = vxor.u32 %v942, 2147483648
    %v977 = vxor.u32 %v943, 2147483648
    %v978 = vxor.u32 %v944, 2147483648
    %v979 = vxor.u32 %v945, 2147483648
    %v980 = vxor.u32 %v946, 2147483648
    %v981 = vxor.u32 %v947, 2147483648
    %v982 = vxor.u32 %v948, 2147483648
    %v983 = vxor.u32 %v949, 2147483648
    %v984 = vxor.u32 %v950, 2147483648
    %v985 = vxor.u32 %v951, 2147483648
    %v986 = vxor.u32 %v952, 2147483648
    %v987 = vxor.u32 %v953, 2147483648
    %v988 = vxor.u32 %v954, 2147483648
    %v989 = vxor.u32 %v955, 2147483648
    %v990 = vmul.f32 %v956, 1.442695
    %v991 = vpow.pop %v990
    %v992 = vmul.f32 %v957, 1.442695
    %v993 = vpow.pop %v992
    %v994 = vmul.f32 %v958, 1.442695
    %v995 = vpow.pop %v994
    %v996 = vmul.f32 %v959, 1.442695
    %v997 = vpow.pop %v996
    %v998 = vmul.f32 %v960, 1.442695
    %v999 = vpow.pop %v998
    %v1000 = vmul.f32 %v961, 1.442695
    %v1001 = vpow.pop %v1000
    %v1002 = vmul.f32 %v962, 1.442695
    %v1003 = vpow.pop %v1002
    %v1004 = vmul.f32 %v963, 1.442695
    %v1005 = vpow.pop %v1004
    %v1006 = vmul.f32 %v964, 1.442695
    %v1007 = vpow.pop %v1006
    %v1008 = vmul.f32 %v965, 1.442695
    %v1009 = vpow.pop %v1008
    %v1010 = vmul.f32 %v966, 1.442695
    %v1011 = vpow.pop %v1010
    %v1012 = vmul.f32 %v967, 1.442695
    %v1013 = vpow.pop %v1012
    %v1014 = vmul.f32 %v968, 1.442695
    %v1015 = vpow.pop %v1014
    %v1016 = vmul.f32 %v969, 1.442695
    %v1017 = vpow.pop %v1016
    %v1018 = vmul.f32 %v970, 1.442695
    %v1019 = vpow.pop %v1018
    %v1020 = vmul.f32 %v971, 1.442695
    %v1021 = vpow.pop %v1020
    %v1022 = vmul.f32 %v972, 1.442695
    %v1023 = vpow.pop %v1022
    %v1024 = vmul.f32 %v973, 1.442695
    %v1025 = vpow.pop %v1024
    %v1026 = vmul.f32 %v974, 1.442695
    %v1027 = vpow.pop %v1026
    %v1028 = vmul.f32 %v975, 1.442695
    %v1029 = vpow.pop %v1028
    %v1030 = vmul.f32 %v976, 1.442695
    %v1031 = vpow.pop %v1030
    %v1032 = vmul.f32 %v977, 1.442695
    %v1033 = vpow.pop %v1032
    %v1034 = vmul.f32 %v978, 1.442695
    %v1035 = vpow.pop %v1034
    %v1036 = vmul.f32 %v979, 1.442695
    %v1037 = vpow.pop %v1036
    %v1038 = vmul.f32 %v980, 1.442695
    %v1039 = vpow.pop %v1038
    %v1040 = vmul.f32 %v981, 1.442695
    %v1041 = vpow.pop %v1040
    %v1042 = vmul.f32 %v982, 1.442695
    %v1043 = vpow.pop %v1042
    %v1044 = vmul.f32 %v983, 1.442695
    %v1045 = vpow.pop %v1044
    %v1046 = vmul.f32 %v984, 1.442695
    %v1047 = vpow.pop %v1046
    %v1048 = vmul.f32 %v985, 1.442695
    %v1049 = vpow.pop %v1048
    %v1050 = vmul.f32 %v986, 1.442695
    %v1051 = vpow.pop %v1050
    %v1052 = vmul.f32 %v987, 1.442695
    %v1053 = vpow.pop %v1052
    %v1054 = vmul.f32 %v988, 1.442695
    %v1055 = vpow.pop %v1054
    %v1056 = vmul.f32 %v989, 1.442695
    %v1057 = vpow.pop %v1056
    %v1058 = vadd.f32 %v991, 1.0
    %v1059 = vadd.f32 %v993, 1.0
    %v1060 = vadd.f32 %v995, 1.0
    %v1061 = vadd.f32 %v997, 1.0
    %v1062 = vadd.f32 %v999, 1.0
    %v1063 = vadd.f32 %v1001, 1.0
    %v1064 = vadd.f32 %v1003, 1.0
    %v1065 = vadd.f32 %v1005, 1.0
    %v1066 = vadd.f32 %v1007, 1.0
    %v1067 = vadd.f32 %v1009, 1.0
    %v1068 = vadd.f32 %v1011, 1.0
    %v1069 = vadd.f32 %v1013, 1.0
    %v1070 = vadd.f32 %v1015, 1.0
    %v1071 = vadd.f32 %v1017, 1.0
    %v1072 = vadd.f32 %v1019, 1.0
    %v1073 = vadd.f32 %v1021, 1.0
    %v1074 = vadd.f32 %v1023, 1.0
    %v1075 = vadd.f32 %v1025, 1.0
    %v1076 = vadd.f32 %v1027, 1.0
    %v1077 = vadd.f32 %v1029, 1.0
    %v1078 = vadd.f32 %v1031, 1.0
    %v1079 = vadd.f32 %v1033, 1.0
    %v1080 = vadd.f32 %v1035, 1.0
    %v1081 = vadd.f32 %v1037, 1.0
    %v1082 = vadd.f32 %v1039, 1.0
    %v1083 = vadd.f32 %v1041, 1.0
    %v1084 = vadd.f32 %v1043, 1.0
    %v1085 = vadd.f32 %v1045, 1.0
    %v1086 = vadd.f32 %v1047, 1.0
    %v1087 = vadd.f32 %v1049, 1.0
    %v1088 = vadd.f32 %v1051, 1.0
    %v1089 = vadd.f32 %v1053, 1.0
    %v1090 = vadd.f32 %v1055, 1.0
    %v1091 = vadd.f32 %v1057, 1.0
    %v1092 = vrcp.pop %v1058
    %v1093 = vmul.f32 %v1058, %v1092
    %v1094 = vsub.f32 1.0, %v1093
    %v1095 = vmul.f32 %v1092, %v1094
    %v1096 = vadd.f32 %v1092, %v1095
    %vm1097 = vweird.f32 %v1058
    %vm1098 = vweird.f32 %v1092
    %vm1099 = vmor %vm1097, %vm1098
    %v1100 = vsel %vm1099, %v1092, %v1096
    %v1101 = vand.u32 2147483647, %v1058
    %vm1102 = vcmp.eq.f32.partialorder %v1101, 8.507059e+37
    %v1103 = vand.u32 %v1058, 2147483648
    %v1104 = vor.u32 1.1754944e-38, %v1103
    %v1105 = vsel %vm1102, %v1104, %v1100
    %v1106 = vmul.f32 1.0, %v1105
    %v1107 = vrcp.pop %v1059
    %v1108 = vmul.f32 %v1059, %v1107
    %v1109 = vsub.f32 1.0, %v1108
    %v1110 = vmul.f32 %v1107, %v1109
    %v1111 = vadd.f32 %v1107, %v1110
    %vm1112 = vweird.f32 %v1059
    %vm1113 = vweird.f32 %v1107
    %vm1114 = vmor %vm1112, %vm1113
    %v1115 = vsel %vm1114, %v1107, %v1111
    %v1116 = vand.u32 2147483647, %v1059
    %vm1117 = vcmp.eq.f32.partialorder %v1116, 8.507059e+37
    %v1118 = vand.u32 %v1059, 2147483648
    %v1119 = vor.u32 1.1754944e-38, %v1118
    %v1120 = vsel %vm1117, %v1119, %v1115
    %v1121 = vmul.f32 1.0, %v1120
    %v1122 = vrcp.pop %v1060
    %v1123 = vmul.f32 %v1060, %v1122
    %v1124 = vsub.f32 1.0, %v1123
    %v1125 = vmul.f32 %v1122, %v1124
    %v1126 = vadd.f32 %v1122, %v1125
    %vm1127 = vweird.f32 %v1060
    %vm1128 = vweird.f32 %v1122
    %vm1129 = vmor %vm1127, %vm1128
    %v1130 = vsel %vm1129, %v1122, %v1126
    %v1131 = vand.u32 2147483647, %v1060
    %vm1132 = vcmp.eq.f32.partialorder %v1131, 8.507059e+37
    %v1133 = vand.u32 %v1060, 2147483648
    %v1134 = vor.u32 1.1754944e-38, %v1133
    %v1135 = vsel %vm1132, %v1134, %v1130
    %v1136 = vmul.f32 1.0, %v1135
    %v1137 = vrcp.pop %v1061
    %v1138 = vmul.f32 %v1061, %v1137
    %v1139 = vsub.f32 1.0, %v1138
    %v1140 = vmul.f32 %v1137, %v1139
    %v1141 = vadd.f32 %v1137, %v1140
    %vm1142 = vweird.f32 %v1061
    %vm1143 = vweird.f32 %v1137
    %vm1144 = vmor %vm1142, %vm1143
    %v1145 = vsel %vm1144, %v1137, %v1141
    %v1146 = vand.u32 2147483647, %v1061
    %vm1147 = vcmp.eq.f32.partialorder %v1146, 8.507059e+37
    %v1148 = vand.u32 %v1061, 2147483648
    %v1149 = vor.u32 1.1754944e-38, %v1148
    %v1150 = vsel %vm1147, %v1149, %v1145
    %v1151 = vmul.f32 1.0, %v1150
    %v1152 = vrcp.pop %v1062
    %v1153 = vmul.f32 %v1062, %v1152
    %v1154 = vsub.f32 1.0, %v1153
    %v1155 = vmul.f32 %v1152, %v1154
    %v1156 = vadd.f32 %v1152, %v1155
    %vm1157 = vweird.f32 %v1062
    %vm1158 = vweird.f32 %v1152
    %vm1159 = vmor %vm1157, %vm1158
    %v1160 = vsel %vm1159, %v1152, %v1156
    %v1161 = vand.u32 2147483647, %v1062
    %vm1162 = vcmp.eq.f32.partialorder %v1161, 8.507059e+37
    %v1163 = vand.u32 %v1062, 2147483648
    %v1164 = vor.u32 1.1754944e-38, %v1163
    %v1165 = vsel %vm1162, %v1164, %v1160
    %v1166 = vmul.f32 1.0, %v1165
    %v1167 = vrcp.pop %v1063
    %v1168 = vmul.f32 %v1063, %v1167
    %v1169 = vsub.f32 1.0, %v1168
    %v1170 = vmul.f32 %v1167, %v1169
    %v1171 = vadd.f32 %v1167, %v1170
    %vm1172 = vweird.f32 %v1063
    %vm1173 = vweird.f32 %v1167
    %vm1174 = vmor %vm1172, %vm1173
    %v1175 = vsel %vm1174, %v1167, %v1171
    %v1176 = vand.u32 2147483647, %v1063
    %vm1177 = vcmp.eq.f32.partialorder %v1176, 8.507059e+37
    %v1178 = vand.u32 %v1063, 2147483648
    %v1179 = vor.u32 1.1754944e-38, %v1178
    %v1180 = vsel %vm1177, %v1179, %v1175
    %v1181 = vmul.f32 1.0, %v1180
    %v1182 = vrcp.pop %v1064
    %v1183 = vmul.f32 %v1064, %v1182
    %v1184 = vsub.f32 1.0, %v1183
    %v1185 = vmul.f32 %v1182, %v1184
    %v1186 = vadd.f32 %v1182, %v1185
    %vm1187 = vweird.f32 %v1064
    %vm1188 = vweird.f32 %v1182
    %vm1189 = vmor %vm1187, %vm1188
    %v1190 = vsel %vm1189, %v1182, %v1186
    %v1191 = vand.u32 2147483647, %v1064
    %vm1192 = vcmp.eq.f32.partialorder %v1191, 8.507059e+37
    %v1193 = vand.u32 %v1064, 2147483648
    %v1194 = vor.u32 1.1754944e-38, %v1193
    %v1195 = vsel %vm1192, %v1194, %v1190
    %v1196 = vmul.f32 1.0, %v1195
    %v1197 = vrcp.pop %v1065
    %v1198 = vmul.f32 %v1065, %v1197
    %v1199 = vsub.f32 1.0, %v1198
    %v1200 = vmul.f32 %v1197, %v1199
    %v1201 = vadd.f32 %v1197, %v1200
    %vm1202 = vweird.f32 %v1065
    %vm1203 = vweird.f32 %v1197
    %vm1204 = vmor %vm1202, %vm1203
    %v1205 = vsel %vm1204, %v1197, %v1201
    %v1206 = vand.u32 2147483647, %v1065
    %vm1207 = vcmp.eq.f32.partialorder %v1206, 8.507059e+37
    %v1208 = vand.u32 %v1065, 2147483648
    %v1209 = vor.u32 1.1754944e-38, %v1208
    %v1210 = vsel %vm1207, %v1209, %v1205
    %v1211 = vmul.f32 1.0, %v1210
    %v1212 = vrcp.pop %v1066
    %v1213 = vmul.f32 %v1066, %v1212
    %v1214 = vsub.f32 1.0, %v1213
    %v1215 = vmul.f32 %v1212, %v1214
    %v1216 = vadd.f32 %v1212, %v1215
    %vm1217 = vweird.f32 %v1066
    %vm1218 = vweird.f32 %v1212
    %vm1219 = vmor %vm1217, %vm1218
    %v1220 = vsel %vm1219, %v1212, %v1216
    %v1221 = vand.u32 2147483647, %v1066
    %vm1222 = vcmp.eq.f32.partialorder %v1221, 8.507059e+37
    %v1223 = vand.u32 %v1066, 2147483648
    %v1224 = vor.u32 1.1754944e-38, %v1223
    %v1225 = vsel %vm1222, %v1224, %v1220
    %v1226 = vmul.f32 1.0, %v1225
    %v1227 = vrcp.pop %v1067
    %v1228 = vmul.f32 %v1067, %v1227
    %v1229 = vsub.f32 1.0, %v1228
    %v1230 = vmul.f32 %v1227, %v1229
    %v1231 = vadd.f32 %v1227, %v1230
    %vm1232 = vweird.f32 %v1067
    %vm1233 = vweird.f32 %v1227
    %vm1234 = vmor %vm1232, %vm1233
    %v1235 = vsel %vm1234, %v1227, %v1231
    %v1236 = vand.u32 2147483647, %v1067
    %vm1237 = vcmp.eq.f32.partialorder %v1236, 8.507059e+37
    %v1238 = vand.u32 %v1067, 2147483648
    %v1239 = vor.u32 1.1754944e-38, %v1238
    %v1240 = vsel %vm1237, %v1239, %v1235
    %v1241 = vmul.f32 1.0, %v1240
    %v1242 = vrcp.pop %v1068
    %v1243 = vmul.f32 %v1068, %v1242
    %v1244 = vsub.f32 1.0, %v1243
    %v1245 = vmul.f32 %v1242, %v1244
    %v1246 = vadd.f32 %v1242, %v1245
    %vm1247 = vweird.f32 %v1068
    %vm1248 = vweird.f32 %v1242
    %vm1249 = vmor %vm1247, %vm1248
    %v1250 = vsel %vm1249, %v1242, %v1246
    %v1251 = vand.u32 2147483647, %v1068
    %vm1252 = vcmp.eq.f32.partialorder %v1251, 8.507059e+37
    %v1253 = vand.u32 %v1068, 2147483648
    %v1254 = vor.u32 1.1754944e-38, %v1253
    %v1255 = vsel %vm1252, %v1254, %v1250
    %v1256 = vmul.f32 1.0, %v1255
    %v1257 = vrcp.pop %v1069
    %v1258 = vmul.f32 %v1069, %v1257
    %v1259 = vsub.f32 1.0, %v1258
    %v1260 = vmul.f32 %v1257, %v1259
    %v1261 = vadd.f32 %v1257, %v1260
    %vm1262 = vweird.f32 %v1069
    %vm1263 = vweird.f32 %v1257
    %vm1264 = vmor %vm1262, %vm1263
    %v1265 = vsel %vm1264, %v1257, %v1261
    %v1266 = vand.u32 2147483647, %v1069
    %vm1267 = vcmp.eq.f32.partialorder %v1266, 8.507059e+37
    %v1268 = vand.u32 %v1069, 2147483648
    %v1269 = vor.u32 1.1754944e-38, %v1268
    %v1270 = vsel %vm1267, %v1269, %v1265
    %v1271 = vmul.f32 1.0, %v1270
    %v1272 = vrcp.pop %v1070
    %v1273 = vmul.f32 %v1070, %v1272
    %v1274 = vsub.f32 1.0, %v1273
    %v1275 = vmul.f32 %v1272, %v1274
    %v1276 = vadd.f32 %v1272, %v1275
    %vm1277 = vweird.f32 %v1070
    %vm1278 = vweird.f32 %v1272
    %vm1279 = vmor %vm1277, %vm1278
    %v1280 = vsel %vm1279, %v1272, %v1276
    %v1281 = vand.u32 2147483647, %v1070
    %vm1282 = vcmp.eq.f32.partialorder %v1281, 8.507059e+37
    %v1283 = vand.u32 %v1070, 2147483648
    %v1284 = vor.u32 1.1754944e-38, %v1283
    %v1285 = vsel %vm1282, %v1284, %v1280
    %v1286 = vmul.f32 1.0, %v1285
    %v1287 = vrcp.pop %v1071
    %v1288 = vmul.f32 %v1071, %v1287
    %v1289 = vsub.f32 1.0, %v1288
    %v1290 = vmul.f32 %v1287, %v1289
    %v1291 = vadd.f32 %v1287, %v1290
    %vm1292 = vweird.f32 %v1071
    %vm1293 = vweird.f32 %v1287
    %vm1294 = vmor %vm1292, %vm1293
    %v1295 = vsel %vm1294, %v1287, %v1291
    %v1296 = vand.u32 2147483647, %v1071
    %vm1297 = vcmp.eq.f32.partialorder %v1296, 8.507059e+37
    %v1298 = vand.u32 %v1071, 2147483648
    %v1299 = vor.u32 1.1754944e-38, %v1298
    %v1300 = vsel %vm1297, %v1299, %v1295
    %v1301 = vmul.f32 1.0, %v1300
    %v1302 = vrcp.pop %v1072
    %v1303 = vmul.f32 %v1072, %v1302
    %v1304 = vsub.f32 1.0, %v1303
    %v1305 = vmul.f32 %v1302, %v1304
    %v1306 = vadd.f32 %v1302, %v1305
    %vm1307 = vweird.f32 %v1072
    %vm1308 = vweird.f32 %v1302
    %vm1309 = vmor %vm1307, %vm1308
    %v1310 = vsel %vm1309, %v1302, %v1306
    %v1311 = vand.u32 2147483647, %v1072
    %vm1312 = vcmp.eq.f32.partialorder %v1311, 8.507059e+37
    %v1313 = vand.u32 %v1072, 2147483648
    %v1314 = vor.u32 1.1754944e-38, %v1313
    %v1315 = vsel %vm1312, %v1314, %v1310
    %v1316 = vmul.f32 1.0, %v1315
    %v1317 = vrcp.pop %v1073
    %v1318 = vmul.f32 %v1073, %v1317
    %v1319 = vsub.f32 1.0, %v1318
    %v1320 = vmul.f32 %v1317, %v1319
    %v1321 = vadd.f32 %v1317, %v1320
    %vm1322 = vweird.f32 %v1073
    %vm1323 = vweird.f32 %v1317
    %vm1324 = vmor %vm1322, %vm1323
    %v1325 = vsel %vm1324, %v1317, %v1321
    %v1326 = vand.u32 2147483647, %v1073
    %vm1327 = vcmp.eq.f32.partialorder %v1326, 8.507059e+37
    %v1328 = vand.u32 %v1073, 2147483648
    %v1329 = vor.u32 1.1754944e-38, %v1328
    %v1330 = vsel %vm1327, %v1329, %v1325
    %v1331 = vmul.f32 1.0, %v1330
    %v1332 = vrcp.pop %v1074
    %v1333 = vmul.f32 %v1074, %v1332
    %v1334 = vsub.f32 1.0, %v1333
    %v1335 = vmul.f32 %v1332, %v1334
    %v1336 = vadd.f32 %v1332, %v1335
    %vm1337 = vweird.f32 %v1074
    %vm1338 = vweird.f32 %v1332
    %vm1339 = vmor %vm1337, %vm1338
    %v1340 = vsel %vm1339, %v1332, %v1336
    %v1341 = vand.u32 2147483647, %v1074
    %vm1342 = vcmp.eq.f32.partialorder %v1341, 8.507059e+37
    %v1343 = vand.u32 %v1074, 2147483648
    %v1344 = vor.u32 1.1754944e-38, %v1343
    %v1345 = vsel %vm1342, %v1344, %v1340
    %v1346 = vmul.f32 1.0, %v1345
    %v1347 = vrcp.pop %v1075
    %v1348 = vmul.f32 %v1075, %v1347
    %v1349 = vsub.f32 1.0, %v1348
    %v1350 = vmul.f32 %v1347, %v1349
    %v1351 = vadd.f32 %v1347, %v1350
    %vm1352 = vweird.f32 %v1075
    %vm1353 = vweird.f32 %v1347
    %vm1354 = vmor %vm1352, %vm1353
    %v1355 = vsel %vm1354, %v1347, %v1351
    %v1356 = vand.u32 2147483647, %v1075
    %vm1357 = vcmp.eq.f32.partialorder %v1356, 8.507059e+37
    %v1358 = vand.u32 %v1075, 2147483648
    %v1359 = vor.u32 1.1754944e-38, %v1358
    %v1360 = vsel %vm1357, %v1359, %v1355
    %v1361 = vmul.f32 1.0, %v1360
    %v1362 = vrcp.pop %v1076
    %v1363 = vmul.f32 %v1076, %v1362
    %v1364 = vsub.f32 1.0, %v1363
    %v1365 = vmul.f32 %v1362, %v1364
    %v1366 = vadd.f32 %v1362, %v1365
    %vm1367 = vweird.f32 %v1076
    %vm1368 = vweird.f32 %v1362
    %vm1369 = vmor %vm1367, %vm1368
    %v1370 = vsel %vm1369, %v1362, %v1366
    %v1371 = vand.u32 2147483647, %v1076
    %vm1372 = vcmp.eq.f32.partialorder %v1371, 8.507059e+37
    %v1373 = vand.u32 %v1076, 2147483648
    %v1374 = vor.u32 1.1754944e-38, %v1373
    %v1375 = vsel %vm1372, %v1374, %v1370
    %v1376 = vmul.f32 1.0, %v1375
    %v1377 = vrcp.pop %v1077
    %v1378 = vmul.f32 %v1077, %v1377
    %v1379 = vsub.f32 1.0, %v1378
    %v1380 = vmul.f32 %v1377, %v1379
    %v1381 = vadd.f32 %v1377, %v1380
    %vm1382 = vweird.f32 %v1077
    %vm1383 = vweird.f32 %v1377
    %vm1384 = vmor %vm1382, %vm1383
    %v1385 = vsel %vm1384, %v1377, %v1381
    %v1386 = vand.u32 2147483647, %v1077
    %vm1387 = vcmp.eq.f32.partialorder %v1386, 8.507059e+37
    %v1388 = vand.u32 %v1077, 2147483648
    %v1389 = vor.u32 1.1754944e-38, %v1388
    %v1390 = vsel %vm1387, %v1389, %v1385
    %v1391 = vmul.f32 1.0, %v1390
    %v1392 = vrcp.pop %v1078
    %v1393 = vmul.f32 %v1078, %v1392
    %v1394 = vsub.f32 1.0, %v1393
    %v1395 = vmul.f32 %v1392, %v1394
    %v1396 = vadd.f32 %v1392, %v1395
    %vm1397 = vweird.f32 %v1078
    %vm1398 = vweird.f32 %v1392
    %vm1399 = vmor %vm1397, %vm1398
    %v1400 = vsel %vm1399, %v1392, %v1396
    %v1401 = vand.u32 2147483647, %v1078
    %vm1402 = vcmp.eq.f32.partialorder %v1401, 8.507059e+37
    %v1403 = vand.u32 %v1078, 2147483648
    %v1404 = vor.u32 1.1754944e-38, %v1403
    %v1405 = vsel %vm1402, %v1404, %v1400
    %v1406 = vmul.f32 1.0, %v1405
    %v1407 = vrcp.pop %v1079
    %v1408 = vmul.f32 %v1079, %v1407
    %v1409 = vsub.f32 1.0, %v1408
    %v1410 = vmul.f32 %v1407, %v1409
    %v1411 = vadd.f32 %v1407, %v1410
    %vm1412 = vweird.f32 %v1079
    %vm1413 = vweird.f32 %v1407
    %vm1414 = vmor %vm1412, %vm1413
    %v1415 = vsel %vm1414, %v1407, %v1411
    %v1416 = vand.u32 2147483647, %v1079
    %vm1417 = vcmp.eq.f32.partialorder %v1416, 8.507059e+37
    %v1418 = vand.u32 %v1079, 2147483648
    %v1419 = vor.u32 1.1754944e-38, %v1418
    %v1420 = vsel %vm1417, %v1419, %v1415
    %v1421 = vmul.f32 1.0, %v1420
    %v1422 = vrcp.pop %v1080
    %v1423 = vmul.f32 %v1080, %v1422
    %v1424 = vsub.f32 1.0, %v1423
    %v1425 = vmul.f32 %v1422, %v1424
    %v1426 = vadd.f32 %v1422, %v1425
    %vm1427 = vweird.f32 %v1080
    %vm1428 = vweird.f32 %v1422
    %vm1429 = vmor %vm1427, %vm1428
    %v1430 = vsel %vm1429, %v1422, %v1426
    %v1431 = vand.u32 2147483647, %v1080
    %vm1432 = vcmp.eq.f32.partialorder %v1431, 8.507059e+37
    %v1433 = vand.u32 %v1080, 2147483648
    %v1434 = vor.u32 1.1754944e-38, %v1433
    %v1435 = vsel %vm1432, %v1434, %v1430
    %v1436 = vmul.f32 1.0, %v1435
    %v1437 = vrcp.pop %v1081
    %v1438 = vmul.f32 %v1081, %v1437
    %v1439 = vsub.f32 1.0, %v1438
    %v1440 = vmul.f32 %v1437, %v1439
    %v1441 = vadd.f32 %v1437, %v1440
    %vm1442 = vweird.f32 %v1081
    %vm1443 = vweird.f32 %v1437
    %vm1444 = vmor %vm1442, %vm1443
    %v1445 = vsel %vm1444, %v1437, %v1441
    %v1446 = vand.u32 2147483647, %v1081
    %vm1447 = vcmp.eq.f32.partialorder %v1446, 8.507059e+37
    %v1448 = vand.u32 %v1081, 2147483648
    %v1449 = vor.u32 1.1754944e-38, %v1448
    %v1450 = vsel %vm1447, %v1449, %v1445
    %v1451 = vmul.f32 1.0, %v1450
    %v1452 = vrcp.pop %v1082
    %v1453 = vmul.f32 %v1082, %v1452
    %v1454 = vsub.f32 1.0, %v1453
    %v1455 = vmul.f32 %v1452, %v1454
    %v1456 = vadd.f32 %v1452, %v1455
    %vm1457 = vweird.f32 %v1082
    %vm1458 = vweird.f32 %v1452
    %vm1459 = vmor %vm1457, %vm1458
    %v1460 = vsel %vm1459, %v1452, %v1456
    %v1461 = vand.u32 2147483647, %v1082
    %vm1462 = vcmp.eq.f32.partialorder %v1461, 8.507059e+37
    %v1463 = vand.u32 %v1082, 2147483648
    %v1464 = vor.u32 1.1754944e-38, %v1463
    %v1465 = vsel %vm1462, %v1464, %v1460
    %v1466 = vmul.f32 1.0, %v1465
    %v1467 = vrcp.pop %v1083
    %v1468 = vmul.f32 %v1083, %v1467
    %v1469 = vsub.f32 1.0, %v1468
    %v1470 = vmul.f32 %v1467, %v1469
    %v1471 = vadd.f32 %v1467, %v1470
    %vm1472 = vweird.f32 %v1083
    %vm1473 = vweird.f32 %v1467
    %vm1474 = vmor %vm1472, %vm1473
    %v1475 = vsel %vm1474, %v1467, %v1471
    %v1476 = vand.u32 2147483647, %v1083
    %vm1477 = vcmp.eq.f32.partialorder %v1476, 8.507059e+37
    %v1478 = vand.u32 %v1083, 2147483648
    %v1479 = vor.u32 1.1754944e-38, %v1478
    %v1480 = vsel %vm1477, %v1479, %v1475
    %v1481 = vmul.f32 1.0, %v1480
    %v1482 = vrcp.pop %v1084
    %v1483 = vmul.f32 %v1084, %v1482
    %v1484 = vsub.f32 1.0, %v1483
    %v1485 = vmul.f32 %v1482, %v1484
    %v1486 = vadd.f32 %v1482, %v1485
    %vm1487 = vweird.f32 %v1084
    %vm1488 = vweird.f32 %v1482
    %vm1489 = vmor %vm1487, %vm1488
    %v1490 = vsel %vm1489, %v1482, %v1486
    %v1491 = vand.u32 2147483647, %v1084
    %vm1492 = vcmp.eq.f32.partialorder %v1491, 8.507059e+37
    %v1493 = vand.u32 %v1084, 2147483648
    %v1494 = vor.u32 1.1754944e-38, %v1493
    %v1495 = vsel %vm1492, %v1494, %v1490
    %v1496 = vmul.f32 1.0, %v1495
    %v1497 = vrcp.pop %v1085
    %v1498 = vmul.f32 %v1085, %v1497
    %v1499 = vsub.f32 1.0, %v1498
    %v1500 = vmul.f32 %v1497, %v1499
    %v1501 = vadd.f32 %v1497, %v1500
    %vm1502 = vweird.f32 %v1085
    %vm1503 = vweird.f32 %v1497
    %vm1504 = vmor %vm1502, %vm1503
    %v1505 = vsel %vm1504, %v1497, %v1501
    %v1506 = vand.u32 2147483647, %v1085
    %vm1507 = vcmp.eq.f32.partialorder %v1506, 8.507059e+37
    %v1508 = vand.u32 %v1085, 2147483648
    %v1509 = vor.u32 1.1754944e-38, %v1508
    %v1510 = vsel %vm1507, %v1509, %v1505
    %v1511 = vmul.f32 1.0, %v1510
    %v1512 = vrcp.pop %v1086
    %v1513 = vmul.f32 %v1086, %v1512
    %v1514 = vsub.f32 1.0, %v1513
    %v1515 = vmul.f32 %v1512, %v1514
    %v1516 = vadd.f32 %v1512, %v1515
    %vm1517 = vweird.f32 %v1086
    %vm1518 = vweird.f32 %v1512
    %vm1519 = vmor %vm1517, %vm1518
    %v1520 = vsel %vm1519, %v1512, %v1516
    %v1521 = vand.u32 2147483647, %v1086
    %vm1522 = vcmp.eq.f32.partialorder %v1521, 8.507059e+37
    %v1523 = vand.u32 %v1086, 2147483648
    %v1524 = vor.u32 1.1754944e-38, %v1523
    %v1525 = vsel %vm1522, %v1524, %v1520
    %v1526 = vmul.f32 1.0, %v1525
    %v1527 = vrcp.pop %v1087
    %v1528 = vmul.f32 %v1087, %v1527
    %v1529 = vsub.f32 1.0, %v1528
    %v1530 = vmul.f32 %v1527, %v1529
    %v1531 = vadd.f32 %v1527, %v1530
    %vm1532 = vweird.f32 %v1087
    %vm1533 = vweird.f32 %v1527
    %vm1534 = vmor %vm1532, %vm1533
    %v1535 = vsel %vm1534, %v1527, %v1531
    %v1536 = vand.u32 2147483647, %v1087
    %vm1537 = vcmp.eq.f32.partialorder %v1536, 8.507059e+37
    %v1538 = vand.u32 %v1087, 2147483648
    %v1539 = vor.u32 1.1754944e-38, %v1538
    %v1540 = vsel %vm1537, %v1539, %v1535
    %v1541 = vmul.f32 1.0, %v1540
    %v1542 = vrcp.pop %v1088
    %v1543 = vmul.f32 %v1088, %v1542
    %v1544 = vsub.f32 1.0, %v1543
    %v1545 = vmul.f32 %v1542, %v1544
    %v1546 = vadd.f32 %v1542, %v1545
    %vm1547 = vweird.f32 %v1088
    %vm1548 = vweird.f32 %v1542
    %vm1549 = vmor %vm1547, %vm1548
    %v1550 = vsel %vm1549, %v1542, %v1546
    %v1551 = vand.u32 2147483647, %v1088
    %vm1552 = vcmp.eq.f32.partialorder %v1551, 8.507059e+37
    %v1553 = vand.u32 %v1088, 2147483648
    %v1554 = vor.u32 1.1754944e-38, %v1553
    %v1555 = vsel %vm1552, %v1554, %v1550
    %v1556 = vmul.f32 1.0, %v1555
    %v1557 = vrcp.pop %v1089
    %v1558 = vmul.f32 %v1089, %v1557
    %v1559 = vsub.f32 1.0, %v1558
    %v1560 = vmul.f32 %v1557, %v1559
    %v1561 = vadd.f32 %v1557, %v1560
    %vm1562 = vweird.f32 %v1089
    %vm1563 = vweird.f32 %v1557
    %vm1564 = vmor %vm1562, %vm1563
    %v1565 = vsel %vm1564, %v1557, %v1561
    %v1566 = vand.u32 2147483647, %v1089
    %vm1567 = vcmp.eq.f32.partialorder %v1566, 8.507059e+37
    %v1568 = vand.u32 %v1089, 2147483648
    %v1569 = vor.u32 1.1754944e-38, %v1568
    %v1570 = vsel %vm1567, %v1569, %v1565
    %v1571 = vmul.f32 1.0, %v1570
    %v1572 = vrcp.pop %v1090
    %v1573 = vmul.f32 %v1090, %v1572
    %v1574 = vsub.f32 1.0, %v1573
    %v1575 = vmul.f32 %v1572, %v1574
    %v1576 = vadd.f32 %v1572, %v1575
    %vm1577 = vweird.f32 %v1090
    %vm1578 = vweird.f32 %v1572
    %vm1579 = vmor %vm1577, %vm1578
    %v1580 = vsel %vm1579, %v1572, %v1576
    %v1581 = vand.u32 2147483647, %v1090
    %vm1582 = vcmp.eq.f32.partialorder %v1581, 8.507059e+37
    %v1583 = vand.u32 %v1090, 2147483648
    %v1584 = vor.u32 1.1754944e-38, %v1583
    %v1585 = vsel %vm1582, %v1584, %v1580
    %v1586 = vmul.f32 1.0, %v1585
    %v1587 = vrcp.pop %v1091
    %v1588 = vmul.f32 %v1091, %v1587
    %v1589 = vsub.f32 1.0, %v1588
    %v1590 = vmul.f32 %v1587, %v1589
    %v1591 = vadd.f32 %v1587, %v1590
    %vm1592 = vweird.f32 %v1091
    %vm1593 = vweird.f32 %v1587
    %vm1594 = vmor %vm1592, %vm1593
    %v1595 = vsel %vm1594, %v1587, %v1591
    %v1596 = vand.u32 2147483647, %v1091
    %vm1597 = vcmp.eq.f32.partialorder %v1596, 8.507059e+37
    %v1598 = vand.u32 %v1091, 2147483648
    %v1599 = vor.u32 1.1754944e-38, %v1598
    %v1600 = vsel %vm1597, %v1599, %v1595
    %v1601 = vmul.f32 1.0, %v1600
    %v1602 = vmul.f32 %v1106, %v821
    %v1603 = vmul.f32 %v1121, %v824
    %v1604 = vmul.f32 %v1136, %v827
    %v1605 = vmul.f32 %v1151, %v830
    %v1606 = vmul.f32 %v1166, %v833
    %v1607 = vmul.f32 %v1181, %v836
    %v1608 = vmul.f32 %v1196, %v839
    %v1609 = vmul.f32 %v1211, %v842
    %v1610 = vmul.f32 %v1226, %v845
    %v1611 = vmul.f32 %v1241, %v848
    %v1612 = vmul.f32 %v1256, %v851
    %v1613 = vmul.f32 %v1271, %v854
    %v1614 = vmul.f32 %v1286, %v857
    %v1615 = vmul.f32 %v1301, %v860
    %v1616 = vmul.f32 %v1316, %v863
    %v1617 = vmul.f32 %v1331, %v866
    %v1618 = vmul.f32 %v1346, %v869
    %v1619 = vmul.f32 %v1361, %v872
    %v1620 = vmul.f32 %v1376, %v875
    %v1621 = vmul.f32 %v1391, %v878
    %v1622 = vmul.f32 %v1406, %v881
    %v1623 = vmul.f32 %v1421, %v884
    %v1624 = vmul.f32 %v1436, %v887
    %v1625 = vmul.f32 %v1451, %v890
    %v1626 = vmul.f32 %v1466, %v893
    %v1627 = vmul.f32 %v1481, %v896
    %v1628 = vmul.f32 %v1496, %v899
    %v1629 = vmul.f32 %v1511, %v902
    %v1630 = vmul.f32 %v1526, %v905
    %v1631 = vmul.f32 %v1541, %v908
    %v1632 = vmul.f32 %v1556, %v911
    %v1633 = vmul.f32 %v1571, %v914
    %v1634 = vmul.f32 %v1586, %v917
    %v1635 = vmul.f32 %v1601, %v920
    %v1636 = vadd.f32 %v407, %v1602
    %v1637 = vadd.f32 %v410, %v1603
    %v1638 = vadd.f32 %v413, %v1604
    %v1639 = vadd.f32 %v416, %v1605
    %v1640 = vadd.f32 %v419, %v1606
    %v1641 = vadd.f32 %v422, %v1607
    %v1642 = vadd.f32 %v425, %v1608
    %v1643 = vadd.f32 %v428, %v1609
    %v1644 = vadd.f32 %v431, %v1610
    %v1645 = vadd.f32 %v434, %v1611
    %v1646 = vadd.f32 %v437, %v1612
    %v1647 = vadd.f32 %v440, %v1613
    %v1648 = vadd.f32 %v443, %v1614
    %v1649 = vadd.f32 %v446, %v1615
    %v1650 = vadd.f32 %v449, %v1616
    %v1651 = vadd.f32 %v452, %v1617
    %v1652 = vadd.f32 %v455, %v1618
    %v1653 = vadd.f32 %v458, %v1619
    %v1654 = vadd.f32 %v461, %v1620
    %v1655 = vadd.f32 %v464, %v1621
    %v1656 = vadd.f32 %v467, %v1622
    %v1657 = vadd.f32 %v470, %v1623
    %v1658 = vadd.f32 %v473, %v1624
    %v1659 = vadd.f32 %v476, %v1625
    %v1660 = vadd.f32 %v479, %v1626
    %v1661 = vadd.f32 %v482, %v1627
    %v1662 = vadd.f32 %v485, %v1628
    %v1663 = vadd.f32 %v488, %v1629
    %v1664 = vadd.f32 %v491, %v1630
    %v1665 = vadd.f32 %v494, %v1631
    %v1666 = vadd.f32 %v497, %v1632
    %v1667 = vadd.f32 %v500, %v1633
    %v1668 = vadd.f32 %v503, %v1634
    %v1669 = vadd.f32 %v506, %v1635
    %v1670 = vtanh.pop %v1636
    %v1671 = vtanh.pop %v1637
    %v1672 = vtanh.pop %v1638
    %v1673 = vtanh.pop %v1639
    %v1674 = vtanh.pop %v1640
    %v1675 = vtanh.pop %v1641
    %v1676 = vtanh.pop %v1642
    %v1677 = vtanh.pop %v1643
    %v1678 = vtanh.pop %v1644
    %v1679 = vtanh.pop %v1645
    %v1680 = vtanh.pop %v1646
    %v1681 = vtanh.pop %v1647
    %v1682 = vtanh.pop %v1648
    %v1683 = vtanh.pop %v1649
    %v1684 = vtanh.pop %v1650
    %v1685 = vtanh.pop %v1651
    %v1686 = vtanh.pop %v1652
    %v1687 = vtanh.pop %v1653
    %v1688 = vtanh.pop %v1654
    %v1689 = vtanh.pop %v1655
    %v1690 = vtanh.pop %v1656
    %v1691 = vtanh.pop %v1657
    %v1692 = vtanh.pop %v1658
    %v1693 = vtanh.pop %v1659
    %v1694 = vtanh.pop %v1660
    %v1695 = vtanh.pop %v1661
    %v1696 = vtanh.pop %v1662
    %v1697 = vtanh.pop %v1663
    %v1698 = vtanh.pop %v1664
    %v1699 = vtanh.pop %v1665
    %v1700 = vtanh.pop %v1666
    %v1701 = vtanh.pop %v1667
    %v1702 = vtanh.pop %v1668
    %v1703 = vtanh.pop %v1669
    %v1704 = vsub.f32 1.0, %v1106
    %v1705 = vsub.f32 1.0, %v1121
    %v1706 = vsub.f32 1.0, %v1136
    %v1707 = vsub.f32 1.0, %v1151
    %v1708 = vsub.f32 1.0, %v1166
    %v1709 = vsub.f32 1.0, %v1181
    %v1710 = vsub.f32 1.0, %v1196
    %v1711 = vsub.f32 1.0, %v1211
    %v1712 = vsub.f32 1.0, %v1226
    %v1713 = vsub.f32 1.0, %v1241
    %v1714 = vsub.f32 1.0, %v1256
    %v1715 = vsub.f32 1.0, %v1271
    %v1716 = vsub.f32 1.0, %v1286
    %v1717 = vsub.f32 1.0, %v1301
    %v1718 = vsub.f32 1.0, %v1316
    %v1719 = vsub.f32 1.0, %v1331
    %v1720 = vsub.f32 1.0, %v1346
    %v1721 = vsub.f32 1.0, %v1361
    %v1722 = vsub.f32 1.0, %v1376
    %v1723 = vsub.f32 1.0, %v1391
    %v1724 = vsub.f32 1.0, %v1406
    %v1725 = vsub.f32 1.0, %v1421
    %v1726 = vsub.f32 1.0, %v1436
    %v1727 = vsub.f32 1.0, %v1451
    %v1728 = vsub.f32 1.0, %v1466
    %v1729 = vsub.f32 1.0, %v1481
    %v1730 = vsub.f32 1.0, %v1496
    %v1731 = vsub.f32 1.0, %v1511
    %v1732 = vsub.f32 1.0, %v1526
    %v1733 = vsub.f32 1.0, %v1541
    %v1734 = vsub.f32 1.0, %v1556
    %v1735 = vsub.f32 1.0, %v1571
    %v1736 = vsub.f32 1.0, %v1586
    %v1737 = vsub.f32 1.0, %v1601
    %1772 = vrot.lane.b32.xlu0 %v1670, 64
    %v1773 = vpop.permute.xlu0 %1772
    %1774 = vrot.lane.b32.xlu0 %v1671, 64
    %v1775 = vpop.permute.xlu0 %1774
    %1776 = vrot.lane.b32.xlu0 %v1672, 64
    %v1777 = vpop.permute.xlu0 %1776
    %1778 = vrot.lane.b32.xlu0 %v1673, 64
    %v1779 = vpop.permute.xlu0 %1778
    %1780 = vrot.lane.b32.xlu0 %v1674, 64
    %v1781 = vpop.permute.xlu0 %1780
    %1782 = vrot.lane.b32.xlu0 %v1675, 64
    %v1783 = vpop.permute.xlu0 %1782
    %1784 = vrot.lane.b32.xlu0 %v1676, 64
    %v1785 = vpop.permute.xlu0 %1784
    %1786 = vrot.lane.b32.xlu0 %v1677, 64
    %v1787 = vpop.permute.xlu0 %1786
    %1788 = vrot.lane.b32.xlu0 %v1678, 64
    %v1789 = vpop.permute.xlu0 %1788
    %1790 = vrot.lane.b32.xlu0 %v1679, 64
    %v1791 = vpop.permute.xlu0 %1790
    %1792 = vrot.lane.b32.xlu0 %v1680, 64
    %v1793 = vpop.permute.xlu0 %1792
    %1794 = vrot.lane.b32.xlu0 %v1681, 64
    %v1795 = vpop.permute.xlu0 %1794
    %1796 = vrot.lane.b32.xlu0 %v1682, 64
    %v1797 = vpop.permute.xlu0 %1796
    %1798 = vrot.lane.b32.xlu0 %v1683, 64
    %v1799 = vpop.permute.xlu0 %1798
    %1800 = vrot.lane.b32.xlu0 %v1684, 64
    %v1801 = vpop.permute.xlu0 %1800
    %1802 = vrot.lane.b32.xlu0 %v1685, 64
    %v1803 = vpop.permute.xlu0 %1802
    %1804 = vrot.lane.b32.xlu0 %v1686, 64
    %v1805 = vpop.permute.xlu0 %1804
    %1806 = vrot.lane.b32.xlu0 %v1687, 64
    %v1807 = vpop.permute.xlu0 %1806
    %1808 = vrot.lane.b32.xlu0 %v1688, 64
    %v1809 = vpop.permute.xlu0 %1808
    %1810 = vrot.lane.b32.xlu0 %v1689, 64
    %v1811 = vpop.permute.xlu0 %1810
    %1812 = vrot.lane.b32.xlu0 %v1690, 64
    %v1813 = vpop.permute.xlu0 %1812
    %1814 = vrot.lane.b32.xlu0 %v1691, 64
    %v1815 = vpop.permute.xlu0 %1814
    %1816 = vrot.lane.b32.xlu0 %v1692, 64
    %v1817 = vpop.permute.xlu0 %1816
    %1818 = vrot.lane.b32.xlu0 %v1693, 64
    %v1819 = vpop.permute.xlu0 %1818
    %1820 = vrot.lane.b32.xlu0 %v1694, 64
    %v1821 = vpop.permute.xlu0 %1820
    %1822 = vrot.lane.b32.xlu0 %v1695, 64
    %v1823 = vpop.permute.xlu0 %1822
    %1824 = vrot.lane.b32.xlu0 %v1696, 64
    %v1825 = vpop.permute.xlu0 %1824
    %1826 = vrot.lane.b32.xlu0 %v1697, 64
    %v1827 = vpop.permute.xlu0 %1826
    %1828 = vrot.lane.b32.xlu0 %v1698, 64
    %v1829 = vpop.permute.xlu0 %1828
    %1830 = vrot.lane.b32.xlu0 %v1699, 64
    %v1831 = vpop.permute.xlu0 %1830
    %1832 = vrot.lane.b32.xlu0 %v1700, 64
    %v1833 = vpop.permute.xlu0 %1832
    %1834 = vrot.lane.b32.xlu0 %v1701, 64
    %v1835 = vpop.permute.xlu0 %1834
    %1836 = vrot.lane.b32.xlu0 %v1702, 64
    %v1837 = vpop.permute.xlu0 %1836
    %1838 = vrot.lane.b32.xlu0 %v1703, 64
    %v1839 = vpop.permute.xlu0 %1838
    %v1874 = vmul.f32 %v1704, %v1773
    %v1875 = vmul.f32 %v1705, %v1775
    %v1876 = vmul.f32 %v1706, %v1777
    %v1877 = vmul.f32 %v1707, %v1779
    %v1878 = vmul.f32 %v1708, %v1781
    %v1879 = vmul.f32 %v1709, %v1783
    %v1880 = vmul.f32 %v1710, %v1785
    %v1881 = vmul.f32 %v1711, %v1787
    %v1882 = vmul.f32 %v1712, %v1789
    %v1883 = vmul.f32 %v1713, %v1791
    %v1884 = vmul.f32 %v1714, %v1793
    %v1885 = vmul.f32 %v1715, %v1795
    %v1886 = vmul.f32 %v1716, %v1797
    %v1887 = vmul.f32 %v1717, %v1799
    %v1888 = vmul.f32 %v1718, %v1801
    %v1889 = vmul.f32 %v1719, %v1803
    %v1890 = vmul.f32 %v1720, %v1805
    %v1891 = vmul.f32 %v1721, %v1807
    %v1892 = vmul.f32 %v1722, %v1809
    %v1893 = vmul.f32 %v1723, %v1811
    %v1894 = vmul.f32 %v1724, %v1813
    %v1895 = vmul.f32 %v1725, %v1815
    %v1896 = vmul.f32 %v1726, %v1817
    %v1897 = vmul.f32 %v1727, %v1819
    %v1898 = vmul.f32 %v1728, %v1821
    %v1899 = vmul.f32 %v1729, %v1823
    %v1900 = vmul.f32 %v1730, %v1825
    %v1901 = vmul.f32 %v1731, %v1827
    %v1902 = vmul.f32 %v1732, %v1829
    %v1903 = vmul.f32 %v1733, %v1831
    %v1904 = vmul.f32 %v1734, %v1833
    %v1905 = vmul.f32 %v1735, %v1835
    %v1906 = vmul.f32 %v1736, %v1837
    %v1907 = vmul.f32 %v1737, %v1839
    %v1908 = vmul.f32 %v1106, %v58
    %v1909 = vmul.f32 %v1121, %v59
    %v1910 = vmul.f32 %v1136, %v60
    %v1911 = vmul.f32 %v1151, %v61
    %v1912 = vmul.f32 %v1166, %v62
    %v1913 = vmul.f32 %v1181, %v63
    %v1914 = vmul.f32 %v1196, %v64
    %v1915 = vmul.f32 %v1211, %v65
    %v1916 = vmul.f32 %v1226, %v66
    %v1917 = vmul.f32 %v1241, %v67
    %v1918 = vmul.f32 %v1256, %v68
    %v1919 = vmul.f32 %v1271, %v69
    %v1920 = vmul.f32 %v1286, %v70
    %v1921 = vmul.f32 %v1301, %v71
    %v1922 = vmul.f32 %v1316, %v72
    %v1923 = vmul.f32 %v1331, %v73
    %v1924 = vmul.f32 %v1346, %v74
    %v1925 = vmul.f32 %v1361, %v75
    %v1926 = vmul.f32 %v1376, %v76
    %v1927 = vmul.f32 %v1391, %v77
    %v1928 = vmul.f32 %v1406, %v78
    %v1929 = vmul.f32 %v1421, %v79
    %v1930 = vmul.f32 %v1436, %v80
    %v1931 = vmul.f32 %v1451, %v81
    %v1932 = vmul.f32 %v1466, %v82
    %v1933 = vmul.f32 %v1481, %v83
    %v1934 = vmul.f32 %v1496, %v84
    %v1935 = vmul.f32 %v1511, %v85
    %v1936 = vmul.f32 %v1526, %v86
    %v1937 = vmul.f32 %v1541, %v87
    %v1938 = vmul.f32 %v1556, %v88
    %v1939 = vmul.f32 %v1571, %v89
    %v1940 = vmul.f32 %v1586, %v90
    %v1941 = vmul.f32 %v1601, %v91
    %v1942 = vadd.f32 %v1874, %v1908
    %v1943 = vadd.f32 %v1875, %v1909
    %v1944 = vadd.f32 %v1876, %v1910
    %v1945 = vadd.f32 %v1877, %v1911
    %v1946 = vadd.f32 %v1878, %v1912
    %v1947 = vadd.f32 %v1879, %v1913
    %v1948 = vadd.f32 %v1880, %v1914
    %v1949 = vadd.f32 %v1881, %v1915
    %v1950 = vadd.f32 %v1882, %v1916
    %v1951 = vadd.f32 %v1883, %v1917
    %v1952 = vadd.f32 %v1884, %v1918
    %v1953 = vadd.f32 %v1885, %v1919
    %v1954 = vadd.f32 %v1886, %v1920
    %v1955 = vadd.f32 %v1887, %v1921
    %v1956 = vadd.f32 %v1888, %v1922
    %v1957 = vadd.f32 %v1889, %v1923
    %v1958 = vadd.f32 %v1890, %v1924
    %v1959 = vadd.f32 %v1891, %v1925
    %v1960 = vadd.f32 %v1892, %v1926
    %v1961 = vadd.f32 %v1893, %v1927
    %v1962 = vadd.f32 %v1894, %v1928
    %v1963 = vadd.f32 %v1895, %v1929
    %v1964 = vadd.f32 %v1896, %v1930
    %v1965 = vadd.f32 %v1897, %v1931
    %v1966 = vadd.f32 %v1898, %v1932
    %v1967 = vadd.f32 %v1899, %v1933
    %v1968 = vadd.f32 %v1900, %v1934
    %v1969 = vadd.f32 %v1901, %v1935
    %v1970 = vadd.f32 %v1902, %v1936
    %v1971 = vadd.f32 %v1903, %v1937
    %v1972 = vadd.f32 %v1904, %v1938
    %v1973 = vadd.f32 %v1905, %v1939
    %v1974 = vadd.f32 %v1906, %v1940
    %v1975 = vadd.f32 %v1907, %v1941
    %v1977 = vperm.slane %v48, 0
    %1978 = vrot.lane.b32.xlu0 %v1977, 64
    %v1979 = vpop.permute.xlu0 %1978
    %v1981 = vmul.f32 %v1942, %v1979
    %v1982 = vmul.f32 %v1943, %v1979
    %v1983 = vmul.f32 %v1944, %v1979
    %v1984 = vmul.f32 %v1945, %v1979
    %v1985 = vmul.f32 %v1946, %v1979
    %v1986 = vmul.f32 %v1947, %v1979
    %v1987 = vmul.f32 %v1948, %v1979
    %v1988 = vmul.f32 %v1949, %v1979
    %v1989 = vmul.f32 %v1950, %v1979
    %v1990 = vmul.f32 %v1951, %v1979
    %v1991 = vmul.f32 %v1952, %v1979
    %v1992 = vmul.f32 %v1953, %v1979
    %v1993 = vmul.f32 %v1954, %v1979
    %v1994 = vmul.f32 %v1955, %v1979
    %v1995 = vmul.f32 %v1956, %v1979
    %v1996 = vmul.f32 %v1957, %v1979
    %v1997 = vmul.f32 %v1958, %v1979
    %v1998 = vmul.f32 %v1959, %v1979
    %v1999 = vmul.f32 %v1960, %v1979
    %v2000 = vmul.f32 %v1961, %v1979
    %v2001 = vmul.f32 %v1962, %v1979
    %v2002 = vmul.f32 %v1963, %v1979
    %v2003 = vmul.f32 %v1964, %v1979
    %v2004 = vmul.f32 %v1965, %v1979
    %v2005 = vmul.f32 %v1966, %v1979
    %v2006 = vmul.f32 %v1967, %v1979
    %v2007 = vmul.f32 %v1968, %v1979
    %v2008 = vmul.f32 %v1969, %v1979
    %v2009 = vmul.f32 %v1970, %v1979
    %v2010 = vmul.f32 %v1971, %v1979
    %v2011 = vmul.f32 %v1972, %v1979
    %v2012 = vmul.f32 %v1973, %v1979
    %v2013 = vmul.f32 %v1974, %v1979
    %v2014 = vmul.f32 %v1975, %v1979
    %2049 = vrot.lane.b32.xlu0 %v1981, 64
    %v2050 = vpop.permute.xlu0 %2049
    %2051 = vrot.lane.b32.xlu0 %v1982, 64
    %v2052 = vpop.permute.xlu0 %2051
    %2053 = vrot.lane.b32.xlu0 %v1983, 64
    %v2054 = vpop.permute.xlu0 %2053
    %2055 = vrot.lane.b32.xlu0 %v1984, 64
    %v2056 = vpop.permute.xlu0 %2055
    %2057 = vrot.lane.b32.xlu0 %v1985, 64
    %v2058 = vpop.permute.xlu0 %2057
    %2059 = vrot.lane.b32.xlu0 %v1986, 64
    %v2060 = vpop.permute.xlu0 %2059
    %2061 = vrot.lane.b32.xlu0 %v1987, 64
    %v2062 = vpop.permute.xlu0 %2061
    %2063 = vrot.lane.b32.xlu0 %v1988, 64
    %v2064 = vpop.permute.xlu0 %2063
    %2065 = vrot.lane.b32.xlu0 %v1989, 64
    %v2066 = vpop.permute.xlu0 %2065
    %2067 = vrot.lane.b32.xlu0 %v1990, 64
    %v2068 = vpop.permute.xlu0 %2067
    %2069 = vrot.lane.b32.xlu0 %v1991, 64
    %v2070 = vpop.permute.xlu0 %2069
    %2071 = vrot.lane.b32.xlu0 %v1992, 64
    %v2072 = vpop.permute.xlu0 %2071
    %2073 = vrot.lane.b32.xlu0 %v1993, 64
    %v2074 = vpop.permute.xlu0 %2073
    %2075 = vrot.lane.b32.xlu0 %v1994, 64
    %v2076 = vpop.permute.xlu0 %2075
    %2077 = vrot.lane.b32.xlu0 %v1995, 64
    %v2078 = vpop.permute.xlu0 %2077
    %2079 = vrot.lane.b32.xlu0 %v1996, 64
    %v2080 = vpop.permute.xlu0 %2079
    %2081 = vrot.lane.b32.xlu0 %v1997, 64
    %v2082 = vpop.permute.xlu0 %2081
    %2083 = vrot.lane.b32.xlu0 %v1998, 64
    %v2084 = vpop.permute.xlu0 %2083
    %2085 = vrot.lane.b32.xlu0 %v1999, 64
    %v2086 = vpop.permute.xlu0 %2085
    %2087 = vrot.lane.b32.xlu0 %v2000, 64
    %v2088 = vpop.permute.xlu0 %2087
    %2089 = vrot.lane.b32.xlu0 %v2001, 64
    %v2090 = vpop.permute.xlu0 %2089
    %2091 = vrot.lane.b32.xlu0 %v2002, 64
    %v2092 = vpop.permute.xlu0 %2091
    %2093 = vrot.lane.b32.xlu0 %v2003, 64
    %v2094 = vpop.permute.xlu0 %2093
    %2095 = vrot.lane.b32.xlu0 %v2004, 64
    %v2096 = vpop.permute.xlu0 %2095
    %2097 = vrot.lane.b32.xlu0 %v2005, 64
    %v2098 = vpop.permute.xlu0 %2097
    %2099 = vrot.lane.b32.xlu0 %v2006, 64
    %v2100 = vpop.permute.xlu0 %2099
    %2101 = vrot.lane.b32.xlu0 %v2007, 64
    %v2102 = vpop.permute.xlu0 %2101
    %2103 = vrot.lane.b32.xlu0 %v2008, 64
    %v2104 = vpop.permute.xlu0 %2103
    %2105 = vrot.lane.b32.xlu0 %v2009, 64
    %v2106 = vpop.permute.xlu0 %2105
    %2107 = vrot.lane.b32.xlu0 %v2010, 64
    %v2108 = vpop.permute.xlu0 %2107
    %2109 = vrot.lane.b32.xlu0 %v2011, 64
    %v2110 = vpop.permute.xlu0 %2109
    %2111 = vrot.lane.b32.xlu0 %v2012, 64
    %v2112 = vpop.permute.xlu0 %2111
    %2113 = vrot.lane.b32.xlu0 %v2013, 64
    %v2114 = vpop.permute.xlu0 %2113
    %2115 = vrot.lane.b32.xlu0 %v2014, 64
    %v2116 = vpop.permute.xlu0 %2115
    %v2151 = vsel %vm615, %v2050, 0.0
    %2152 = vadd.xlane.f32.xlu0 %v2151
    %v2153 = vpop.xlane.xlu0 %2152
    %v2154 = vsel %vm615, %v2052, 0.0
    %2155 = vadd.xlane.f32.xlu0 %v2154
    %v2156 = vpop.xlane.xlu0 %2155
    %v2157 = vsel %vm615, %v2054, 0.0
    %2158 = vadd.xlane.f32.xlu0 %v2157
    %v2159 = vpop.xlane.xlu0 %2158
    %v2160 = vsel %vm615, %v2056, 0.0
    %2161 = vadd.xlane.f32.xlu0 %v2160
    %v2162 = vpop.xlane.xlu0 %2161
    %v2163 = vsel %vm615, %v2058, 0.0
    %2164 = vadd.xlane.f32.xlu0 %v2163
    %v2165 = vpop.xlane.xlu0 %2164
    %v2166 = vsel %vm615, %v2060, 0.0
    %2167 = vadd.xlane.f32.xlu0 %v2166
    %v2168 = vpop.xlane.xlu0 %2167
    %v2169 = vsel %vm615, %v2062, 0.0
    %2170 = vadd.xlane.f32.xlu0 %v2169
    %v2171 = vpop.xlane.xlu0 %2170
    %v2172 = vsel %vm615, %v2064, 0.0
    %2173 = vadd.xlane.f32.xlu0 %v2172
    %v2174 = vpop.xlane.xlu0 %2173
    %v2175 = vsel %vm615, %v2066, 0.0
    %2176 = vadd.xlane.f32.xlu0 %v2175
    %v2177 = vpop.xlane.xlu0 %2176
    %v2178 = vsel %vm615, %v2068, 0.0
    %2179 = vadd.xlane.f32.xlu0 %v2178
    %v2180 = vpop.xlane.xlu0 %2179
    %v2181 = vsel %vm615, %v2070, 0.0
    %2182 = vadd.xlane.f32.xlu0 %v2181
    %v2183 = vpop.xlane.xlu0 %2182
    %v2184 = vsel %vm615, %v2072, 0.0
    %2185 = vadd.xlane.f32.xlu0 %v2184
    %v2186 = vpop.xlane.xlu0 %2185
    %v2187 = vsel %vm615, %v2074, 0.0
    %2188 = vadd.xlane.f32.xlu0 %v2187
    %v2189 = vpop.xlane.xlu0 %2188
    %v2190 = vsel %vm615, %v2076, 0.0
    %2191 = vadd.xlane.f32.xlu0 %v2190
    %v2192 = vpop.xlane.xlu0 %2191
    %v2193 = vsel %vm615, %v2078, 0.0
    %2194 = vadd.xlane.f32.xlu0 %v2193
    %v2195 = vpop.xlane.xlu0 %2194
    %v2196 = vsel %vm615, %v2080, 0.0
    %2197 = vadd.xlane.f32.xlu0 %v2196
    %v2198 = vpop.xlane.xlu0 %2197
    %v2199 = vsel %vm615, %v2082, 0.0
    %2200 = vadd.xlane.f32.xlu0 %v2199
    %v2201 = vpop.xlane.xlu0 %2200
    %v2202 = vsel %vm615, %v2084, 0.0
    %2203 = vadd.xlane.f32.xlu0 %v2202
    %v2204 = vpop.xlane.xlu0 %2203
    %v2205 = vsel %vm615, %v2086, 0.0
    %2206 = vadd.xlane.f32.xlu0 %v2205
    %v2207 = vpop.xlane.xlu0 %2206
    %v2208 = vsel %vm615, %v2088, 0.0
    %2209 = vadd.xlane.f32.xlu0 %v2208
    %v2210 = vpop.xlane.xlu0 %2209
    %v2211 = vsel %vm615, %v2090, 0.0
    %2212 = vadd.xlane.f32.xlu0 %v2211
    %v2213 = vpop.xlane.xlu0 %2212
    %v2214 = vsel %vm615, %v2092, 0.0
    %2215 = vadd.xlane.f32.xlu0 %v2214
    %v2216 = vpop.xlane.xlu0 %2215
    %v2217 = vsel %vm615, %v2094, 0.0
    %2218 = vadd.xlane.f32.xlu0 %v2217
    %v2219 = vpop.xlane.xlu0 %2218
    %v2220 = vsel %vm615, %v2096, 0.0
    %2221 = vadd.xlane.f32.xlu0 %v2220
    %v2222 = vpop.xlane.xlu0 %2221
    %v2223 = vsel %vm615, %v2098, 0.0
    %2224 = vadd.xlane.f32.xlu0 %v2223
    %v2225 = vpop.xlane.xlu0 %2224
    %v2226 = vsel %vm615, %v2100, 0.0
    %2227 = vadd.xlane.f32.xlu0 %v2226
    %v2228 = vpop.xlane.xlu0 %2227
    %v2229 = vsel %vm615, %v2102, 0.0
    %2230 = vadd.xlane.f32.xlu0 %v2229
    %v2231 = vpop.xlane.xlu0 %2230
    %v2232 = vsel %vm615, %v2104, 0.0
    %2233 = vadd.xlane.f32.xlu0 %v2232
    %v2234 = vpop.xlane.xlu0 %2233
    %v2235 = vsel %vm615, %v2106, 0.0
    %2236 = vadd.xlane.f32.xlu0 %v2235
    %v2237 = vpop.xlane.xlu0 %2236
    %v2238 = vsel %vm615, %v2108, 0.0
    %2239 = vadd.xlane.f32.xlu0 %v2238
    %v2240 = vpop.xlane.xlu0 %2239
    %v2241 = vsel %vm615, %v2110, 0.0
    %2242 = vadd.xlane.f32.xlu0 %v2241
    %v2243 = vpop.xlane.xlu0 %2242
    %v2244 = vsel %vm615, %v2112, 0.0
    %2245 = vadd.xlane.f32.xlu0 %v2244
    %v2246 = vpop.xlane.xlu0 %2245
    %v2247 = vsel %vm615, %v2114, 0.0
    %2248 = vadd.xlane.f32.xlu0 %v2247
    %v2249 = vpop.xlane.xlu0 %2248
    %v2250 = vsel %vm615, %v2116, 0.0
    %2251 = vadd.xlane.f32.xlu0 %v2250
    %v2252 = vpop.xlane.xlu0 %2251
    %v2254 = vperm.slane %v49, 0
    %v2256 = vadd.f32 %v2153, %v2254
    %v2257 = vadd.f32 %v2156, %v2254
    %v2258 = vadd.f32 %v2159, %v2254
    %v2259 = vadd.f32 %v2162, %v2254
    %v2260 = vadd.f32 %v2165, %v2254
    %v2261 = vadd.f32 %v2168, %v2254
    %v2262 = vadd.f32 %v2171, %v2254
    %v2263 = vadd.f32 %v2174, %v2254
    %v2264 = vadd.f32 %v2177, %v2254
    %v2265 = vadd.f32 %v2180, %v2254
    %v2266 = vadd.f32 %v2183, %v2254
    %v2267 = vadd.f32 %v2186, %v2254
    %v2268 = vadd.f32 %v2189, %v2254
    %v2269 = vadd.f32 %v2192, %v2254
    %v2270 = vadd.f32 %v2195, %v2254
    %v2271 = vadd.f32 %v2198, %v2254
    %v2272 = vadd.f32 %v2201, %v2254
    %v2273 = vadd.f32 %v2204, %v2254
    %v2274 = vadd.f32 %v2207, %v2254
    %v2275 = vadd.f32 %v2210, %v2254
    %v2276 = vadd.f32 %v2213, %v2254
    %v2277 = vadd.f32 %v2216, %v2254
    %v2278 = vadd.f32 %v2219, %v2254
    %v2279 = vadd.f32 %v2222, %v2254
    %v2280 = vadd.f32 %v2225, %v2254
    %v2281 = vadd.f32 %v2228, %v2254
    %v2282 = vadd.f32 %v2231, %v2254
    %v2283 = vadd.f32 %v2234, %v2254
    %v2284 = vadd.f32 %v2237, %v2254
    %v2285 = vadd.f32 %v2240, %v2254
    %v2286 = vadd.f32 %v2243, %v2254
    %v2287 = vadd.f32 %v2246, %v2254
    %v2288 = vadd.f32 %v2249, %v2254
    %v2289 = vadd.f32 %v2252, %v2254
    %s2290 = ssub.s32 %s53, 4
    %v2291 = vstv %s2290
    %vm2292 = vcmp.eq.s32.totalorder %v51, %v2291
    %2294 = vset.pattern.permute.xlu0 0
    %2295 = vperm.xlu0 %2294, %v2256
    %v2296 = vpop.permute.xlu0 %2295
    %2299 = vset.pattern.permute.xlu0 0
    %2300 = vperm.xlu0 %2299, %v2257
    %v2301 = vpop.permute.xlu0 %2300
    %2304 = vset.pattern.permute.xlu0 0
    %2305 = vperm.xlu0 %2304, %v2258
    %v2306 = vpop.permute.xlu0 %2305
    %2309 = vset.pattern.permute.xlu0 0
    %2310 = vperm.xlu0 %2309, %v2259
    %v2311 = vpop.permute.xlu0 %2310
    %2314 = vset.pattern.permute.xlu0 0
    %2315 = vperm.xlu0 %2314, %v2260
    %v2316 = vpop.permute.xlu0 %2315
    %2319 = vset.pattern.permute.xlu0 0
    %2320 = vperm.xlu0 %2319, %v2261
    %v2321 = vpop.permute.xlu0 %2320
    %2324 = vset.pattern.permute.xlu0 0
    %2325 = vperm.xlu0 %2324, %v2262
    %v2326 = vpop.permute.xlu0 %2325
    %2329 = vset.pattern.permute.xlu0 0
    %2330 = vperm.xlu0 %2329, %v2263
    %v2331 = vpop.permute.xlu0 %2330
    %2334 = vset.pattern.permute.xlu0 0
    %2335 = vperm.xlu0 %2334, %v2264
    %v2336 = vpop.permute.xlu0 %2335
    %2339 = vset.pattern.permute.xlu0 0
    %2340 = vperm.xlu0 %2339, %v2265
    %v2341 = vpop.permute.xlu0 %2340
    %2344 = vset.pattern.permute.xlu0 0
    %2345 = vperm.xlu0 %2344, %v2266
    %v2346 = vpop.permute.xlu0 %2345
    %2349 = vset.pattern.permute.xlu0 0
    %2350 = vperm.xlu0 %2349, %v2267
    %v2351 = vpop.permute.xlu0 %2350
    %2354 = vset.pattern.permute.xlu0 0
    %2355 = vperm.xlu0 %2354, %v2268
    %v2356 = vpop.permute.xlu0 %2355
    %2359 = vset.pattern.permute.xlu0 0
    %2360 = vperm.xlu0 %2359, %v2269
    %v2361 = vpop.permute.xlu0 %2360
    %2364 = vset.pattern.permute.xlu0 0
    %2365 = vperm.xlu0 %2364, %v2270
    %v2366 = vpop.permute.xlu0 %2365
    %2369 = vset.pattern.permute.xlu0 0
    %2370 = vperm.xlu0 %2369, %v2271
    %v2371 = vpop.permute.xlu0 %2370
    %2374 = vset.pattern.permute.xlu0 0
    %2375 = vperm.xlu0 %2374, %v2272
    %v2376 = vpop.permute.xlu0 %2375
    %2379 = vset.pattern.permute.xlu0 0
    %2380 = vperm.xlu0 %2379, %v2273
    %v2381 = vpop.permute.xlu0 %2380
    %2384 = vset.pattern.permute.xlu0 0
    %2385 = vperm.xlu0 %2384, %v2274
    %v2386 = vpop.permute.xlu0 %2385
    %2389 = vset.pattern.permute.xlu0 0
    %2390 = vperm.xlu0 %2389, %v2275
    %v2391 = vpop.permute.xlu0 %2390
    %2394 = vset.pattern.permute.xlu0 0
    %2395 = vperm.xlu0 %2394, %v2276
    %v2396 = vpop.permute.xlu0 %2395
    %2399 = vset.pattern.permute.xlu0 0
    %2400 = vperm.xlu0 %2399, %v2277
    %v2401 = vpop.permute.xlu0 %2400
    %2404 = vset.pattern.permute.xlu0 0
    %2405 = vperm.xlu0 %2404, %v2278
    %v2406 = vpop.permute.xlu0 %2405
    %2409 = vset.pattern.permute.xlu0 0
    %2410 = vperm.xlu0 %2409, %v2279
    %v2411 = vpop.permute.xlu0 %2410
    %2414 = vset.pattern.permute.xlu0 0
    %2415 = vperm.xlu0 %2414, %v2280
    %v2416 = vpop.permute.xlu0 %2415
    %2419 = vset.pattern.permute.xlu0 0
    %2420 = vperm.xlu0 %2419, %v2281
    %v2421 = vpop.permute.xlu0 %2420
    %2424 = vset.pattern.permute.xlu0 0
    %2425 = vperm.xlu0 %2424, %v2282
    %v2426 = vpop.permute.xlu0 %2425
    %2429 = vset.pattern.permute.xlu0 0
    %2430 = vperm.xlu0 %2429, %v2283
    %v2431 = vpop.permute.xlu0 %2430
    %2434 = vset.pattern.permute.xlu0 0
    %2435 = vperm.xlu0 %2434, %v2284
    %v2436 = vpop.permute.xlu0 %2435
    %2439 = vset.pattern.permute.xlu0 0
    %2440 = vperm.xlu0 %2439, %v2285
    %v2441 = vpop.permute.xlu0 %2440
    %2444 = vset.pattern.permute.xlu0 0
    %2445 = vperm.xlu0 %2444, %v2286
    %v2446 = vpop.permute.xlu0 %2445
    %2449 = vset.pattern.permute.xlu0 0
    %2450 = vperm.xlu0 %2449, %v2287
    %v2451 = vpop.permute.xlu0 %2450
    %2454 = vset.pattern.permute.xlu0 0
    %2455 = vperm.xlu0 %2454, %v2288
    %v2456 = vpop.permute.xlu0 %2455
    %2459 = vset.pattern.permute.xlu0 0
    %2460 = vperm.xlu0 %2459, %v2289
    %v2461 = vpop.permute.xlu0 %2460
    %v2463 = vsel %vm2292, %v2296, %v92
    %v2464 = vsel %vm2292, %v2301, %v93
    %v2465 = vsel %vm2292, %v2306, %v94
    %v2466 = vsel %vm2292, %v2311, %v95
    %v2467 = vsel %vm2292, %v2316, %v96
    %v2468 = vsel %vm2292, %v2321, %v97
    %v2469 = vsel %vm2292, %v2326, %v98
    %v2470 = vsel %vm2292, %v2331, %v99
    %v2471 = vsel %vm2292, %v2336, %v100
    %v2472 = vsel %vm2292, %v2341, %v101
    %v2473 = vsel %vm2292, %v2346, %v102
    %v2474 = vsel %vm2292, %v2351, %v103
    %v2475 = vsel %vm2292, %v2356, %v104
    %v2476 = vsel %vm2292, %v2361, %v105
    %v2477 = vsel %vm2292, %v2366, %v106
    %v2478 = vsel %vm2292, %v2371, %v107
    %v2479 = vsel %vm2292, %v2376, %v108
    %v2480 = vsel %vm2292, %v2381, %v109
    %v2481 = vsel %vm2292, %v2386, %v110
    %v2482 = vsel %vm2292, %v2391, %v111
    %v2483 = vsel %vm2292, %v2396, %v112
    %v2484 = vsel %vm2292, %v2401, %v113
    %v2485 = vsel %vm2292, %v2406, %v114
    %v2486 = vsel %vm2292, %v2411, %v115
    %v2487 = vsel %vm2292, %v2416, %v116
    %v2488 = vsel %vm2292, %v2421, %v117
    %v2489 = vsel %vm2292, %v2426, %v118
    %v2490 = vsel %vm2292, %v2431, %v119
    %v2491 = vsel %vm2292, %v2436, %v120
    %v2492 = vsel %vm2292, %v2441, %v121
    %v2493 = vsel %vm2292, %v2446, %v122
    %v2494 = vsel %vm2292, %v2451, %v123
    %v2495 = vsel %vm2292, %v2456, %v124
    %v2496 = vsel %vm2292, %v2461, %v125
  $region34: #{gru_att_forward.3} parent=0 // loop_footer
    %s57 = sadd.s32 1, %s53
  $region35: #{gru_att_forward.3} parent=0 // loop_footer_branch
    %52 = sbr.rel target = $region31
  $region36: #{gru_att_forward.3} parent=0 // loop_exit
    _
  %v2497 = vmax.f32 %v92, 0.0
  %v2498 = vmax.f32 %v93, 0.0
  %v2499 = vmax.f32 %v94, 0.0
  %v2500 = vmax.f32 %v95, 0.0
  %v2501 = vmax.f32 %v96, 0.0
  %v2502 = vmax.f32 %v97, 0.0
  %v2503 = vmax.f32 %v98, 0.0
  %v2504 = vmax.f32 %v99, 0.0
  %v2505 = vmax.f32 %v100, 0.0
  %v2506 = vmax.f32 %v101, 0.0
  %v2507 = vmax.f32 %v102, 0.0
  %v2508 = vmax.f32 %v103, 0.0
  %v2509 = vmax.f32 %v104, 0.0
  %v2510 = vmax.f32 %v105, 0.0
  %v2511 = vmax.f32 %v106, 0.0
  %v2512 = vmax.f32 %v107, 0.0
  %v2513 = vmax.f32 %v108, 0.0
  %v2514 = vmax.f32 %v109, 0.0
  %v2515 = vmax.f32 %v110, 0.0
  %v2516 = vmax.f32 %v111, 0.0
  %v2517 = vmax.f32 %v112, 0.0
  %v2518 = vmax.f32 %v113, 0.0
  %v2519 = vmax.f32 %v114, 0.0
  %v2520 = vmax.f32 %v115, 0.0
  %v2521 = vmax.f32 %v116, 0.0
  %v2522 = vmax.f32 %v117, 0.0
  %v2523 = vmax.f32 %v118, 0.0
  %v2524 = vmax.f32 %v119, 0.0
  %v2525 = vmax.f32 %v120, 0.0
  %v2526 = vmax.f32 %v121, 0.0
  %v2527 = vmax.f32 %v122, 0.0
  %v2528 = vmax.f32 %v123, 0.0
  %v2529 = vmax.f32 %v124, 0.0
  %v2530 = vmax.f32 %v125, 0.0
  %2531 = vst [vmem:[%s7] sm:$0xff] %v2497
  %2532 = vst [vmem:[%s7 + $0x8] sm:$0xff] %v2498
  %2533 = vst [vmem:[%s7 + $0x10] sm:$0xff] %v2499
  %2534 = vst [vmem:[%s7 + $0x18] sm:$0xff] %v2500
  %2535 = vst [vmem:[%s7 + $0x20] sm:$0xff] %v2501
  %2536 = vst [vmem:[%s7 + $0x28] sm:$0xff] %v2502
  %2537 = vst [vmem:[%s7 + $0x30] sm:$0xff] %v2503
  %2538 = vst [vmem:[%s7 + $0x38] sm:$0xff] %v2504
  %2539 = vst [vmem:[%s7 + $0x40] sm:$0xff] %v2505
  %2540 = vst [vmem:[%s7 + $0x48] sm:$0xff] %v2506
  %2541 = vst [vmem:[%s7 + $0x50] sm:$0xff] %v2507
  %2542 = vst [vmem:[%s7 + $0x58] sm:$0xff] %v2508
  %2543 = vst [vmem:[%s7 + $0x60] sm:$0xff] %v2509
  %2544 = vst [vmem:[%s7 + $0x68] sm:$0xff] %v2510
  %2545 = vst [vmem:[%s7 + $0x70] sm:$0xff] %v2511
  %2546 = vst [vmem:[%s7 + $0x78] sm:$0xff] %v2512
  %2547 = vst [vmem:[%s7 + $0x80] sm:$0xff] %v2513
  %2548 = vst [vmem:[%s7 + $0x88] sm:$0xff] %v2514
  %2549 = vst [vmem:[%s7 + $0x90] sm:$0xff] %v2515
  %2550 = vst [vmem:[%s7 + $0x98] sm:$0xff] %v2516
  %2551 = vst [vmem:[%s7 + $0xa0] sm:$0xff] %v2517
  %2552 = vst [vmem:[%s7 + $0xa8] sm:$0xff] %v2518
  %2553 = vst [vmem:[%s7 + $0xb0] sm:$0xff] %v2519
  %2554 = vst [vmem:[%s7 + $0xb8] sm:$0xff] %v2520
  %2555 = vst [vmem:[%s7 + $0xc0] sm:$0xff] %v2521
  %2556 = vst [vmem:[%s7 + $0xc8] sm:$0xff] %v2522
  %2557 = vst [vmem:[%s7 + $0xd0] sm:$0xff] %v2523
  %2558 = vst [vmem:[%s7 + $0xd8] sm:$0xff] %v2524
  %2559 = vst [vmem:[%s7 + $0xe0] sm:$0xff] %v2525
  %2560 = vst [vmem:[%s7 + $0xe8] sm:$0xff] %v2526
  %2561 = vst [vmem:[%s7 + $0xf0] sm:$0xff] %v2527
  %2562 = vst [vmem:[%s7 + $0xf8] sm:$0xff] %v2528
  %2563 = vst [vmem:[%s7 + $0x100] sm:$0xff] %v2529
  %2564 = vst [vmem:[%s7 + $0x108] sm:$0xff] %v2530
  // Predicated region
  $region37: #{gru_att_forward.3} parent=0 // pred_check
    _
  $region38: #{gru_att_forward.3} parent=0 // pred_check_branch
    %2566 = sbr.rel (0) target = $region40
  $region39: #{gru_att_forward.3} parent=0 // pred_region
    _
  $region40: #{gru_att_forward.3} parent=0 // pred_fallthru
    _
  // Predicated region
  $region41: #{gru_att_forward.3} parent=0 // pred_check
    _
  $region42: #{gru_att_forward.3} parent=0 // pred_check_branch
    %2568 = sbr.rel (0) target = $region44
  $region43: #{gru_att_forward.3} parent=0 // pred_region
    _
  $region44: #{gru_att_forward.3} parent=0 // pred_fallthru
    _

</llo_original>
